<compile_context>
chip_gen: v5e
topology: v5e:2x2
jax: 0.10.0
libtpu: 0.0.40
codegen_flags: <defaults>
</compile_context>

<pallas_src>
import functools

import jax
import jax.numpy as jnp
from jax import lax
from jax.experimental import pallas as pl
from jax.experimental.pallas import tpu as pltpu


def _ctr_kernel(a_ref, b_ref, m_ref, out_ref, *,
                sinkhorn_alpha, stop_thr, max_iter, epsilon, weight):
    a = a_ref[...].astype(jnp.float32)          # (B, K)
    b = b_ref[...].astype(jnp.float32)          # (B, N)
    M = m_ref[...].astype(jnp.float32)          # (K, N)

    B, K = a.shape

    # Shared Gibbs kernel: f32 copy kept for the loss epilogue; bf16 copies of
    # it and its transpose are the (weight-like) MXU operands of the hot loop.
    K_mat = jnp.exp(-M * sinkhorn_alpha)                     # (K, N) f32
    Kb = K_mat.astype(jnp.bfloat16)                          # (K, N) bf16
    KTb = K_mat.T.astype(jnp.bfloat16)                       # (N, K) bf16, one-time transpose

    def sinkhorn_step(u, KTu, v):
        # v_t = b / (K^T u_t + eps)         (divide -> EUP approx reciprocal)
        v = b * pl.reciprocal(KTu + epsilon, approx=True)                 # (B, N) f32
        # Kv_t = K_mat @ v_t : single-pass bf16 MXU matmul, f32 accumulation
        Kv = jnp.dot(v.astype(jnp.bfloat16), KTb,
                     preferred_element_type=jnp.float32)                  # (B, K) f32
        # u_{t+1} = a / (K v_t + eps)
        u = a * pl.reciprocal(Kv + epsilon, approx=True)                  # (B, K) f32
        # carry K^T u_{t+1}: reused by the err check AND the next iteration
        KTu = jnp.dot(u.astype(jnp.bfloat16), Kb,
                      preferred_element_type=jnp.float32)                 # (B, N) f32
        return u, KTu, v

    def compute_err(KTu, v):
        # reference: bb = v_t * (K^T u_{t+1}); err = max_b sum_n |bb - b|
        return jnp.max(jnp.sum(jnp.abs(v * KTu - b), axis=1))

    # init: u = 1/K, prime the carried KTu
    u = jnp.full_like(a, 1.0 / K)
    KTu = jnp.dot(u.astype(jnp.bfloat16), Kb, preferred_element_type=jnp.float32)
    v = jnp.zeros_like(b)

    if max_iter >= 1:                      # static (Python int)
        # --- iteration cpt=1: one step + err check (reference checks cpt%50==1)
        u, KTu, v = sinkhorn_step(u, KTu, v)
        err = compute_err(KTu, v)

        # --- full 50-step chunks; err checked once per chunk (cpt = 51, 101, ...)
        n_full_chunks = (max_iter - 1) // 50
        if n_full_chunks > 0:
            UNROLL = 10                    # 50 % UNROLL == 0; vreg pressure is trivial

            def chunk_inner(_, s):
                for _i in range(UNROLL):   # manual unroll: no per-step branch
                    s = sinkhorn_step(*s)
                return s

            def chunk_cond(c):
                _, _, _, c_err, ci = c
                return jnp.logical_and(c_err > stop_thr, ci < n_full_chunks)

            def chunk_body(c):
                cu, cKTu, cv, c_err, ci = c
                cu, cKTu, cv = lax.fori_loop(0, 50 // UNROLL, chunk_inner,
                                             (cu, cKTu, cv))
                c_err = compute_err(cKTu, cv)
                return (cu, cKTu, cv, c_err, ci + 1)

            u, KTu, v, err, _ = lax.while_loop(
                chunk_cond, chunk_body, (u, KTu, v, err, jnp.int32(0)))

        # --- remainder: (max_iter-1) % 50 un-checked steps, only if the budget
        #     (not convergence) ended the chunk loop (err still > stop_thr).
        #     Fully unrolled under one lax.cond: no per-step scalar back-edge.
        R = (max_iter - 1) % 50
        if R > 0:
            def run_remainder(s):
                for _i in range(R):
                    s = sinkhorn_step(*s)
                return s

            u, KTu, v = lax.cond(err > stop_thr, run_remainder,
                                 lambda s: s, (u, KTu, v))

    # loss = mean_b sum_{k,n} u[b,k] * K_mat[k,n] * v[b,n] * M[k,n]
    #      = mean_b < u[b] @ (K_mat * M), v[b] >     (one-time f32 epilogue)
    KM = K_mat * M                                                        # (K, N)
    uKM = jnp.dot(u, KM, preferred_element_type=jnp.float32)              # (B, N)
    per_batch = jnp.sum(uKM * v, axis=1, keepdims=True)                   # (B, 1)
    loss = jnp.sum(per_batch, axis=0, keepdims=True) * (weight / B)       # (1, 1)
    out_ref[...] = loss


def ctr_loss(a, b, M, *, weight_loss_CTR, sinkhorn_alpha,
             OT_max_iter=5000, stopThr=0.005):
    """Pallas TPU implementation of CTR.forward(a, b, M)."""
    if weight_loss_CTR <= 1e-06:
        return jnp.float32(0.0)

    kernel = functools.partial(
        _ctr_kernel,
        sinkhorn_alpha=float(sinkhorn_alpha),
        stop_thr=float(stopThr),
        max_iter=int(OT_max_iter),
        epsilon=1e-16,
        weight=float(weight_loss_CTR),
    )

    out = pl.pallas_call(
        kernel,
        out_shape=jax.ShapeDtypeStruct((1, 1), jnp.float32),
        in_specs=[
            pl.BlockSpec(memory_space=pltpu.MemorySpace.VMEM),
            pl.BlockSpec(memory_space=pltpu.MemorySpace.VMEM),
            pl.BlockSpec(memory_space=pltpu.MemorySpace.VMEM),
        ],
        out_specs=pl.BlockSpec(memory_space=pltpu.MemorySpace.VMEM),
    )(a, b, M)
    return out[0, 0]


def _ctr_reference(a, b, M, *, weight, alpha, max_iter, stop_thr, eps=1e-16):
    """Pure-JAX mirror of the PyTorch reference (exact divides), for validation."""
    B, K = a.shape
    Km = jnp.exp(-M * alpha)
    u0 = jnp.full_like(a, 1.0 / K)

    def cond(c):
        _, _, err, cpt = c
        return jnp.logical_and(err > stop_thr, cpt < max_iter)

    def body(c):
        u, v, err, cpt = c
        KTu = u @ Km
        v = b / (KTu + eps)
        Kv = v @ Km.T
        u = a / (Kv + eps)
        cpt = cpt + 1
        KTu2 = u @ Km
        err_cand = jnp.max(jnp.sum(jnp.abs(v * KTu2 - b), axis=1))
        err = jnp.where(cpt % 50 == 1, err_cand, err)
        return (u, v, err, cpt)

    u, v, _, _ = lax.while_loop(
        cond, body, (u0, jnp.zeros_like(b), jnp.float32(jnp.inf), jnp.int32(0)))
    return jnp.mean(jnp.sum((u @ (Km * M)) * v, axis=1)) * weight


if __name__ == "__main__":
    key = jax.random.PRNGKey(0)
    k_a, k_b, k_m = jax.random.split(key, 3)

    B, K, N = 8, 32, 16  # small shapes: batch=8, source topics=32, target topics=16

    # a, b are per-row probability distributions; M is a cost matrix in [0, 1).
    a = jax.nn.softmax(jax.random.normal(k_a, (B, K), dtype=jnp.float32), axis=-1)
    b = jax.nn.softmax(jax.random.normal(k_b, (B, N), dtype=jnp.float32), axis=-1)
    M = jax.random.uniform(k_m, (K, N), dtype=jnp.float32)

    loss = ctr_loss(
        a, b, M,
        weight_loss_CTR=1.0,
        sinkhorn_alpha=20.0,
        OT_max_iter=5000,
        stopThr=0.005,
    )
    loss = jax.block_until_ready(loss)
    assert bool(jnp.isfinite(loss)), f"non-finite loss: {loss}"

    # Validate against the plain-JAX reference (loose tol: approx reciprocal and
    # bf16 single-pass matmuls may shift the converged iteration count by one
    # 50-step check interval and perturb the fixed point at the ~1e-3 level).
    ref = jax.jit(functools.partial(
        _ctr_reference, weight=1.0, alpha=20.0, max_iter=5000, stop_thr=0.005,
    ))(a, b, M)
    ref = jax.block_until_ready(ref)
    assert jnp.allclose(loss, ref, rtol=5e-2, atol=2e-2), (float(loss), float(ref))

    print("KERNEL_OK")
</pallas_src>

<mosaic_0001>
module attributes {stable_mosaic.version = 11 : i64} {
  func.func @_ctr_kernel(%arg0: memref<8x32xf32, #tpu.memory_space<vmem>>, %arg1: memref<8x16xf32, #tpu.memory_space<vmem>>, %arg2: memref<32x16xf32, #tpu.memory_space<vmem>>, %arg3: memref<1x1xf32, #tpu.memory_space<vmem>>) attributes {dimension_semantics = [], scalar_prefetch = 0 : i64, scratch_operands = 0 : i64, tpu.core_type = #tpu.core_type<tc>} {
    %c0 = arith.constant 0 : index
    %c0_0 = arith.constant 0 : index
    %0 = vector.load %arg0[%c0, %c0_0] : memref<8x32xf32, #tpu.memory_space<vmem>>, vector<8x32xf32>
    %c0_1 = arith.constant 0 : index
    %c0_2 = arith.constant 0 : index
    %1 = vector.load %arg1[%c0_1, %c0_2] : memref<8x16xf32, #tpu.memory_space<vmem>>, vector<8x16xf32>
    %c0_3 = arith.constant 0 : index
    %c0_4 = arith.constant 0 : index
    %2 = vector.load %arg2[%c0_3, %c0_4] : memref<32x16xf32, #tpu.memory_space<vmem>>, vector<32x16xf32>
    %cst = arith.constant 0.000000e+00 : f32
    %3 = vector.broadcast %cst : f32 to vector<32x16xf32>
    %4 = arith.subf %3, %2 : vector<32x16xf32>
    %cst_5 = arith.constant 2.000000e+01 : f32
    %5 = vector.broadcast %cst_5 : f32 to vector<32x16xf32>
    %6 = arith.mulf %4, %5 : vector<32x16xf32>
    %7 = math.exp %6 : vector<32x16xf32>
    %8 = arith.truncf %7 : vector<32x16xf32> to vector<32x16xbf16>
    %9 = tpu.transpose %7, [1, 0] : vector<32x16xf32> -> vector<16x32xf32>
    %10 = arith.truncf %9 : vector<16x32xf32> to vector<16x32xbf16>
    %cst_6 = arith.constant 3.125000e-02 : f32
    %11 = vector.broadcast %cst_6 : f32 to vector<8x32xf32>
    %12 = arith.truncf %11 : vector<8x32xf32> to vector<8x32xbf16>
    %cst_7 = arith.constant dense<0.000000e+00> : vector<8x16xf32>
    %13 = tpu.matmul %12, %8, %cst_7 {dimension_numbers = #tpu.dot_dimension_numbers<[1], [0], [0], [1], [0, 0, 1, 1], [], []>} : vector<8x32xbf16>, vector<32x16xbf16>, vector<8x16xf32> -> vector<8x16xf32>
    %cst_8 = arith.constant 1.000000e-16 : f32
    %14 = vector.broadcast %cst_8 : f32 to vector<8x16xf32>
    %15 = arith.addf %13, %14 : vector<8x16xf32>
    %16 = tpu.reciprocal %15 {approx = true} : vector<8x16xf32> -> vector<8x16xf32>
    %17 = arith.mulf %1, %16 : vector<8x16xf32>
    %18 = arith.truncf %17 : vector<8x16xf32> to vector<8x16xbf16>
    %cst_9 = arith.constant dense<0.000000e+00> : vector<8x32xf32>
    %19 = tpu.matmul %18, %10, %cst_9 {dimension_numbers = #tpu.dot_dimension_numbers<[1], [0], [0], [1], [0, 0, 1, 1], [], []>} : vector<8x16xbf16>, vector<16x32xbf16>, vector<8x32xf32> -> vector<8x32xf32>
    %cst_10 = arith.constant 1.000000e-16 : f32
    %20 = vector.broadcast %cst_10 : f32 to vector<8x32xf32>
    %21 = arith.addf %19, %20 : vector<8x32xf32>
    %22 = tpu.reciprocal %21 {approx = true} : vector<8x32xf32> -> vector<8x32xf32>
    %23 = arith.mulf %0, %22 : vector<8x32xf32>
    %24 = arith.truncf %23 : vector<8x32xf32> to vector<8x32xbf16>
    %cst_11 = arith.constant dense<0.000000e+00> : vector<8x16xf32>
    %25 = tpu.matmul %24, %8, %cst_11 {dimension_numbers = #tpu.dot_dimension_numbers<[1], [0], [0], [1], [0, 0, 1, 1], [], []>} : vector<8x32xbf16>, vector<32x16xbf16>, vector<8x16xf32> -> vector<8x16xf32>
    %26 = arith.mulf %17, %25 : vector<8x16xf32>
    %27 = arith.subf %26, %1 : vector<8x16xf32>
    %28 = math.absf %27 : vector<8x16xf32>
    %cst_12 = arith.constant dense<0.000000e+00> : vector<8xf32>
    %29 = vector.multi_reduction <add>, %28, %cst_12 [1] : vector<8x16xf32> to vector<8xf32>
    %30 = vector.shape_cast %29 : vector<8xf32> to vector<1x8xf32>
    %cst_13 = arith.constant dense<0xFF800000> : vector<1xf32>
    %31 = vector.multi_reduction <maximumf>, %30, %cst_13 [1] : vector<1x8xf32> to vector<1xf32>
    %32 = vector.shape_cast %31 : vector<1xf32> to vector<1x1xf32>
    %33 = vector.extract %32[0, 0] : f32 from vector<1x1xf32>
    %c0_i32 = arith.constant 0 : i32
    %34:5 = scf.while (%arg4 = %23, %arg5 = %25, %arg6 = %17, %arg7 = %33, %arg8 = %c0_i32) : (vector<8x32xf32>, vector<8x16xf32>, vector<8x16xf32>, f32, i32) -> (vector<8x32xf32>, vector<8x16xf32>, vector<8x16xf32>, f32, i32) {
      %cst_22 = arith.constant 5.000000e-03 : f32
      %49 = arith.cmpf ogt, %arg7, %cst_22 : f32
      %c99_i32 = arith.constant 99 : i32
      %50 = arith.cmpi slt, %arg8, %c99_i32 : i32
      %51 = arith.andi %49, %50 : i1
      scf.condition(%51) %arg4, %arg5, %arg6, %arg7, %arg8 : vector<8x32xf32>, vector<8x16xf32>, vector<8x16xf32>, f32, i32
    } do {
    ^bb0(%arg4: vector<8x32xf32>, %arg5: vector<8x16xf32>, %arg6: vector<8x16xf32>, %arg7: f32, %arg8: i32):
      %c0_i32_22 = arith.constant 0 : i32
      %c5_i32 = arith.constant 5 : i32
      %49 = arith.addi %c0_i32_22, %c5_i32 : i32
      %c1_i32 = arith.constant 1 : i32
      %50:3 = scf.for %arg9 = %c0_i32_22 to %49 step %c1_i32 iter_args(%arg10 = %arg4, %arg11 = %arg5, %arg12 = %arg6) -> (vector<8x32xf32>, vector<8x16xf32>, vector<8x16xf32>)  : i32 {
        %cst_27 = arith.constant 1.000000e-16 : f32
        %60 = vector.broadcast %cst_27 : f32 to vector<8x16xf32>
        %61 = arith.addf %arg11, %60 : vector<8x16xf32>
        %62 = tpu.reciprocal %61 {approx = true} : vector<8x16xf32> -> vector<8x16xf32>
        %63 = arith.mulf %1, %62 : vector<8x16xf32>
        %64 = arith.truncf %63 : vector<8x16xf32> to vector<8x16xbf16>
        %cst_28 = arith.constant dense<0.000000e+00> : vector<8x32xf32>
        %65 = tpu.matmul %64, %10, %cst_28 {dimension_numbers = #tpu.dot_dimension_numbers<[1], [0], [0], [1], [0, 0, 1, 1], [], []>} : vector<8x16xbf16>, vector<16x32xbf16>, vector<8x32xf32> -> vector<8x32xf32>
        %cst_29 = arith.constant 1.000000e-16 : f32
        %66 = vector.broadcast %cst_29 : f32 to vector<8x32xf32>
        %67 = arith.addf %65, %66 : vector<8x32xf32>
        %68 = tpu.reciprocal %67 {approx = true} : vector<8x32xf32> -> vector<8x32xf32>
        %69 = arith.mulf %0, %68 : vector<8x32xf32>
        %70 = arith.truncf %69 : vector<8x32xf32> to vector<8x32xbf16>
        %cst_30 = arith.constant dense<0.000000e+00> : vector<8x16xf32>
        %71 = tpu.matmul %70, %8, %cst_30 {dimension_numbers = #tpu.dot_dimension_numbers<[1], [0], [0], [1], [0, 0, 1, 1], [], []>} : vector<8x32xbf16>, vector<32x16xbf16>, vector<8x16xf32> -> vector<8x16xf32>
        %cst_31 = arith.constant 1.000000e-16 : f32
        %72 = vector.broadcast %cst_31 : f32 to vector<8x16xf32>
        %73 = arith.addf %71, %72 : vector<8x16xf32>
        %74 = tpu.reciprocal %73 {approx = true} : vector<8x16xf32> -> vector<8x16xf32>
        %75 = arith.mulf %1, %74 : vector<8x16xf32>
        %76 = arith.truncf %75 : vector<8x16xf32> to vector<8x16xbf16>
        %cst_32 = arith.constant dense<0.000000e+00> : vector<8x32xf32>
        %77 = tpu.matmul %76, %10, %cst_32 {dimension_numbers = #tpu.dot_dimension_numbers<[1], [0], [0], [1], [0, 0, 1, 1], [], []>} : vector<8x16xbf16>, vector<16x32xbf16>, vector<8x32xf32> -> vector<8x32xf32>
        %cst_33 = arith.constant 1.000000e-16 : f32
        %78 = vector.broadcast %cst_33 : f32 to vector<8x32xf32>
        %79 = arith.addf %77, %78 : vector<8x32xf32>
        %80 = tpu.reciprocal %79 {approx = true} : vector<8x32xf32> -> vector<8x32xf32>
        %81 = arith.mulf %0, %80 : vector<8x32xf32>
        %82 = arith.truncf %81 : vector<8x32xf32> to vector<8x32xbf16>
        %cst_34 = arith.constant dense<0.000000e+00> : vector<8x16xf32>
        %83 = tpu.matmul %82, %8, %cst_34 {dimension_numbers = #tpu.dot_dimension_numbers<[1], [0], [0], [1], [0, 0, 1, 1], [], []>} : vector<8x32xbf16>, vector<32x16xbf16>, vector<8x16xf32> -> vector<8x16xf32>
        %cst_35 = arith.constant 1.000000e-16 : f32
        %84 = vector.broadcast %cst_35 : f32 to vector<8x16xf32>
        %85 = arith.addf %83, %84 : vector<8x16xf32>
        %86 = tpu.reciprocal %85 {approx = true} : vector<8x16xf32> -> vector<8x16xf32>
        %87 = arith.mulf %1, %86 : vector<8x16xf32>
        %88 = arith.truncf %87 : vector<8x16xf32> to vector<8x16xbf16>
        %cst_36 = arith.constant dense<0.000000e+00> : vector<8x32xf32>
        %89 = tpu.matmul %88, %10, %cst_36 {dimension_numbers = #tpu.dot_dimension_numbers<[1], [0], [0], [1], [0, 0, 1, 1], [], []>} : vector<8x16xbf16>, vector<16x32xbf16>, vector<8x32xf32> -> vector<8x32xf32>
        %cst_37 = arith.constant 1.000000e-16 : f32
        %90 = vector.broadcast %cst_37 : f32 to vector<8x32xf32>
        %91 = arith.addf %89, %90 : vector<8x32xf32>
        %92 = tpu.reciprocal %91 {approx = true} : vector<8x32xf32> -> vector<8x32xf32>
        %93 = arith.mulf %0, %92 : vector<8x32xf32>
        %94 = arith.truncf %93 : vector<8x32xf32> to vector<8x32xbf16>
        %cst_38 = arith.constant dense<0.000000e+00> : vector<8x16xf32>
        %95 = tpu.matmul %94, %8, %cst_38 {dimension_numbers = #tpu.dot_dimension_numbers<[1], [0], [0], [1], [0, 0, 1, 1], [], []>} : vector<8x32xbf16>, vector<32x16xbf16>, vector<8x16xf32> -> vector<8x16xf32>
        %cst_39 = arith.constant 1.000000e-16 : f32
        %96 = vector.broadcast %cst_39 : f32 to vector<8x16xf32>
        %97 = arith.addf %95, %96 : vector<8x16xf32>
        %98 = tpu.reciprocal %97 {approx = true} : vector<8x16xf32> -> vector<8x16xf32>
        %99 = arith.mulf %1, %98 : vector<8x16xf32>
        %100 = arith.truncf %99 : vector<8x16xf32> to vector<8x16xbf16>
        %cst_40 = arith.constant dense<0.000000e+00> : vector<8x32xf32>
        %101 = tpu.matmul %100, %10, %cst_40 {dimension_numbers = #tpu.dot_dimension_numbers<[1], [0], [0], [1], [0, 0, 1, 1], [], []>} : vector<8x16xbf16>, vector<16x32xbf16>, vector<8x32xf32> -> vector<8x32xf32>
        %cst_41 = arith.constant 1.000000e-16 : f32
        %102 = vector.broadcast %cst_41 : f32 to vector<8x32xf32>
        %103 = arith.addf %101, %102 : vector<8x32xf32>
        %104 = tpu.reciprocal %103 {approx = true} : vector<8x32xf32> -> vector<8x32xf32>
        %105 = arith.mulf %0, %104 : vector<8x32xf32>
        %106 = arith.truncf %105 : vector<8x32xf32> to vector<8x32xbf16>
        %cst_42 = arith.constant dense<0.000000e+00> : vector<8x16xf32>
        %107 = tpu.matmul %106, %8, %cst_42 {dimension_numbers = #tpu.dot_dimension_numbers<[1], [0], [0], [1], [0, 0, 1, 1], [], []>} : vector<8x32xbf16>, vector<32x16xbf16>, vector<8x16xf32> -> vector<8x16xf32>
        %cst_43 = arith.constant 1.000000e-16 : f32
        %108 = vector.broadcast %cst_43 : f32 to vector<8x16xf32>
        %109 = arith.addf %107, %108 : vector<8x16xf32>
        %110 = tpu.reciprocal %109 {approx = true} : vector<8x16xf32> -> vector<8x16xf32>
        %111 = arith.mulf %1, %110 : vector<8x16xf32>
        %112 = arith.truncf %111 : vector<8x16xf32> to vector<8x16xbf16>
        %cst_44 = arith.constant dense<0.000000e+00> : vector<8x32xf32>
        %113 = tpu.matmul %112, %10, %cst_44 {dimension_numbers = #tpu.dot_dimension_numbers<[1], [0], [0], [1], [0, 0, 1, 1], [], []>} : vector<8x16xbf16>, vector<16x32xbf16>, vector<8x32xf32> -> vector<8x32xf32>
        %cst_45 = arith.constant 1.000000e-16 : f32
        %114 = vector.broadcast %cst_45 : f32 to vector<8x32xf32>
        %115 = arith.addf %113, %114 : vector<8x32xf32>
        %116 = tpu.reciprocal %115 {approx = true} : vector<8x32xf32> -> vector<8x32xf32>
        %117 = arith.mulf %0, %116 : vector<8x32xf32>
        %118 = arith.truncf %117 : vector<8x32xf32> to vector<8x32xbf16>
        %cst_46 = arith.constant dense<0.000000e+00> : vector<8x16xf32>
        %119 = tpu.matmul %118, %8, %cst_46 {dimension_numbers = #tpu.dot_dimension_numbers<[1], [0], [0], [1], [0, 0, 1, 1], [], []>} : vector<8x32xbf16>, vector<32x16xbf16>, vector<8x16xf32> -> vector<8x16xf32>
        %cst_47 = arith.constant 1.000000e-16 : f32
        %120 = vector.broadcast %cst_47 : f32 to vector<8x16xf32>
        %121 = arith.addf %119, %120 : vector<8x16xf32>
        %122 = tpu.reciprocal %121 {approx = true} : vector<8x16xf32> -> vector<8x16xf32>
        %123 = arith.mulf %1, %122 : vector<8x16xf32>
        %124 = arith.truncf %123 : vector<8x16xf32> to vector<8x16xbf16>
        %cst_48 = arith.constant dense<0.000000e+00> : vector<8x32xf32>
        %125 = tpu.matmul %124, %10, %cst_48 {dimension_numbers = #tpu.dot_dimension_numbers<[1], [0], [0], [1], [0, 0, 1, 1], [], []>} : vector<8x16xbf16>, vector<16x32xbf16>, vector<8x32xf32> -> vector<8x32xf32>
        %cst_49 = arith.constant 1.000000e-16 : f32
        %126 = vector.broadcast %cst_49 : f32 to vector<8x32xf32>
        %127 = arith.addf %125, %126 : vector<8x32xf32>
        %128 = tpu.reciprocal %127 {approx = true} : vector<8x32xf32> -> vector<8x32xf32>
        %129 = arith.mulf %0, %128 : vector<8x32xf32>
        %130 = arith.truncf %129 : vector<8x32xf32> to vector<8x32xbf16>
        %cst_50 = arith.constant dense<0.000000e+00> : vector<8x16xf32>
        %131 = tpu.matmul %130, %8, %cst_50 {dimension_numbers = #tpu.dot_dimension_numbers<[1], [0], [0], [1], [0, 0, 1, 1], [], []>} : vector<8x32xbf16>, vector<32x16xbf16>, vector<8x16xf32> -> vector<8x16xf32>
        %cst_51 = arith.constant 1.000000e-16 : f32
        %132 = vector.broadcast %cst_51 : f32 to vector<8x16xf32>
        %133 = arith.addf %131, %132 : vector<8x16xf32>
        %134 = tpu.reciprocal %133 {approx = true} : vector<8x16xf32> -> vector<8x16xf32>
        %135 = arith.mulf %1, %134 : vector<8x16xf32>
        %136 = arith.truncf %135 : vector<8x16xf32> to vector<8x16xbf16>
        %cst_52 = arith.constant dense<0.000000e+00> : vector<8x32xf32>
        %137 = tpu.matmul %136, %10, %cst_52 {dimension_numbers = #tpu.dot_dimension_numbers<[1], [0], [0], [1], [0, 0, 1, 1], [], []>} : vector<8x16xbf16>, vector<16x32xbf16>, vector<8x32xf32> -> vector<8x32xf32>
        %cst_53 = arith.constant 1.000000e-16 : f32
        %138 = vector.broadcast %cst_53 : f32 to vector<8x32xf32>
        %139 = arith.addf %137, %138 : vector<8x32xf32>
        %140 = tpu.reciprocal %139 {approx = true} : vector<8x32xf32> -> vector<8x32xf32>
        %141 = arith.mulf %0, %140 : vector<8x32xf32>
        %142 = arith.truncf %141 : vector<8x32xf32> to vector<8x32xbf16>
        %cst_54 = arith.constant dense<0.000000e+00> : vector<8x16xf32>
        %143 = tpu.matmul %142, %8, %cst_54 {dimension_numbers = #tpu.dot_dimension_numbers<[1], [0], [0], [1], [0, 0, 1, 1], [], []>} : vector<8x32xbf16>, vector<32x16xbf16>, vector<8x16xf32> -> vector<8x16xf32>
        %cst_55 = arith.constant 1.000000e-16 : f32
        %144 = vector.broadcast %cst_55 : f32 to vector<8x16xf32>
        %145 = arith.addf %143, %144 : vector<8x16xf32>
        %146 = tpu.reciprocal %145 {approx = true} : vector<8x16xf32> -> vector<8x16xf32>
        %147 = arith.mulf %1, %146 : vector<8x16xf32>
        %148 = arith.truncf %147 : vector<8x16xf32> to vector<8x16xbf16>
        %cst_56 = arith.constant dense<0.000000e+00> : vector<8x32xf32>
        %149 = tpu.matmul %148, %10, %cst_56 {dimension_numbers = #tpu.dot_dimension_numbers<[1], [0], [0], [1], [0, 0, 1, 1], [], []>} : vector<8x16xbf16>, vector<16x32xbf16>, vector<8x32xf32> -> vector<8x32xf32>
        %cst_57 = arith.constant 1.000000e-16 : f32
        %150 = vector.broadcast %cst_57 : f32 to vector<8x32xf32>
        %151 = arith.addf %149, %150 : vector<8x32xf32>
        %152 = tpu.reciprocal %151 {approx = true} : vector<8x32xf32> -> vector<8x32xf32>
        %153 = arith.mulf %0, %152 : vector<8x32xf32>
        %154 = arith.truncf %153 : vector<8x32xf32> to vector<8x32xbf16>
        %cst_58 = arith.constant dense<0.000000e+00> : vector<8x16xf32>
        %155 = tpu.matmul %154, %8, %cst_58 {dimension_numbers = #tpu.dot_dimension_numbers<[1], [0], [0], [1], [0, 0, 1, 1], [], []>} : vector<8x32xbf16>, vector<32x16xbf16>, vector<8x16xf32> -> vector<8x16xf32>
        %cst_59 = arith.constant 1.000000e-16 : f32
        %156 = vector.broadcast %cst_59 : f32 to vector<8x16xf32>
        %157 = arith.addf %155, %156 : vector<8x16xf32>
        %158 = tpu.reciprocal %157 {approx = true} : vector<8x16xf32> -> vector<8x16xf32>
        %159 = arith.mulf %1, %158 : vector<8x16xf32>
        %160 = arith.truncf %159 : vector<8x16xf32> to vector<8x16xbf16>
        %cst_60 = arith.constant dense<0.000000e+00> : vector<8x32xf32>
        %161 = tpu.matmul %160, %10, %cst_60 {dimension_numbers = #tpu.dot_dimension_numbers<[1], [0], [0], [1], [0, 0, 1, 1], [], []>} : vector<8x16xbf16>, vector<16x32xbf16>, vector<8x32xf32> -> vector<8x32xf32>
        %cst_61 = arith.constant 1.000000e-16 : f32
        %162 = vector.broadcast %cst_61 : f32 to vector<8x32xf32>
        %163 = arith.addf %161, %162 : vector<8x32xf32>
        %164 = tpu.reciprocal %163 {approx = true} : vector<8x32xf32> -> vector<8x32xf32>
        %165 = arith.mulf %0, %164 : vector<8x32xf32>
        %166 = arith.truncf %165 : vector<8x32xf32> to vector<8x32xbf16>
        %cst_62 = arith.constant dense<0.000000e+00> : vector<8x16xf32>
        %167 = tpu.matmul %166, %8, %cst_62 {dimension_numbers = #tpu.dot_dimension_numbers<[1], [0], [0], [1], [0, 0, 1, 1], [], []>} : vector<8x32xbf16>, vector<32x16xbf16>, vector<8x16xf32> -> vector<8x16xf32>
        %cst_63 = arith.constant 1.000000e-16 : f32
        %168 = vector.broadcast %cst_63 : f32 to vector<8x16xf32>
        %169 = arith.addf %167, %168 : vector<8x16xf32>
        %170 = tpu.reciprocal %169 {approx = true} : vector<8x16xf32> -> vector<8x16xf32>
        %171 = arith.mulf %1, %170 : vector<8x16xf32>
        %172 = arith.truncf %171 : vector<8x16xf32> to vector<8x16xbf16>
        %cst_64 = arith.constant dense<0.000000e+00> : vector<8x32xf32>
        %173 = tpu.matmul %172, %10, %cst_64 {dimension_numbers = #tpu.dot_dimension_numbers<[1], [0], [0], [1], [0, 0, 1, 1], [], []>} : vector<8x16xbf16>, vector<16x32xbf16>, vector<8x32xf32> -> vector<8x32xf32>
        %cst_65 = arith.constant 1.000000e-16 : f32
        %174 = vector.broadcast %cst_65 : f32 to vector<8x32xf32>
        %175 = arith.addf %173, %174 : vector<8x32xf32>
        %176 = tpu.reciprocal %175 {approx = true} : vector<8x32xf32> -> vector<8x32xf32>
        %177 = arith.mulf %0, %176 : vector<8x32xf32>
        %178 = arith.truncf %177 : vector<8x32xf32> to vector<8x32xbf16>
        %cst_66 = arith.constant dense<0.000000e+00> : vector<8x16xf32>
        %179 = tpu.matmul %178, %8, %cst_66 {dimension_numbers = #tpu.dot_dimension_numbers<[1], [0], [0], [1], [0, 0, 1, 1], [], []>} : vector<8x32xbf16>, vector<32x16xbf16>, vector<8x16xf32> -> vector<8x16xf32>
        scf.yield %177, %179, %171 : vector<8x32xf32>, vector<8x16xf32>, vector<8x16xf32>
      }
      %c5_i32_23 = arith.constant 5 : i32
      %51 = arith.mulf %50#2, %50#1 : vector<8x16xf32>
      %52 = arith.subf %51, %1 : vector<8x16xf32>
      %53 = math.absf %52 : vector<8x16xf32>
      %cst_24 = arith.constant dense<0.000000e+00> : vector<8xf32>
      %54 = vector.multi_reduction <add>, %53, %cst_24 [1] : vector<8x16xf32> to vector<8xf32>
      %55 = vector.shape_cast %54 : vector<8xf32> to vector<1x8xf32>
      %cst_25 = arith.constant dense<0xFF800000> : vector<1xf32>
      %56 = vector.multi_reduction <maximumf>, %55, %cst_25 [1] : vector<1x8xf32> to vector<1xf32>
      %57 = vector.shape_cast %56 : vector<1xf32> to vector<1x1xf32>
      %58 = vector.extract %57[0, 0] : f32 from vector<1x1xf32>
      %c1_i32_26 = arith.constant 1 : i32
      %59 = arith.addi %arg8, %c1_i32_26 : i32
      scf.yield %50#0, %50#1, %50#2, %58, %59 : vector<8x32xf32>, vector<8x16xf32>, vector<8x16xf32>, f32, i32
    }
    %cst_14 = arith.constant 5.000000e-03 : f32
    %35 = arith.cmpf ogt, %34#3, %cst_14 : f32
    %36 = arith.extui %35 : i1 to i32
    %c0_i32_15 = arith.constant 0 : i32
    %37 = arith.cmpi ne, %36, %c0_i32_15 : i32
    %38:2 = scf.if %37 -> (vector<8x32xf32>, vector<8x16xf32>) {
      %cst_22 = arith.constant 1.000000e-16 : f32
      %49 = vector.broadcast %cst_22 : f32 to vector<8x16xf32>
      %50 = arith.addf %34#1, %49 : vector<8x16xf32>
      %51 = tpu.reciprocal %50 {approx = true} : vector<8x16xf32> -> vector<8x16xf32>
      %52 = arith.mulf %1, %51 : vector<8x16xf32>
      %53 = arith.truncf %52 : vector<8x16xf32> to vector<8x16xbf16>
      %cst_23 = arith.constant dense<0.000000e+00> : vector<8x32xf32>
      %54 = tpu.matmul %53, %10, %cst_23 {dimension_numbers = #tpu.dot_dimension_numbers<[1], [0], [0], [1], [0, 0, 1, 1], [], []>} : vector<8x16xbf16>, vector<16x32xbf16>, vector<8x32xf32> -> vector<8x32xf32>
      %cst_24 = arith.constant 1.000000e-16 : f32
      %55 = vector.broadcast %cst_24 : f32 to vector<8x32xf32>
      %56 = arith.addf %54, %55 : vector<8x32xf32>
      %57 = tpu.reciprocal %56 {approx = true} : vector<8x32xf32> -> vector<8x32xf32>
      %58 = arith.mulf %0, %57 : vector<8x32xf32>
      %59 = arith.truncf %58 : vector<8x32xf32> to vector<8x32xbf16>
      %cst_25 = arith.constant dense<0.000000e+00> : vector<8x16xf32>
      %60 = tpu.matmul %59, %8, %cst_25 {dimension_numbers = #tpu.dot_dimension_numbers<[1], [0], [0], [1], [0, 0, 1, 1], [], []>} : vector<8x32xbf16>, vector<32x16xbf16>, vector<8x16xf32> -> vector<8x16xf32>
      %cst_26 = arith.constant 1.000000e-16 : f32
      %61 = vector.broadcast %cst_26 : f32 to vector<8x16xf32>
      %62 = arith.addf %60, %61 : vector<8x16xf32>
      %63 = tpu.reciprocal %62 {approx = true} : vector<8x16xf32> -> vector<8x16xf32>
      %64 = arith.mulf %1, %63 : vector<8x16xf32>
      %65 = arith.truncf %64 : vector<8x16xf32> to vector<8x16xbf16>
      %cst_27 = arith.constant dense<0.000000e+00> : vector<8x32xf32>
      %66 = tpu.matmul %65, %10, %cst_27 {dimension_numbers = #tpu.dot_dimension_numbers<[1], [0], [0], [1], [0, 0, 1, 1], [], []>} : vector<8x16xbf16>, vector<16x32xbf16>, vector<8x32xf32> -> vector<8x32xf32>
      %cst_28 = arith.constant 1.000000e-16 : f32
      %67 = vector.broadcast %cst_28 : f32 to vector<8x32xf32>
      %68 = arith.addf %66, %67 : vector<8x32xf32>
      %69 = tpu.reciprocal %68 {approx = true} : vector<8x32xf32> -> vector<8x32xf32>
      %70 = arith.mulf %0, %69 : vector<8x32xf32>
      %71 = arith.truncf %70 : vector<8x32xf32> to vector<8x32xbf16>
      %cst_29 = arith.constant dense<0.000000e+00> : vector<8x16xf32>
      %72 = tpu.matmul %71, %8, %cst_29 {dimension_numbers = #tpu.dot_dimension_numbers<[1], [0], [0], [1], [0, 0, 1, 1], [], []>} : vector<8x32xbf16>, vector<32x16xbf16>, vector<8x16xf32> -> vector<8x16xf32>
      %cst_30 = arith.constant 1.000000e-16 : f32
      %73 = vector.broadcast %cst_30 : f32 to vector<8x16xf32>
      %74 = arith.addf %72, %73 : vector<8x16xf32>
      %75 = tpu.reciprocal %74 {approx = true} : vector<8x16xf32> -> vector<8x16xf32>
      %76 = arith.mulf %1, %75 : vector<8x16xf32>
      %77 = arith.truncf %76 : vector<8x16xf32> to vector<8x16xbf16>
      %cst_31 = arith.constant dense<0.000000e+00> : vector<8x32xf32>
      %78 = tpu.matmul %77, %10, %cst_31 {dimension_numbers = #tpu.dot_dimension_numbers<[1], [0], [0], [1], [0, 0, 1, 1], [], []>} : vector<8x16xbf16>, vector<16x32xbf16>, vector<8x32xf32> -> vector<8x32xf32>
      %cst_32 = arith.constant 1.000000e-16 : f32
      %79 = vector.broadcast %cst_32 : f32 to vector<8x32xf32>
      %80 = arith.addf %78, %79 : vector<8x32xf32>
      %81 = tpu.reciprocal %80 {approx = true} : vector<8x32xf32> -> vector<8x32xf32>
      %82 = arith.mulf %0, %81 : vector<8x32xf32>
      %83 = arith.truncf %82 : vector<8x32xf32> to vector<8x32xbf16>
      %cst_33 = arith.constant dense<0.000000e+00> : vector<8x16xf32>
      %84 = tpu.matmul %83, %8, %cst_33 {dimension_numbers = #tpu.dot_dimension_numbers<[1], [0], [0], [1], [0, 0, 1, 1], [], []>} : vector<8x32xbf16>, vector<32x16xbf16>, vector<8x16xf32> -> vector<8x16xf32>
      %cst_34 = arith.constant 1.000000e-16 : f32
      %85 = vector.broadcast %cst_34 : f32 to vector<8x16xf32>
      %86 = arith.addf %84, %85 : vector<8x16xf32>
      %87 = tpu.reciprocal %86 {approx = true} : vector<8x16xf32> -> vector<8x16xf32>
      %88 = arith.mulf %1, %87 : vector<8x16xf32>
      %89 = arith.truncf %88 : vector<8x16xf32> to vector<8x16xbf16>
      %cst_35 = arith.constant dense<0.000000e+00> : vector<8x32xf32>
      %90 = tpu.matmul %89, %10, %cst_35 {dimension_numbers = #tpu.dot_dimension_numbers<[1], [0], [0], [1], [0, 0, 1, 1], [], []>} : vector<8x16xbf16>, vector<16x32xbf16>, vector<8x32xf32> -> vector<8x32xf32>
      %cst_36 = arith.constant 1.000000e-16 : f32
      %91 = vector.broadcast %cst_36 : f32 to vector<8x32xf32>
      %92 = arith.addf %90, %91 : vector<8x32xf32>
      %93 = tpu.reciprocal %92 {approx = true} : vector<8x32xf32> -> vector<8x32xf32>
      %94 = arith.mulf %0, %93 : vector<8x32xf32>
      %95 = arith.truncf %94 : vector<8x32xf32> to vector<8x32xbf16>
      %cst_37 = arith.constant dense<0.000000e+00> : vector<8x16xf32>
      %96 = tpu.matmul %95, %8, %cst_37 {dimension_numbers = #tpu.dot_dimension_numbers<[1], [0], [0], [1], [0, 0, 1, 1], [], []>} : vector<8x32xbf16>, vector<32x16xbf16>, vector<8x16xf32> -> vector<8x16xf32>
      %cst_38 = arith.constant 1.000000e-16 : f32
      %97 = vector.broadcast %cst_38 : f32 to vector<8x16xf32>
      %98 = arith.addf %96, %97 : vector<8x16xf32>
      %99 = tpu.reciprocal %98 {approx = true} : vector<8x16xf32> -> vector<8x16xf32>
      %100 = arith.mulf %1, %99 : vector<8x16xf32>
      %101 = arith.truncf %100 : vector<8x16xf32> to vector<8x16xbf16>
      %cst_39 = arith.constant dense<0.000000e+00> : vector<8x32xf32>
      %102 = tpu.matmul %101, %10, %cst_39 {dimension_numbers = #tpu.dot_dimension_numbers<[1], [0], [0], [1], [0, 0, 1, 1], [], []>} : vector<8x16xbf16>, vector<16x32xbf16>, vector<8x32xf32> -> vector<8x32xf32>
      %cst_40 = arith.constant 1.000000e-16 : f32
      %103 = vector.broadcast %cst_40 : f32 to vector<8x32xf32>
      %104 = arith.addf %102, %103 : vector<8x32xf32>
      %105 = tpu.reciprocal %104 {approx = true} : vector<8x32xf32> -> vector<8x32xf32>
      %106 = arith.mulf %0, %105 : vector<8x32xf32>
      %107 = arith.truncf %106 : vector<8x32xf32> to vector<8x32xbf16>
      %cst_41 = arith.constant dense<0.000000e+00> : vector<8x16xf32>
      %108 = tpu.matmul %107, %8, %cst_41 {dimension_numbers = #tpu.dot_dimension_numbers<[1], [0], [0], [1], [0, 0, 1, 1], [], []>} : vector<8x32xbf16>, vector<32x16xbf16>, vector<8x16xf32> -> vector<8x16xf32>
      %cst_42 = arith.constant 1.000000e-16 : f32
      %109 = vector.broadcast %cst_42 : f32 to vector<8x16xf32>
      %110 = arith.addf %108, %109 : vector<8x16xf32>
      %111 = tpu.reciprocal %110 {approx = true} : vector<8x16xf32> -> vector<8x16xf32>
      %112 = arith.mulf %1, %111 : vector<8x16xf32>
      %113 = arith.truncf %112 : vector<8x16xf32> to vector<8x16xbf16>
      %cst_43 = arith.constant dense<0.000000e+00> : vector<8x32xf32>
      %114 = tpu.matmul %113, %10, %cst_43 {dimension_numbers = #tpu.dot_dimension_numbers<[1], [0], [0], [1], [0, 0, 1, 1], [], []>} : vector<8x16xbf16>, vector<16x32xbf16>, vector<8x32xf32> -> vector<8x32xf32>
      %cst_44 = arith.constant 1.000000e-16 : f32
      %115 = vector.broadcast %cst_44 : f32 to vector<8x32xf32>
      %116 = arith.addf %114, %115 : vector<8x32xf32>
      %117 = tpu.reciprocal %116 {approx = true} : vector<8x32xf32> -> vector<8x32xf32>
      %118 = arith.mulf %0, %117 : vector<8x32xf32>
      %119 = arith.truncf %118 : vector<8x32xf32> to vector<8x32xbf16>
      %cst_45 = arith.constant dense<0.000000e+00> : vector<8x16xf32>
      %120 = tpu.matmul %119, %8, %cst_45 {dimension_numbers = #tpu.dot_dimension_numbers<[1], [0], [0], [1], [0, 0, 1, 1], [], []>} : vector<8x32xbf16>, vector<32x16xbf16>, vector<8x16xf32> -> vector<8x16xf32>
      %cst_46 = arith.constant 1.000000e-16 : f32
      %121 = vector.broadcast %cst_46 : f32 to vector<8x16xf32>
      %122 = arith.addf %120, %121 : vector<8x16xf32>
      %123 = tpu.reciprocal %122 {approx = true} : vector<8x16xf32> -> vector<8x16xf32>
      %124 = arith.mulf %1, %123 : vector<8x16xf32>
      %125 = arith.truncf %124 : vector<8x16xf32> to vector<8x16xbf16>
      %cst_47 = arith.constant dense<0.000000e+00> : vector<8x32xf32>
      %126 = tpu.matmul %125, %10, %cst_47 {dimension_numbers = #tpu.dot_dimension_numbers<[1], [0], [0], [1], [0, 0, 1, 1], [], []>} : vector<8x16xbf16>, vector<16x32xbf16>, vector<8x32xf32> -> vector<8x32xf32>
      %cst_48 = arith.constant 1.000000e-16 : f32
      %127 = vector.broadcast %cst_48 : f32 to vector<8x32xf32>
      %128 = arith.addf %126, %127 : vector<8x32xf32>
      %129 = tpu.reciprocal %128 {approx = true} : vector<8x32xf32> -> vector<8x32xf32>
      %130 = arith.mulf %0, %129 : vector<8x32xf32>
      %131 = arith.truncf %130 : vector<8x32xf32> to vector<8x32xbf16>
      %cst_49 = arith.constant dense<0.000000e+00> : vector<8x16xf32>
      %132 = tpu.matmul %131, %8, %cst_49 {dimension_numbers = #tpu.dot_dimension_numbers<[1], [0], [0], [1], [0, 0, 1, 1], [], []>} : vector<8x32xbf16>, vector<32x16xbf16>, vector<8x16xf32> -> vector<8x16xf32>
      %cst_50 = arith.constant 1.000000e-16 : f32
      %133 = vector.broadcast %cst_50 : f32 to vector<8x16xf32>
      %134 = arith.addf %132, %133 : vector<8x16xf32>
      %135 = tpu.reciprocal %134 {approx = true} : vector<8x16xf32> -> vector<8x16xf32>
      %136 = arith.mulf %1, %135 : vector<8x16xf32>
      %137 = arith.truncf %136 : vector<8x16xf32> to vector<8x16xbf16>
      %cst_51 = arith.constant dense<0.000000e+00> : vector<8x32xf32>
      %138 = tpu.matmul %137, %10, %cst_51 {dimension_numbers = #tpu.dot_dimension_numbers<[1], [0], [0], [1], [0, 0, 1, 1], [], []>} : vector<8x16xbf16>, vector<16x32xbf16>, vector<8x32xf32> -> vector<8x32xf32>
      %cst_52 = arith.constant 1.000000e-16 : f32
      %139 = vector.broadcast %cst_52 : f32 to vector<8x32xf32>
      %140 = arith.addf %138, %139 : vector<8x32xf32>
      %141 = tpu.reciprocal %140 {approx = true} : vector<8x32xf32> -> vector<8x32xf32>
      %142 = arith.mulf %0, %141 : vector<8x32xf32>
      %143 = arith.truncf %142 : vector<8x32xf32> to vector<8x32xbf16>
      %cst_53 = arith.constant dense<0.000000e+00> : vector<8x16xf32>
      %144 = tpu.matmul %143, %8, %cst_53 {dimension_numbers = #tpu.dot_dimension_numbers<[1], [0], [0], [1], [0, 0, 1, 1], [], []>} : vector<8x32xbf16>, vector<32x16xbf16>, vector<8x16xf32> -> vector<8x16xf32>
      %cst_54 = arith.constant 1.000000e-16 : f32
      %145 = vector.broadcast %cst_54 : f32 to vector<8x16xf32>
      %146 = arith.addf %144, %145 : vector<8x16xf32>
      %147 = tpu.reciprocal %146 {approx = true} : vector<8x16xf32> -> vector<8x16xf32>
      %148 = arith.mulf %1, %147 : vector<8x16xf32>
      %149 = arith.truncf %148 : vector<8x16xf32> to vector<8x16xbf16>
      %cst_55 = arith.constant dense<0.000000e+00> : vector<8x32xf32>
      %150 = tpu.matmul %149, %10, %cst_55 {dimension_numbers = #tpu.dot_dimension_numbers<[1], [0], [0], [1], [0, 0, 1, 1], [], []>} : vector<8x16xbf16>, vector<16x32xbf16>, vector<8x32xf32> -> vector<8x32xf32>
      %cst_56 = arith.constant 1.000000e-16 : f32
      %151 = vector.broadcast %cst_56 : f32 to vector<8x32xf32>
      %152 = arith.addf %150, %151 : vector<8x32xf32>
      %153 = tpu.reciprocal %152 {approx = true} : vector<8x32xf32> -> vector<8x32xf32>
      %154 = arith.mulf %0, %153 : vector<8x32xf32>
      %155 = arith.truncf %154 : vector<8x32xf32> to vector<8x32xbf16>
      %cst_57 = arith.constant dense<0.000000e+00> : vector<8x16xf32>
      %156 = tpu.matmul %155, %8, %cst_57 {dimension_numbers = #tpu.dot_dimension_numbers<[1], [0], [0], [1], [0, 0, 1, 1], [], []>} : vector<8x32xbf16>, vector<32x16xbf16>, vector<8x16xf32> -> vector<8x16xf32>
      %cst_58 = arith.constant 1.000000e-16 : f32
      %157 = vector.broadcast %cst_58 : f32 to vector<8x16xf32>
      %158 = arith.addf %156, %157 : vector<8x16xf32>
      %159 = tpu.reciprocal %158 {approx = true} : vector<8x16xf32> -> vector<8x16xf32>
      %160 = arith.mulf %1, %159 : vector<8x16xf32>
      %161 = arith.truncf %160 : vector<8x16xf32> to vector<8x16xbf16>
      %cst_59 = arith.constant dense<0.000000e+00> : vector<8x32xf32>
      %162 = tpu.matmul %161, %10, %cst_59 {dimension_numbers = #tpu.dot_dimension_numbers<[1], [0], [0], [1], [0, 0, 1, 1], [], []>} : vector<8x16xbf16>, vector<16x32xbf16>, vector<8x32xf32> -> vector<8x32xf32>
      %cst_60 = arith.constant 1.000000e-16 : f32
      %163 = vector.broadcast %cst_60 : f32 to vector<8x32xf32>
      %164 = arith.addf %162, %163 : vector<8x32xf32>
      %165 = tpu.reciprocal %164 {approx = true} : vector<8x32xf32> -> vector<8x32xf32>
      %166 = arith.mulf %0, %165 : vector<8x32xf32>
      %167 = arith.truncf %166 : vector<8x32xf32> to vector<8x32xbf16>
      %cst_61 = arith.constant dense<0.000000e+00> : vector<8x16xf32>
      %168 = tpu.matmul %167, %8, %cst_61 {dimension_numbers = #tpu.dot_dimension_numbers<[1], [0], [0], [1], [0, 0, 1, 1], [], []>} : vector<8x32xbf16>, vector<32x16xbf16>, vector<8x16xf32> -> vector<8x16xf32>
      %cst_62 = arith.constant 1.000000e-16 : f32
      %169 = vector.broadcast %cst_62 : f32 to vector<8x16xf32>
      %170 = arith.addf %168, %169 : vector<8x16xf32>
      %171 = tpu.reciprocal %170 {approx = true} : vector<8x16xf32> -> vector<8x16xf32>
      %172 = arith.mulf %1, %171 : vector<8x16xf32>
      %173 = arith.truncf %172 : vector<8x16xf32> to vector<8x16xbf16>
      %cst_63 = arith.constant dense<0.000000e+00> : vector<8x32xf32>
      %174 = tpu.matmul %173, %10, %cst_63 {dimension_numbers = #tpu.dot_dimension_numbers<[1], [0], [0], [1], [0, 0, 1, 1], [], []>} : vector<8x16xbf16>, vector<16x32xbf16>, vector<8x32xf32> -> vector<8x32xf32>
      %cst_64 = arith.constant 1.000000e-16 : f32
      %175 = vector.broadcast %cst_64 : f32 to vector<8x32xf32>
      %176 = arith.addf %174, %175 : vector<8x32xf32>
      %177 = tpu.reciprocal %176 {approx = true} : vector<8x32xf32> -> vector<8x32xf32>
      %178 = arith.mulf %0, %177 : vector<8x32xf32>
      %179 = arith.truncf %178 : vector<8x32xf32> to vector<8x32xbf16>
      %cst_65 = arith.constant dense<0.000000e+00> : vector<8x16xf32>
      %180 = tpu.matmul %179, %8, %cst_65 {dimension_numbers = #tpu.dot_dimension_numbers<[1], [0], [0], [1], [0, 0, 1, 1], [], []>} : vector<8x32xbf16>, vector<32x16xbf16>, vector<8x16xf32> -> vector<8x16xf32>
      %cst_66 = arith.constant 1.000000e-16 : f32
      %181 = vector.broadcast %cst_66 : f32 to vector<8x16xf32>
      %182 = arith.addf %180, %181 : vector<8x16xf32>
      %183 = tpu.reciprocal %182 {approx = true} : vector<8x16xf32> -> vector<8x16xf32>
      %184 = arith.mulf %1, %183 : vector<8x16xf32>
      %185 = arith.truncf %184 : vector<8x16xf32> to vector<8x16xbf16>
      %cst_67 = arith.constant dense<0.000000e+00> : vector<8x32xf32>
      %186 = tpu.matmul %185, %10, %cst_67 {dimension_numbers = #tpu.dot_dimension_numbers<[1], [0], [0], [1], [0, 0, 1, 1], [], []>} : vector<8x16xbf16>, vector<16x32xbf16>, vector<8x32xf32> -> vector<8x32xf32>
      %cst_68 = arith.constant 1.000000e-16 : f32
      %187 = vector.broadcast %cst_68 : f32 to vector<8x32xf32>
      %188 = arith.addf %186, %187 : vector<8x32xf32>
      %189 = tpu.reciprocal %188 {approx = true} : vector<8x32xf32> -> vector<8x32xf32>
      %190 = arith.mulf %0, %189 : vector<8x32xf32>
      %191 = arith.truncf %190 : vector<8x32xf32> to vector<8x32xbf16>
      %cst_69 = arith.constant dense<0.000000e+00> : vector<8x16xf32>
      %192 = tpu.matmul %191, %8, %cst_69 {dimension_numbers = #tpu.dot_dimension_numbers<[1], [0], [0], [1], [0, 0, 1, 1], [], []>} : vector<8x32xbf16>, vector<32x16xbf16>, vector<8x16xf32> -> vector<8x16xf32>
      %cst_70 = arith.constant 1.000000e-16 : f32
      %193 = vector.broadcast %cst_70 : f32 to vector<8x16xf32>
      %194 = arith.addf %192, %193 : vector<8x16xf32>
      %195 = tpu.reciprocal %194 {approx = true} : vector<8x16xf32> -> vector<8x16xf32>
      %196 = arith.mulf %1, %195 : vector<8x16xf32>
      %197 = arith.truncf %196 : vector<8x16xf32> to vector<8x16xbf16>
      %cst_71 = arith.constant dense<0.000000e+00> : vector<8x32xf32>
      %198 = tpu.matmul %197, %10, %cst_71 {dimension_numbers = #tpu.dot_dimension_numbers<[1], [0], [0], [1], [0, 0, 1, 1], [], []>} : vector<8x16xbf16>, vector<16x32xbf16>, vector<8x32xf32> -> vector<8x32xf32>
      %cst_72 = arith.constant 1.000000e-16 : f32
      %199 = vector.broadcast %cst_72 : f32 to vector<8x32xf32>
      %200 = arith.addf %198, %199 : vector<8x32xf32>
      %201 = tpu.reciprocal %200 {approx = true} : vector<8x32xf32> -> vector<8x32xf32>
      %202 = arith.mulf %0, %201 : vector<8x32xf32>
      %203 = arith.truncf %202 : vector<8x32xf32> to vector<8x32xbf16>
      %cst_73 = arith.constant dense<0.000000e+00> : vector<8x16xf32>
      %204 = tpu.matmul %203, %8, %cst_73 {dimension_numbers = #tpu.dot_dimension_numbers<[1], [0], [0], [1], [0, 0, 1, 1], [], []>} : vector<8x32xbf16>, vector<32x16xbf16>, vector<8x16xf32> -> vector<8x16xf32>
      %cst_74 = arith.constant 1.000000e-16 : f32
      %205 = vector.broadcast %cst_74 : f32 to vector<8x16xf32>
      %206 = arith.addf %204, %205 : vector<8x16xf32>
      %207 = tpu.reciprocal %206 {approx = true} : vector<8x16xf32> -> vector<8x16xf32>
      %208 = arith.mulf %1, %207 : vector<8x16xf32>
      %209 = arith.truncf %208 : vector<8x16xf32> to vector<8x16xbf16>
      %cst_75 = arith.constant dense<0.000000e+00> : vector<8x32xf32>
      %210 = tpu.matmul %209, %10, %cst_75 {dimension_numbers = #tpu.dot_dimension_numbers<[1], [0], [0], [1], [0, 0, 1, 1], [], []>} : vector<8x16xbf16>, vector<16x32xbf16>, vector<8x32xf32> -> vector<8x32xf32>
      %cst_76 = arith.constant 1.000000e-16 : f32
      %211 = vector.broadcast %cst_76 : f32 to vector<8x32xf32>
      %212 = arith.addf %210, %211 : vector<8x32xf32>
      %213 = tpu.reciprocal %212 {approx = true} : vector<8x32xf32> -> vector<8x32xf32>
      %214 = arith.mulf %0, %213 : vector<8x32xf32>
      %215 = arith.truncf %214 : vector<8x32xf32> to vector<8x32xbf16>
      %cst_77 = arith.constant dense<0.000000e+00> : vector<8x16xf32>
      %216 = tpu.matmul %215, %8, %cst_77 {dimension_numbers = #tpu.dot_dimension_numbers<[1], [0], [0], [1], [0, 0, 1, 1], [], []>} : vector<8x32xbf16>, vector<32x16xbf16>, vector<8x16xf32> -> vector<8x16xf32>
      %cst_78 = arith.constant 1.000000e-16 : f32
      %217 = vector.broadcast %cst_78 : f32 to vector<8x16xf32>
      %218 = arith.addf %216, %217 : vector<8x16xf32>
      %219 = tpu.reciprocal %218 {approx = true} : vector<8x16xf32> -> vector<8x16xf32>
      %220 = arith.mulf %1, %219 : vector<8x16xf32>
      %221 = arith.truncf %220 : vector<8x16xf32> to vector<8x16xbf16>
      %cst_79 = arith.constant dense<0.000000e+00> : vector<8x32xf32>
      %222 = tpu.matmul %221, %10, %cst_79 {dimension_numbers = #tpu.dot_dimension_numbers<[1], [0], [0], [1], [0, 0, 1, 1], [], []>} : vector<8x16xbf16>, vector<16x32xbf16>, vector<8x32xf32> -> vector<8x32xf32>
      %cst_80 = arith.constant 1.000000e-16 : f32
      %223 = vector.broadcast %cst_80 : f32 to vector<8x32xf32>
      %224 = arith.addf %222, %223 : vector<8x32xf32>
      %225 = tpu.reciprocal %224 {approx = true} : vector<8x32xf32> -> vector<8x32xf32>
      %226 = arith.mulf %0, %225 : vector<8x32xf32>
      %227 = arith.truncf %226 : vector<8x32xf32> to vector<8x32xbf16>
      %cst_81 = arith.constant dense<0.000000e+00> : vector<8x16xf32>
      %228 = tpu.matmul %227, %8, %cst_81 {dimension_numbers = #tpu.dot_dimension_numbers<[1], [0], [0], [1], [0, 0, 1, 1], [], []>} : vector<8x32xbf16>, vector<32x16xbf16>, vector<8x16xf32> -> vector<8x16xf32>
      %cst_82 = arith.constant 1.000000e-16 : f32
      %229 = vector.broadcast %cst_82 : f32 to vector<8x16xf32>
      %230 = arith.addf %228, %229 : vector<8x16xf32>
      %231 = tpu.reciprocal %230 {approx = true} : vector<8x16xf32> -> vector<8x16xf32>
      %232 = arith.mulf %1, %231 : vector<8x16xf32>
      %233 = arith.truncf %232 : vector<8x16xf32> to vector<8x16xbf16>
      %cst_83 = arith.constant dense<0.000000e+00> : vector<8x32xf32>
      %234 = tpu.matmul %233, %10, %cst_83 {dimension_numbers = #tpu.dot_dimension_numbers<[1], [0], [0], [1], [0, 0, 1, 1], [], []>} : vector<8x16xbf16>, vector<16x32xbf16>, vector<8x32xf32> -> vector<8x32xf32>
      %cst_84 = arith.constant 1.000000e-16 : f32
      %235 = vector.broadcast %cst_84 : f32 to vector<8x32xf32>
      %236 = arith.addf %234, %235 : vector<8x32xf32>
      %237 = tpu.reciprocal %236 {approx = true} : vector<8x32xf32> -> vector<8x32xf32>
      %238 = arith.mulf %0, %237 : vector<8x32xf32>
      %239 = arith.truncf %238 : vector<8x32xf32> to vector<8x32xbf16>
      %cst_85 = arith.constant dense<0.000000e+00> : vector<8x16xf32>
      %240 = tpu.matmul %239, %8, %cst_85 {dimension_numbers = #tpu.dot_dimension_numbers<[1], [0], [0], [1], [0, 0, 1, 1], [], []>} : vector<8x32xbf16>, vector<32x16xbf16>, vector<8x16xf32> -> vector<8x16xf32>
      %cst_86 = arith.constant 1.000000e-16 : f32
      %241 = vector.broadcast %cst_86 : f32 to vector<8x16xf32>
      %242 = arith.addf %240, %241 : vector<8x16xf32>
      %243 = tpu.reciprocal %242 {approx = true} : vector<8x16xf32> -> vector<8x16xf32>
      %244 = arith.mulf %1, %243 : vector<8x16xf32>
      %245 = arith.truncf %244 : vector<8x16xf32> to vector<8x16xbf16>
      %cst_87 = arith.constant dense<0.000000e+00> : vector<8x32xf32>
      %246 = tpu.matmul %245, %10, %cst_87 {dimension_numbers = #tpu.dot_dimension_numbers<[1], [0], [0], [1], [0, 0, 1, 1], [], []>} : vector<8x16xbf16>, vector<16x32xbf16>, vector<8x32xf32> -> vector<8x32xf32>
      %cst_88 = arith.constant 1.000000e-16 : f32
      %247 = vector.broadcast %cst_88 : f32 to vector<8x32xf32>
      %248 = arith.addf %246, %247 : vector<8x32xf32>
      %249 = tpu.reciprocal %248 {approx = true} : vector<8x32xf32> -> vector<8x32xf32>
      %250 = arith.mulf %0, %249 : vector<8x32xf32>
      %251 = arith.truncf %250 : vector<8x32xf32> to vector<8x32xbf16>
      %cst_89 = arith.constant dense<0.000000e+00> : vector<8x16xf32>
      %252 = tpu.matmul %251, %8, %cst_89 {dimension_numbers = #tpu.dot_dimension_numbers<[1], [0], [0], [1], [0, 0, 1, 1], [], []>} : vector<8x32xbf16>, vector<32x16xbf16>, vector<8x16xf32> -> vector<8x16xf32>
      %cst_90 = arith.constant 1.000000e-16 : f32
      %253 = vector.broadcast %cst_90 : f32 to vector<8x16xf32>
      %254 = arith.addf %252, %253 : vector<8x16xf32>
      %255 = tpu.reciprocal %254 {approx = true} : vector<8x16xf32> -> vector<8x16xf32>
      %256 = arith.mulf %1, %255 : vector<8x16xf32>
      %257 = arith.truncf %256 : vector<8x16xf32> to vector<8x16xbf16>
      %cst_91 = arith.constant dense<0.000000e+00> : vector<8x32xf32>
      %258 = tpu.matmul %257, %10, %cst_91 {dimension_numbers = #tpu.dot_dimension_numbers<[1], [0], [0], [1], [0, 0, 1, 1], [], []>} : vector<8x16xbf16>, vector<16x32xbf16>, vector<8x32xf32> -> vector<8x32xf32>
      %cst_92 = arith.constant 1.000000e-16 : f32
      %259 = vector.broadcast %cst_92 : f32 to vector<8x32xf32>
      %260 = arith.addf %258, %259 : vector<8x32xf32>
      %261 = tpu.reciprocal %260 {approx = true} : vector<8x32xf32> -> vector<8x32xf32>
      %262 = arith.mulf %0, %261 : vector<8x32xf32>
      %263 = arith.truncf %262 : vector<8x32xf32> to vector<8x32xbf16>
      %cst_93 = arith.constant dense<0.000000e+00> : vector<8x16xf32>
      %264 = tpu.matmul %263, %8, %cst_93 {dimension_numbers = #tpu.dot_dimension_numbers<[1], [0], [0], [1], [0, 0, 1, 1], [], []>} : vector<8x32xbf16>, vector<32x16xbf16>, vector<8x16xf32> -> vector<8x16xf32>
      %cst_94 = arith.constant 1.000000e-16 : f32
      %265 = vector.broadcast %cst_94 : f32 to vector<8x16xf32>
      %266 = arith.addf %264, %265 : vector<8x16xf32>
      %267 = tpu.reciprocal %266 {approx = true} : vector<8x16xf32> -> vector<8x16xf32>
      %268 = arith.mulf %1, %267 : vector<8x16xf32>
      %269 = arith.truncf %268 : vector<8x16xf32> to vector<8x16xbf16>
      %cst_95 = arith.constant dense<0.000000e+00> : vector<8x32xf32>
      %270 = tpu.matmul %269, %10, %cst_95 {dimension_numbers = #tpu.dot_dimension_numbers<[1], [0], [0], [1], [0, 0, 1, 1], [], []>} : vector<8x16xbf16>, vector<16x32xbf16>, vector<8x32xf32> -> vector<8x32xf32>
      %cst_96 = arith.constant 1.000000e-16 : f32
      %271 = vector.broadcast %cst_96 : f32 to vector<8x32xf32>
      %272 = arith.addf %270, %271 : vector<8x32xf32>
      %273 = tpu.reciprocal %272 {approx = true} : vector<8x32xf32> -> vector<8x32xf32>
      %274 = arith.mulf %0, %273 : vector<8x32xf32>
      %275 = arith.truncf %274 : vector<8x32xf32> to vector<8x32xbf16>
      %cst_97 = arith.constant dense<0.000000e+00> : vector<8x16xf32>
      %276 = tpu.matmul %275, %8, %cst_97 {dimension_numbers = #tpu.dot_dimension_numbers<[1], [0], [0], [1], [0, 0, 1, 1], [], []>} : vector<8x32xbf16>, vector<32x16xbf16>, vector<8x16xf32> -> vector<8x16xf32>
      %cst_98 = arith.constant 1.000000e-16 : f32
      %277 = vector.broadcast %cst_98 : f32 to vector<8x16xf32>
      %278 = arith.addf %276, %277 : vector<8x16xf32>
      %279 = tpu.reciprocal %278 {approx = true} : vector<8x16xf32> -> vector<8x16xf32>
      %280 = arith.mulf %1, %279 : vector<8x16xf32>
      %281 = arith.truncf %280 : vector<8x16xf32> to vector<8x16xbf16>
      %cst_99 = arith.constant dense<0.000000e+00> : vector<8x32xf32>
      %282 = tpu.matmul %281, %10, %cst_99 {dimension_numbers = #tpu.dot_dimension_numbers<[1], [0], [0], [1], [0, 0, 1, 1], [], []>} : vector<8x16xbf16>, vector<16x32xbf16>, vector<8x32xf32> -> vector<8x32xf32>
      %cst_100 = arith.constant 1.000000e-16 : f32
      %283 = vector.broadcast %cst_100 : f32 to vector<8x32xf32>
      %284 = arith.addf %282, %283 : vector<8x32xf32>
      %285 = tpu.reciprocal %284 {approx = true} : vector<8x32xf32> -> vector<8x32xf32>
      %286 = arith.mulf %0, %285 : vector<8x32xf32>
      %287 = arith.truncf %286 : vector<8x32xf32> to vector<8x32xbf16>
      %cst_101 = arith.constant dense<0.000000e+00> : vector<8x16xf32>
      %288 = tpu.matmul %287, %8, %cst_101 {dimension_numbers = #tpu.dot_dimension_numbers<[1], [0], [0], [1], [0, 0, 1, 1], [], []>} : vector<8x32xbf16>, vector<32x16xbf16>, vector<8x16xf32> -> vector<8x16xf32>
      %cst_102 = arith.constant 1.000000e-16 : f32
      %289 = vector.broadcast %cst_102 : f32 to vector<8x16xf32>
      %290 = arith.addf %288, %289 : vector<8x16xf32>
      %291 = tpu.reciprocal %290 {approx = true} : vector<8x16xf32> -> vector<8x16xf32>
      %292 = arith.mulf %1, %291 : vector<8x16xf32>
      %293 = arith.truncf %292 : vector<8x16xf32> to vector<8x16xbf16>
      %cst_103 = arith.constant dense<0.000000e+00> : vector<8x32xf32>
      %294 = tpu.matmul %293, %10, %cst_103 {dimension_numbers = #tpu.dot_dimension_numbers<[1], [0], [0], [1], [0, 0, 1, 1], [], []>} : vector<8x16xbf16>, vector<16x32xbf16>, vector<8x32xf32> -> vector<8x32xf32>
      %cst_104 = arith.constant 1.000000e-16 : f32
      %295 = vector.broadcast %cst_104 : f32 to vector<8x32xf32>
      %296 = arith.addf %294, %295 : vector<8x32xf32>
      %297 = tpu.reciprocal %296 {approx = true} : vector<8x32xf32> -> vector<8x32xf32>
      %298 = arith.mulf %0, %297 : vector<8x32xf32>
      %299 = arith.truncf %298 : vector<8x32xf32> to vector<8x32xbf16>
      %cst_105 = arith.constant dense<0.000000e+00> : vector<8x16xf32>
      %300 = tpu.matmul %299, %8, %cst_105 {dimension_numbers = #tpu.dot_dimension_numbers<[1], [0], [0], [1], [0, 0, 1, 1], [], []>} : vector<8x32xbf16>, vector<32x16xbf16>, vector<8x16xf32> -> vector<8x16xf32>
      %cst_106 = arith.constant 1.000000e-16 : f32
      %301 = vector.broadcast %cst_106 : f32 to vector<8x16xf32>
      %302 = arith.addf %300, %301 : vector<8x16xf32>
      %303 = tpu.reciprocal %302 {approx = true} : vector<8x16xf32> -> vector<8x16xf32>
      %304 = arith.mulf %1, %303 : vector<8x16xf32>
      %305 = arith.truncf %304 : vector<8x16xf32> to vector<8x16xbf16>
      %cst_107 = arith.constant dense<0.000000e+00> : vector<8x32xf32>
      %306 = tpu.matmul %305, %10, %cst_107 {dimension_numbers = #tpu.dot_dimension_numbers<[1], [0], [0], [1], [0, 0, 1, 1], [], []>} : vector<8x16xbf16>, vector<16x32xbf16>, vector<8x32xf32> -> vector<8x32xf32>
      %cst_108 = arith.constant 1.000000e-16 : f32
      %307 = vector.broadcast %cst_108 : f32 to vector<8x32xf32>
      %308 = arith.addf %306, %307 : vector<8x32xf32>
      %309 = tpu.reciprocal %308 {approx = true} : vector<8x32xf32> -> vector<8x32xf32>
      %310 = arith.mulf %0, %309 : vector<8x32xf32>
      %311 = arith.truncf %310 : vector<8x32xf32> to vector<8x32xbf16>
      %cst_109 = arith.constant dense<0.000000e+00> : vector<8x16xf32>
      %312 = tpu.matmul %311, %8, %cst_109 {dimension_numbers = #tpu.dot_dimension_numbers<[1], [0], [0], [1], [0, 0, 1, 1], [], []>} : vector<8x32xbf16>, vector<32x16xbf16>, vector<8x16xf32> -> vector<8x16xf32>
      %cst_110 = arith.constant 1.000000e-16 : f32
      %313 = vector.broadcast %cst_110 : f32 to vector<8x16xf32>
      %314 = arith.addf %312, %313 : vector<8x16xf32>
      %315 = tpu.reciprocal %314 {approx = true} : vector<8x16xf32> -> vector<8x16xf32>
      %316 = arith.mulf %1, %315 : vector<8x16xf32>
      %317 = arith.truncf %316 : vector<8x16xf32> to vector<8x16xbf16>
      %cst_111 = arith.constant dense<0.000000e+00> : vector<8x32xf32>
      %318 = tpu.matmul %317, %10, %cst_111 {dimension_numbers = #tpu.dot_dimension_numbers<[1], [0], [0], [1], [0, 0, 1, 1], [], []>} : vector<8x16xbf16>, vector<16x32xbf16>, vector<8x32xf32> -> vector<8x32xf32>
      %cst_112 = arith.constant 1.000000e-16 : f32
      %319 = vector.broadcast %cst_112 : f32 to vector<8x32xf32>
      %320 = arith.addf %318, %319 : vector<8x32xf32>
      %321 = tpu.reciprocal %320 {approx = true} : vector<8x32xf32> -> vector<8x32xf32>
      %322 = arith.mulf %0, %321 : vector<8x32xf32>
      %323 = arith.truncf %322 : vector<8x32xf32> to vector<8x32xbf16>
      %cst_113 = arith.constant dense<0.000000e+00> : vector<8x16xf32>
      %324 = tpu.matmul %323, %8, %cst_113 {dimension_numbers = #tpu.dot_dimension_numbers<[1], [0], [0], [1], [0, 0, 1, 1], [], []>} : vector<8x32xbf16>, vector<32x16xbf16>, vector<8x16xf32> -> vector<8x16xf32>
      %cst_114 = arith.constant 1.000000e-16 : f32
      %325 = vector.broadcast %cst_114 : f32 to vector<8x16xf32>
      %326 = arith.addf %324, %325 : vector<8x16xf32>
      %327 = tpu.reciprocal %326 {approx = true} : vector<8x16xf32> -> vector<8x16xf32>
      %328 = arith.mulf %1, %327 : vector<8x16xf32>
      %329 = arith.truncf %328 : vector<8x16xf32> to vector<8x16xbf16>
      %cst_115 = arith.constant dense<0.000000e+00> : vector<8x32xf32>
      %330 = tpu.matmul %329, %10, %cst_115 {dimension_numbers = #tpu.dot_dimension_numbers<[1], [0], [0], [1], [0, 0, 1, 1], [], []>} : vector<8x16xbf16>, vector<16x32xbf16>, vector<8x32xf32> -> vector<8x32xf32>
      %cst_116 = arith.constant 1.000000e-16 : f32
      %331 = vector.broadcast %cst_116 : f32 to vector<8x32xf32>
      %332 = arith.addf %330, %331 : vector<8x32xf32>
      %333 = tpu.reciprocal %332 {approx = true} : vector<8x32xf32> -> vector<8x32xf32>
      %334 = arith.mulf %0, %333 : vector<8x32xf32>
      %335 = arith.truncf %334 : vector<8x32xf32> to vector<8x32xbf16>
      %cst_117 = arith.constant dense<0.000000e+00> : vector<8x16xf32>
      %336 = tpu.matmul %335, %8, %cst_117 {dimension_numbers = #tpu.dot_dimension_numbers<[1], [0], [0], [1], [0, 0, 1, 1], [], []>} : vector<8x32xbf16>, vector<32x16xbf16>, vector<8x16xf32> -> vector<8x16xf32>
      %cst_118 = arith.constant 1.000000e-16 : f32
      %337 = vector.broadcast %cst_118 : f32 to vector<8x16xf32>
      %338 = arith.addf %336, %337 : vector<8x16xf32>
      %339 = tpu.reciprocal %338 {approx = true} : vector<8x16xf32> -> vector<8x16xf32>
      %340 = arith.mulf %1, %339 : vector<8x16xf32>
      %341 = arith.truncf %340 : vector<8x16xf32> to vector<8x16xbf16>
      %cst_119 = arith.constant dense<0.000000e+00> : vector<8x32xf32>
      %342 = tpu.matmul %341, %10, %cst_119 {dimension_numbers = #tpu.dot_dimension_numbers<[1], [0], [0], [1], [0, 0, 1, 1], [], []>} : vector<8x16xbf16>, vector<16x32xbf16>, vector<8x32xf32> -> vector<8x32xf32>
      %cst_120 = arith.constant 1.000000e-16 : f32
      %343 = vector.broadcast %cst_120 : f32 to vector<8x32xf32>
      %344 = arith.addf %342, %343 : vector<8x32xf32>
      %345 = tpu.reciprocal %344 {approx = true} : vector<8x32xf32> -> vector<8x32xf32>
      %346 = arith.mulf %0, %345 : vector<8x32xf32>
      %347 = arith.truncf %346 : vector<8x32xf32> to vector<8x32xbf16>
      %cst_121 = arith.constant dense<0.000000e+00> : vector<8x16xf32>
      %348 = tpu.matmul %347, %8, %cst_121 {dimension_numbers = #tpu.dot_dimension_numbers<[1], [0], [0], [1], [0, 0, 1, 1], [], []>} : vector<8x32xbf16>, vector<32x16xbf16>, vector<8x16xf32> -> vector<8x16xf32>
      %cst_122 = arith.constant 1.000000e-16 : f32
      %349 = vector.broadcast %cst_122 : f32 to vector<8x16xf32>
      %350 = arith.addf %348, %349 : vector<8x16xf32>
      %351 = tpu.reciprocal %350 {approx = true} : vector<8x16xf32> -> vector<8x16xf32>
      %352 = arith.mulf %1, %351 : vector<8x16xf32>
      %353 = arith.truncf %352 : vector<8x16xf32> to vector<8x16xbf16>
      %cst_123 = arith.constant dense<0.000000e+00> : vector<8x32xf32>
      %354 = tpu.matmul %353, %10, %cst_123 {dimension_numbers = #tpu.dot_dimension_numbers<[1], [0], [0], [1], [0, 0, 1, 1], [], []>} : vector<8x16xbf16>, vector<16x32xbf16>, vector<8x32xf32> -> vector<8x32xf32>
      %cst_124 = arith.constant 1.000000e-16 : f32
      %355 = vector.broadcast %cst_124 : f32 to vector<8x32xf32>
      %356 = arith.addf %354, %355 : vector<8x32xf32>
      %357 = tpu.reciprocal %356 {approx = true} : vector<8x32xf32> -> vector<8x32xf32>
      %358 = arith.mulf %0, %357 : vector<8x32xf32>
      %359 = arith.truncf %358 : vector<8x32xf32> to vector<8x32xbf16>
      %cst_125 = arith.constant dense<0.000000e+00> : vector<8x16xf32>
      %360 = tpu.matmul %359, %8, %cst_125 {dimension_numbers = #tpu.dot_dimension_numbers<[1], [0], [0], [1], [0, 0, 1, 1], [], []>} : vector<8x32xbf16>, vector<32x16xbf16>, vector<8x16xf32> -> vector<8x16xf32>
      %cst_126 = arith.constant 1.000000e-16 : f32
      %361 = vector.broadcast %cst_126 : f32 to vector<8x16xf32>
      %362 = arith.addf %360, %361 : vector<8x16xf32>
      %363 = tpu.reciprocal %362 {approx = true} : vector<8x16xf32> -> vector<8x16xf32>
      %364 = arith.mulf %1, %363 : vector<8x16xf32>
      %365 = arith.truncf %364 : vector<8x16xf32> to vector<8x16xbf16>
      %cst_127 = arith.constant dense<0.000000e+00> : vector<8x32xf32>
      %366 = tpu.matmul %365, %10, %cst_127 {dimension_numbers = #tpu.dot_dimension_numbers<[1], [0], [0], [1], [0, 0, 1, 1], [], []>} : vector<8x16xbf16>, vector<16x32xbf16>, vector<8x32xf32> -> vector<8x32xf32>
      %cst_128 = arith.constant 1.000000e-16 : f32
      %367 = vector.broadcast %cst_128 : f32 to vector<8x32xf32>
      %368 = arith.addf %366, %367 : vector<8x32xf32>
      %369 = tpu.reciprocal %368 {approx = true} : vector<8x32xf32> -> vector<8x32xf32>
      %370 = arith.mulf %0, %369 : vector<8x32xf32>
      %371 = arith.truncf %370 : vector<8x32xf32> to vector<8x32xbf16>
      %cst_129 = arith.constant dense<0.000000e+00> : vector<8x16xf32>
      %372 = tpu.matmul %371, %8, %cst_129 {dimension_numbers = #tpu.dot_dimension_numbers<[1], [0], [0], [1], [0, 0, 1, 1], [], []>} : vector<8x32xbf16>, vector<32x16xbf16>, vector<8x16xf32> -> vector<8x16xf32>
      %cst_130 = arith.constant 1.000000e-16 : f32
      %373 = vector.broadcast %cst_130 : f32 to vector<8x16xf32>
      %374 = arith.addf %372, %373 : vector<8x16xf32>
      %375 = tpu.reciprocal %374 {approx = true} : vector<8x16xf32> -> vector<8x16xf32>
      %376 = arith.mulf %1, %375 : vector<8x16xf32>
      %377 = arith.truncf %376 : vector<8x16xf32> to vector<8x16xbf16>
      %cst_131 = arith.constant dense<0.000000e+00> : vector<8x32xf32>
      %378 = tpu.matmul %377, %10, %cst_131 {dimension_numbers = #tpu.dot_dimension_numbers<[1], [0], [0], [1], [0, 0, 1, 1], [], []>} : vector<8x16xbf16>, vector<16x32xbf16>, vector<8x32xf32> -> vector<8x32xf32>
      %cst_132 = arith.constant 1.000000e-16 : f32
      %379 = vector.broadcast %cst_132 : f32 to vector<8x32xf32>
      %380 = arith.addf %378, %379 : vector<8x32xf32>
      %381 = tpu.reciprocal %380 {approx = true} : vector<8x32xf32> -> vector<8x32xf32>
      %382 = arith.mulf %0, %381 : vector<8x32xf32>
      %383 = arith.truncf %382 : vector<8x32xf32> to vector<8x32xbf16>
      %cst_133 = arith.constant dense<0.000000e+00> : vector<8x16xf32>
      %384 = tpu.matmul %383, %8, %cst_133 {dimension_numbers = #tpu.dot_dimension_numbers<[1], [0], [0], [1], [0, 0, 1, 1], [], []>} : vector<8x32xbf16>, vector<32x16xbf16>, vector<8x16xf32> -> vector<8x16xf32>
      %cst_134 = arith.constant 1.000000e-16 : f32
      %385 = vector.broadcast %cst_134 : f32 to vector<8x16xf32>
      %386 = arith.addf %384, %385 : vector<8x16xf32>
      %387 = tpu.reciprocal %386 {approx = true} : vector<8x16xf32> -> vector<8x16xf32>
      %388 = arith.mulf %1, %387 : vector<8x16xf32>
      %389 = arith.truncf %388 : vector<8x16xf32> to vector<8x16xbf16>
      %cst_135 = arith.constant dense<0.000000e+00> : vector<8x32xf32>
      %390 = tpu.matmul %389, %10, %cst_135 {dimension_numbers = #tpu.dot_dimension_numbers<[1], [0], [0], [1], [0, 0, 1, 1], [], []>} : vector<8x16xbf16>, vector<16x32xbf16>, vector<8x32xf32> -> vector<8x32xf32>
      %cst_136 = arith.constant 1.000000e-16 : f32
      %391 = vector.broadcast %cst_136 : f32 to vector<8x32xf32>
      %392 = arith.addf %390, %391 : vector<8x32xf32>
      %393 = tpu.reciprocal %392 {approx = true} : vector<8x32xf32> -> vector<8x32xf32>
      %394 = arith.mulf %0, %393 : vector<8x32xf32>
      %395 = arith.truncf %394 : vector<8x32xf32> to vector<8x32xbf16>
      %cst_137 = arith.constant dense<0.000000e+00> : vector<8x16xf32>
      %396 = tpu.matmul %395, %8, %cst_137 {dimension_numbers = #tpu.dot_dimension_numbers<[1], [0], [0], [1], [0, 0, 1, 1], [], []>} : vector<8x32xbf16>, vector<32x16xbf16>, vector<8x16xf32> -> vector<8x16xf32>
      %cst_138 = arith.constant 1.000000e-16 : f32
      %397 = vector.broadcast %cst_138 : f32 to vector<8x16xf32>
      %398 = arith.addf %396, %397 : vector<8x16xf32>
      %399 = tpu.reciprocal %398 {approx = true} : vector<8x16xf32> -> vector<8x16xf32>
      %400 = arith.mulf %1, %399 : vector<8x16xf32>
      %401 = arith.truncf %400 : vector<8x16xf32> to vector<8x16xbf16>
      %cst_139 = arith.constant dense<0.000000e+00> : vector<8x32xf32>
      %402 = tpu.matmul %401, %10, %cst_139 {dimension_numbers = #tpu.dot_dimension_numbers<[1], [0], [0], [1], [0, 0, 1, 1], [], []>} : vector<8x16xbf16>, vector<16x32xbf16>, vector<8x32xf32> -> vector<8x32xf32>
      %cst_140 = arith.constant 1.000000e-16 : f32
      %403 = vector.broadcast %cst_140 : f32 to vector<8x32xf32>
      %404 = arith.addf %402, %403 : vector<8x32xf32>
      %405 = tpu.reciprocal %404 {approx = true} : vector<8x32xf32> -> vector<8x32xf32>
      %406 = arith.mulf %0, %405 : vector<8x32xf32>
      %407 = arith.truncf %406 : vector<8x32xf32> to vector<8x32xbf16>
      %cst_141 = arith.constant dense<0.000000e+00> : vector<8x16xf32>
      %408 = tpu.matmul %407, %8, %cst_141 {dimension_numbers = #tpu.dot_dimension_numbers<[1], [0], [0], [1], [0, 0, 1, 1], [], []>} : vector<8x32xbf16>, vector<32x16xbf16>, vector<8x16xf32> -> vector<8x16xf32>
      %cst_142 = arith.constant 1.000000e-16 : f32
      %409 = vector.broadcast %cst_142 : f32 to vector<8x16xf32>
      %410 = arith.addf %408, %409 : vector<8x16xf32>
      %411 = tpu.reciprocal %410 {approx = true} : vector<8x16xf32> -> vector<8x16xf32>
      %412 = arith.mulf %1, %411 : vector<8x16xf32>
      %413 = arith.truncf %412 : vector<8x16xf32> to vector<8x16xbf16>
      %cst_143 = arith.constant dense<0.000000e+00> : vector<8x32xf32>
      %414 = tpu.matmul %413, %10, %cst_143 {dimension_numbers = #tpu.dot_dimension_numbers<[1], [0], [0], [1], [0, 0, 1, 1], [], []>} : vector<8x16xbf16>, vector<16x32xbf16>, vector<8x32xf32> -> vector<8x32xf32>
      %cst_144 = arith.constant 1.000000e-16 : f32
      %415 = vector.broadcast %cst_144 : f32 to vector<8x32xf32>
      %416 = arith.addf %414, %415 : vector<8x32xf32>
      %417 = tpu.reciprocal %416 {approx = true} : vector<8x32xf32> -> vector<8x32xf32>
      %418 = arith.mulf %0, %417 : vector<8x32xf32>
      %419 = arith.truncf %418 : vector<8x32xf32> to vector<8x32xbf16>
      %cst_145 = arith.constant dense<0.000000e+00> : vector<8x16xf32>
      %420 = tpu.matmul %419, %8, %cst_145 {dimension_numbers = #tpu.dot_dimension_numbers<[1], [0], [0], [1], [0, 0, 1, 1], [], []>} : vector<8x32xbf16>, vector<32x16xbf16>, vector<8x16xf32> -> vector<8x16xf32>
      %cst_146 = arith.constant 1.000000e-16 : f32
      %421 = vector.broadcast %cst_146 : f32 to vector<8x16xf32>
      %422 = arith.addf %420, %421 : vector<8x16xf32>
      %423 = tpu.reciprocal %422 {approx = true} : vector<8x16xf32> -> vector<8x16xf32>
      %424 = arith.mulf %1, %423 : vector<8x16xf32>
      %425 = arith.truncf %424 : vector<8x16xf32> to vector<8x16xbf16>
      %cst_147 = arith.constant dense<0.000000e+00> : vector<8x32xf32>
      %426 = tpu.matmul %425, %10, %cst_147 {dimension_numbers = #tpu.dot_dimension_numbers<[1], [0], [0], [1], [0, 0, 1, 1], [], []>} : vector<8x16xbf16>, vector<16x32xbf16>, vector<8x32xf32> -> vector<8x32xf32>
      %cst_148 = arith.constant 1.000000e-16 : f32
      %427 = vector.broadcast %cst_148 : f32 to vector<8x32xf32>
      %428 = arith.addf %426, %427 : vector<8x32xf32>
      %429 = tpu.reciprocal %428 {approx = true} : vector<8x32xf32> -> vector<8x32xf32>
      %430 = arith.mulf %0, %429 : vector<8x32xf32>
      %431 = arith.truncf %430 : vector<8x32xf32> to vector<8x32xbf16>
      %cst_149 = arith.constant dense<0.000000e+00> : vector<8x16xf32>
      %432 = tpu.matmul %431, %8, %cst_149 {dimension_numbers = #tpu.dot_dimension_numbers<[1], [0], [0], [1], [0, 0, 1, 1], [], []>} : vector<8x32xbf16>, vector<32x16xbf16>, vector<8x16xf32> -> vector<8x16xf32>
      %cst_150 = arith.constant 1.000000e-16 : f32
      %433 = vector.broadcast %cst_150 : f32 to vector<8x16xf32>
      %434 = arith.addf %432, %433 : vector<8x16xf32>
      %435 = tpu.reciprocal %434 {approx = true} : vector<8x16xf32> -> vector<8x16xf32>
      %436 = arith.mulf %1, %435 : vector<8x16xf32>
      %437 = arith.truncf %436 : vector<8x16xf32> to vector<8x16xbf16>
      %cst_151 = arith.constant dense<0.000000e+00> : vector<8x32xf32>
      %438 = tpu.matmul %437, %10, %cst_151 {dimension_numbers = #tpu.dot_dimension_numbers<[1], [0], [0], [1], [0, 0, 1, 1], [], []>} : vector<8x16xbf16>, vector<16x32xbf16>, vector<8x32xf32> -> vector<8x32xf32>
      %cst_152 = arith.constant 1.000000e-16 : f32
      %439 = vector.broadcast %cst_152 : f32 to vector<8x32xf32>
      %440 = arith.addf %438, %439 : vector<8x32xf32>
      %441 = tpu.reciprocal %440 {approx = true} : vector<8x32xf32> -> vector<8x32xf32>
      %442 = arith.mulf %0, %441 : vector<8x32xf32>
      %443 = arith.truncf %442 : vector<8x32xf32> to vector<8x32xbf16>
      %cst_153 = arith.constant dense<0.000000e+00> : vector<8x16xf32>
      %444 = tpu.matmul %443, %8, %cst_153 {dimension_numbers = #tpu.dot_dimension_numbers<[1], [0], [0], [1], [0, 0, 1, 1], [], []>} : vector<8x32xbf16>, vector<32x16xbf16>, vector<8x16xf32> -> vector<8x16xf32>
      %cst_154 = arith.constant 1.000000e-16 : f32
      %445 = vector.broadcast %cst_154 : f32 to vector<8x16xf32>
      %446 = arith.addf %444, %445 : vector<8x16xf32>
      %447 = tpu.reciprocal %446 {approx = true} : vector<8x16xf32> -> vector<8x16xf32>
      %448 = arith.mulf %1, %447 : vector<8x16xf32>
      %449 = arith.truncf %448 : vector<8x16xf32> to vector<8x16xbf16>
      %cst_155 = arith.constant dense<0.000000e+00> : vector<8x32xf32>
      %450 = tpu.matmul %449, %10, %cst_155 {dimension_numbers = #tpu.dot_dimension_numbers<[1], [0], [0], [1], [0, 0, 1, 1], [], []>} : vector<8x16xbf16>, vector<16x32xbf16>, vector<8x32xf32> -> vector<8x32xf32>
      %cst_156 = arith.constant 1.000000e-16 : f32
      %451 = vector.broadcast %cst_156 : f32 to vector<8x32xf32>
      %452 = arith.addf %450, %451 : vector<8x32xf32>
      %453 = tpu.reciprocal %452 {approx = true} : vector<8x32xf32> -> vector<8x32xf32>
      %454 = arith.mulf %0, %453 : vector<8x32xf32>
      %455 = arith.truncf %454 : vector<8x32xf32> to vector<8x32xbf16>
      %cst_157 = arith.constant dense<0.000000e+00> : vector<8x16xf32>
      %456 = tpu.matmul %455, %8, %cst_157 {dimension_numbers = #tpu.dot_dimension_numbers<[1], [0], [0], [1], [0, 0, 1, 1], [], []>} : vector<8x32xbf16>, vector<32x16xbf16>, vector<8x16xf32> -> vector<8x16xf32>
      %cst_158 = arith.constant 1.000000e-16 : f32
      %457 = vector.broadcast %cst_158 : f32 to vector<8x16xf32>
      %458 = arith.addf %456, %457 : vector<8x16xf32>
      %459 = tpu.reciprocal %458 {approx = true} : vector<8x16xf32> -> vector<8x16xf32>
      %460 = arith.mulf %1, %459 : vector<8x16xf32>
      %461 = arith.truncf %460 : vector<8x16xf32> to vector<8x16xbf16>
      %cst_159 = arith.constant dense<0.000000e+00> : vector<8x32xf32>
      %462 = tpu.matmul %461, %10, %cst_159 {dimension_numbers = #tpu.dot_dimension_numbers<[1], [0], [0], [1], [0, 0, 1, 1], [], []>} : vector<8x16xbf16>, vector<16x32xbf16>, vector<8x32xf32> -> vector<8x32xf32>
      %cst_160 = arith.constant 1.000000e-16 : f32
      %463 = vector.broadcast %cst_160 : f32 to vector<8x32xf32>
      %464 = arith.addf %462, %463 : vector<8x32xf32>
      %465 = tpu.reciprocal %464 {approx = true} : vector<8x32xf32> -> vector<8x32xf32>
      %466 = arith.mulf %0, %465 : vector<8x32xf32>
      %467 = arith.truncf %466 : vector<8x32xf32> to vector<8x32xbf16>
      %cst_161 = arith.constant dense<0.000000e+00> : vector<8x16xf32>
      %468 = tpu.matmul %467, %8, %cst_161 {dimension_numbers = #tpu.dot_dimension_numbers<[1], [0], [0], [1], [0, 0, 1, 1], [], []>} : vector<8x32xbf16>, vector<32x16xbf16>, vector<8x16xf32> -> vector<8x16xf32>
      %cst_162 = arith.constant 1.000000e-16 : f32
      %469 = vector.broadcast %cst_162 : f32 to vector<8x16xf32>
      %470 = arith.addf %468, %469 : vector<8x16xf32>
      %471 = tpu.reciprocal %470 {approx = true} : vector<8x16xf32> -> vector<8x16xf32>
      %472 = arith.mulf %1, %471 : vector<8x16xf32>
      %473 = arith.truncf %472 : vector<8x16xf32> to vector<8x16xbf16>
      %cst_163 = arith.constant dense<0.000000e+00> : vector<8x32xf32>
      %474 = tpu.matmul %473, %10, %cst_163 {dimension_numbers = #tpu.dot_dimension_numbers<[1], [0], [0], [1], [0, 0, 1, 1], [], []>} : vector<8x16xbf16>, vector<16x32xbf16>, vector<8x32xf32> -> vector<8x32xf32>
      %cst_164 = arith.constant 1.000000e-16 : f32
      %475 = vector.broadcast %cst_164 : f32 to vector<8x32xf32>
      %476 = arith.addf %474, %475 : vector<8x32xf32>
      %477 = tpu.reciprocal %476 {approx = true} : vector<8x32xf32> -> vector<8x32xf32>
      %478 = arith.mulf %0, %477 : vector<8x32xf32>
      %479 = arith.truncf %478 : vector<8x32xf32> to vector<8x32xbf16>
      %cst_165 = arith.constant dense<0.000000e+00> : vector<8x16xf32>
      %480 = tpu.matmul %479, %8, %cst_165 {dimension_numbers = #tpu.dot_dimension_numbers<[1], [0], [0], [1], [0, 0, 1, 1], [], []>} : vector<8x32xbf16>, vector<32x16xbf16>, vector<8x16xf32> -> vector<8x16xf32>
      %cst_166 = arith.constant 1.000000e-16 : f32
      %481 = vector.broadcast %cst_166 : f32 to vector<8x16xf32>
      %482 = arith.addf %480, %481 : vector<8x16xf32>
      %483 = tpu.reciprocal %482 {approx = true} : vector<8x16xf32> -> vector<8x16xf32>
      %484 = arith.mulf %1, %483 : vector<8x16xf32>
      %485 = arith.truncf %484 : vector<8x16xf32> to vector<8x16xbf16>
      %cst_167 = arith.constant dense<0.000000e+00> : vector<8x32xf32>
      %486 = tpu.matmul %485, %10, %cst_167 {dimension_numbers = #tpu.dot_dimension_numbers<[1], [0], [0], [1], [0, 0, 1, 1], [], []>} : vector<8x16xbf16>, vector<16x32xbf16>, vector<8x32xf32> -> vector<8x32xf32>
      %cst_168 = arith.constant 1.000000e-16 : f32
      %487 = vector.broadcast %cst_168 : f32 to vector<8x32xf32>
      %488 = arith.addf %486, %487 : vector<8x32xf32>
      %489 = tpu.reciprocal %488 {approx = true} : vector<8x32xf32> -> vector<8x32xf32>
      %490 = arith.mulf %0, %489 : vector<8x32xf32>
      %491 = arith.truncf %490 : vector<8x32xf32> to vector<8x32xbf16>
      %cst_169 = arith.constant dense<0.000000e+00> : vector<8x16xf32>
      %492 = tpu.matmul %491, %8, %cst_169 {dimension_numbers = #tpu.dot_dimension_numbers<[1], [0], [0], [1], [0, 0, 1, 1], [], []>} : vector<8x32xbf16>, vector<32x16xbf16>, vector<8x16xf32> -> vector<8x16xf32>
      %cst_170 = arith.constant 1.000000e-16 : f32
      %493 = vector.broadcast %cst_170 : f32 to vector<8x16xf32>
      %494 = arith.addf %492, %493 : vector<8x16xf32>
      %495 = tpu.reciprocal %494 {approx = true} : vector<8x16xf32> -> vector<8x16xf32>
      %496 = arith.mulf %1, %495 : vector<8x16xf32>
      %497 = arith.truncf %496 : vector<8x16xf32> to vector<8x16xbf16>
      %cst_171 = arith.constant dense<0.000000e+00> : vector<8x32xf32>
      %498 = tpu.matmul %497, %10, %cst_171 {dimension_numbers = #tpu.dot_dimension_numbers<[1], [0], [0], [1], [0, 0, 1, 1], [], []>} : vector<8x16xbf16>, vector<16x32xbf16>, vector<8x32xf32> -> vector<8x32xf32>
      %cst_172 = arith.constant 1.000000e-16 : f32
      %499 = vector.broadcast %cst_172 : f32 to vector<8x32xf32>
      %500 = arith.addf %498, %499 : vector<8x32xf32>
      %501 = tpu.reciprocal %500 {approx = true} : vector<8x32xf32> -> vector<8x32xf32>
      %502 = arith.mulf %0, %501 : vector<8x32xf32>
      %503 = arith.truncf %502 : vector<8x32xf32> to vector<8x32xbf16>
      %cst_173 = arith.constant dense<0.000000e+00> : vector<8x16xf32>
      %504 = tpu.matmul %503, %8, %cst_173 {dimension_numbers = #tpu.dot_dimension_numbers<[1], [0], [0], [1], [0, 0, 1, 1], [], []>} : vector<8x32xbf16>, vector<32x16xbf16>, vector<8x16xf32> -> vector<8x16xf32>
      %cst_174 = arith.constant 1.000000e-16 : f32
      %505 = vector.broadcast %cst_174 : f32 to vector<8x16xf32>
      %506 = arith.addf %504, %505 : vector<8x16xf32>
      %507 = tpu.reciprocal %506 {approx = true} : vector<8x16xf32> -> vector<8x16xf32>
      %508 = arith.mulf %1, %507 : vector<8x16xf32>
      %509 = arith.truncf %508 : vector<8x16xf32> to vector<8x16xbf16>
      %cst_175 = arith.constant dense<0.000000e+00> : vector<8x32xf32>
      %510 = tpu.matmul %509, %10, %cst_175 {dimension_numbers = #tpu.dot_dimension_numbers<[1], [0], [0], [1], [0, 0, 1, 1], [], []>} : vector<8x16xbf16>, vector<16x32xbf16>, vector<8x32xf32> -> vector<8x32xf32>
      %cst_176 = arith.constant 1.000000e-16 : f32
      %511 = vector.broadcast %cst_176 : f32 to vector<8x32xf32>
      %512 = arith.addf %510, %511 : vector<8x32xf32>
      %513 = tpu.reciprocal %512 {approx = true} : vector<8x32xf32> -> vector<8x32xf32>
      %514 = arith.mulf %0, %513 : vector<8x32xf32>
      %515 = arith.truncf %514 : vector<8x32xf32> to vector<8x32xbf16>
      %cst_177 = arith.constant dense<0.000000e+00> : vector<8x16xf32>
      %516 = tpu.matmul %515, %8, %cst_177 {dimension_numbers = #tpu.dot_dimension_numbers<[1], [0], [0], [1], [0, 0, 1, 1], [], []>} : vector<8x32xbf16>, vector<32x16xbf16>, vector<8x16xf32> -> vector<8x16xf32>
      %cst_178 = arith.constant 1.000000e-16 : f32
      %517 = vector.broadcast %cst_178 : f32 to vector<8x16xf32>
      %518 = arith.addf %516, %517 : vector<8x16xf32>
      %519 = tpu.reciprocal %518 {approx = true} : vector<8x16xf32> -> vector<8x16xf32>
      %520 = arith.mulf %1, %519 : vector<8x16xf32>
      %521 = arith.truncf %520 : vector<8x16xf32> to vector<8x16xbf16>
      %cst_179 = arith.constant dense<0.000000e+00> : vector<8x32xf32>
      %522 = tpu.matmul %521, %10, %cst_179 {dimension_numbers = #tpu.dot_dimension_numbers<[1], [0], [0], [1], [0, 0, 1, 1], [], []>} : vector<8x16xbf16>, vector<16x32xbf16>, vector<8x32xf32> -> vector<8x32xf32>
      %cst_180 = arith.constant 1.000000e-16 : f32
      %523 = vector.broadcast %cst_180 : f32 to vector<8x32xf32>
      %524 = arith.addf %522, %523 : vector<8x32xf32>
      %525 = tpu.reciprocal %524 {approx = true} : vector<8x32xf32> -> vector<8x32xf32>
      %526 = arith.mulf %0, %525 : vector<8x32xf32>
      %527 = arith.truncf %526 : vector<8x32xf32> to vector<8x32xbf16>
      %cst_181 = arith.constant dense<0.000000e+00> : vector<8x16xf32>
      %528 = tpu.matmul %527, %8, %cst_181 {dimension_numbers = #tpu.dot_dimension_numbers<[1], [0], [0], [1], [0, 0, 1, 1], [], []>} : vector<8x32xbf16>, vector<32x16xbf16>, vector<8x16xf32> -> vector<8x16xf32>
      %cst_182 = arith.constant 1.000000e-16 : f32
      %529 = vector.broadcast %cst_182 : f32 to vector<8x16xf32>
      %530 = arith.addf %528, %529 : vector<8x16xf32>
      %531 = tpu.reciprocal %530 {approx = true} : vector<8x16xf32> -> vector<8x16xf32>
      %532 = arith.mulf %1, %531 : vector<8x16xf32>
      %533 = arith.truncf %532 : vector<8x16xf32> to vector<8x16xbf16>
      %cst_183 = arith.constant dense<0.000000e+00> : vector<8x32xf32>
      %534 = tpu.matmul %533, %10, %cst_183 {dimension_numbers = #tpu.dot_dimension_numbers<[1], [0], [0], [1], [0, 0, 1, 1], [], []>} : vector<8x16xbf16>, vector<16x32xbf16>, vector<8x32xf32> -> vector<8x32xf32>
      %cst_184 = arith.constant 1.000000e-16 : f32
      %535 = vector.broadcast %cst_184 : f32 to vector<8x32xf32>
      %536 = arith.addf %534, %535 : vector<8x32xf32>
      %537 = tpu.reciprocal %536 {approx = true} : vector<8x32xf32> -> vector<8x32xf32>
      %538 = arith.mulf %0, %537 : vector<8x32xf32>
      %539 = arith.truncf %538 : vector<8x32xf32> to vector<8x32xbf16>
      %cst_185 = arith.constant dense<0.000000e+00> : vector<8x16xf32>
      %540 = tpu.matmul %539, %8, %cst_185 {dimension_numbers = #tpu.dot_dimension_numbers<[1], [0], [0], [1], [0, 0, 1, 1], [], []>} : vector<8x32xbf16>, vector<32x16xbf16>, vector<8x16xf32> -> vector<8x16xf32>
      %cst_186 = arith.constant 1.000000e-16 : f32
      %541 = vector.broadcast %cst_186 : f32 to vector<8x16xf32>
      %542 = arith.addf %540, %541 : vector<8x16xf32>
      %543 = tpu.reciprocal %542 {approx = true} : vector<8x16xf32> -> vector<8x16xf32>
      %544 = arith.mulf %1, %543 : vector<8x16xf32>
      %545 = arith.truncf %544 : vector<8x16xf32> to vector<8x16xbf16>
      %cst_187 = arith.constant dense<0.000000e+00> : vector<8x32xf32>
      %546 = tpu.matmul %545, %10, %cst_187 {dimension_numbers = #tpu.dot_dimension_numbers<[1], [0], [0], [1], [0, 0, 1, 1], [], []>} : vector<8x16xbf16>, vector<16x32xbf16>, vector<8x32xf32> -> vector<8x32xf32>
      %cst_188 = arith.constant 1.000000e-16 : f32
      %547 = vector.broadcast %cst_188 : f32 to vector<8x32xf32>
      %548 = arith.addf %546, %547 : vector<8x32xf32>
      %549 = tpu.reciprocal %548 {approx = true} : vector<8x32xf32> -> vector<8x32xf32>
      %550 = arith.mulf %0, %549 : vector<8x32xf32>
      %551 = arith.truncf %550 : vector<8x32xf32> to vector<8x32xbf16>
      %cst_189 = arith.constant dense<0.000000e+00> : vector<8x16xf32>
      %552 = tpu.matmul %551, %8, %cst_189 {dimension_numbers = #tpu.dot_dimension_numbers<[1], [0], [0], [1], [0, 0, 1, 1], [], []>} : vector<8x32xbf16>, vector<32x16xbf16>, vector<8x16xf32> -> vector<8x16xf32>
      %cst_190 = arith.constant 1.000000e-16 : f32
      %553 = vector.broadcast %cst_190 : f32 to vector<8x16xf32>
      %554 = arith.addf %552, %553 : vector<8x16xf32>
      %555 = tpu.reciprocal %554 {approx = true} : vector<8x16xf32> -> vector<8x16xf32>
      %556 = arith.mulf %1, %555 : vector<8x16xf32>
      %557 = arith.truncf %556 : vector<8x16xf32> to vector<8x16xbf16>
      %cst_191 = arith.constant dense<0.000000e+00> : vector<8x32xf32>
      %558 = tpu.matmul %557, %10, %cst_191 {dimension_numbers = #tpu.dot_dimension_numbers<[1], [0], [0], [1], [0, 0, 1, 1], [], []>} : vector<8x16xbf16>, vector<16x32xbf16>, vector<8x32xf32> -> vector<8x32xf32>
      %cst_192 = arith.constant 1.000000e-16 : f32
      %559 = vector.broadcast %cst_192 : f32 to vector<8x32xf32>
      %560 = arith.addf %558, %559 : vector<8x32xf32>
      %561 = tpu.reciprocal %560 {approx = true} : vector<8x32xf32> -> vector<8x32xf32>
      %562 = arith.mulf %0, %561 : vector<8x32xf32>
      %563 = arith.truncf %562 : vector<8x32xf32> to vector<8x32xbf16>
      %cst_193 = arith.constant dense<0.000000e+00> : vector<8x16xf32>
      %564 = tpu.matmul %563, %8, %cst_193 {dimension_numbers = #tpu.dot_dimension_numbers<[1], [0], [0], [1], [0, 0, 1, 1], [], []>} : vector<8x32xbf16>, vector<32x16xbf16>, vector<8x16xf32> -> vector<8x16xf32>
      %cst_194 = arith.constant 1.000000e-16 : f32
      %565 = vector.broadcast %cst_194 : f32 to vector<8x16xf32>
      %566 = arith.addf %564, %565 : vector<8x16xf32>
      %567 = tpu.reciprocal %566 {approx = true} : vector<8x16xf32> -> vector<8x16xf32>
      %568 = arith.mulf %1, %567 : vector<8x16xf32>
      %569 = arith.truncf %568 : vector<8x16xf32> to vector<8x16xbf16>
      %cst_195 = arith.constant dense<0.000000e+00> : vector<8x32xf32>
      %570 = tpu.matmul %569, %10, %cst_195 {dimension_numbers = #tpu.dot_dimension_numbers<[1], [0], [0], [1], [0, 0, 1, 1], [], []>} : vector<8x16xbf16>, vector<16x32xbf16>, vector<8x32xf32> -> vector<8x32xf32>
      %cst_196 = arith.constant 1.000000e-16 : f32
      %571 = vector.broadcast %cst_196 : f32 to vector<8x32xf32>
      %572 = arith.addf %570, %571 : vector<8x32xf32>
      %573 = tpu.reciprocal %572 {approx = true} : vector<8x32xf32> -> vector<8x32xf32>
      %574 = arith.mulf %0, %573 : vector<8x32xf32>
      %575 = arith.truncf %574 : vector<8x32xf32> to vector<8x32xbf16>
      %cst_197 = arith.constant dense<0.000000e+00> : vector<8x16xf32>
      %576 = tpu.matmul %575, %8, %cst_197 {dimension_numbers = #tpu.dot_dimension_numbers<[1], [0], [0], [1], [0, 0, 1, 1], [], []>} : vector<8x32xbf16>, vector<32x16xbf16>, vector<8x16xf32> -> vector<8x16xf32>
      %cst_198 = arith.constant 1.000000e-16 : f32
      %577 = vector.broadcast %cst_198 : f32 to vector<8x16xf32>
      %578 = arith.addf %576, %577 : vector<8x16xf32>
      %579 = tpu.reciprocal %578 {approx = true} : vector<8x16xf32> -> vector<8x16xf32>
      %580 = arith.mulf %1, %579 : vector<8x16xf32>
      %581 = arith.truncf %580 : vector<8x16xf32> to vector<8x16xbf16>
      %cst_199 = arith.constant dense<0.000000e+00> : vector<8x32xf32>
      %582 = tpu.matmul %581, %10, %cst_199 {dimension_numbers = #tpu.dot_dimension_numbers<[1], [0], [0], [1], [0, 0, 1, 1], [], []>} : vector<8x16xbf16>, vector<16x32xbf16>, vector<8x32xf32> -> vector<8x32xf32>
      %cst_200 = arith.constant 1.000000e-16 : f32
      %583 = vector.broadcast %cst_200 : f32 to vector<8x32xf32>
      %584 = arith.addf %582, %583 : vector<8x32xf32>
      %585 = tpu.reciprocal %584 {approx = true} : vector<8x32xf32> -> vector<8x32xf32>
      %586 = arith.mulf %0, %585 : vector<8x32xf32>
      %587 = arith.truncf %586 : vector<8x32xf32> to vector<8x32xbf16>
      %cst_201 = arith.constant dense<0.000000e+00> : vector<8x16xf32>
      %588 = tpu.matmul %587, %8, %cst_201 {dimension_numbers = #tpu.dot_dimension_numbers<[1], [0], [0], [1], [0, 0, 1, 1], [], []>} : vector<8x32xbf16>, vector<32x16xbf16>, vector<8x16xf32> -> vector<8x16xf32>
      %cst_202 = arith.constant 1.000000e-16 : f32
      %589 = vector.broadcast %cst_202 : f32 to vector<8x16xf32>
      %590 = arith.addf %588, %589 : vector<8x16xf32>
      %591 = tpu.reciprocal %590 {approx = true} : vector<8x16xf32> -> vector<8x16xf32>
      %592 = arith.mulf %1, %591 : vector<8x16xf32>
      %593 = arith.truncf %592 : vector<8x16xf32> to vector<8x16xbf16>
      %cst_203 = arith.constant dense<0.000000e+00> : vector<8x32xf32>
      %594 = tpu.matmul %593, %10, %cst_203 {dimension_numbers = #tpu.dot_dimension_numbers<[1], [0], [0], [1], [0, 0, 1, 1], [], []>} : vector<8x16xbf16>, vector<16x32xbf16>, vector<8x32xf32> -> vector<8x32xf32>
      %cst_204 = arith.constant 1.000000e-16 : f32
      %595 = vector.broadcast %cst_204 : f32 to vector<8x32xf32>
      %596 = arith.addf %594, %595 : vector<8x32xf32>
      %597 = tpu.reciprocal %596 {approx = true} : vector<8x32xf32> -> vector<8x32xf32>
      %598 = arith.mulf %0, %597 : vector<8x32xf32>
      %599 = arith.truncf %598 : vector<8x32xf32> to vector<8x32xbf16>
      %cst_205 = arith.constant dense<0.000000e+00> : vector<8x16xf32>
      %600 = tpu.matmul %599, %8, %cst_205 {dimension_numbers = #tpu.dot_dimension_numbers<[1], [0], [0], [1], [0, 0, 1, 1], [], []>} : vector<8x32xbf16>, vector<32x16xbf16>, vector<8x16xf32> -> vector<8x16xf32>
      %cst_206 = arith.constant 1.000000e-16 : f32
      %601 = vector.broadcast %cst_206 : f32 to vector<8x16xf32>
      %602 = arith.addf %600, %601 : vector<8x16xf32>
      %603 = tpu.reciprocal %602 {approx = true} : vector<8x16xf32> -> vector<8x16xf32>
      %604 = arith.mulf %1, %603 : vector<8x16xf32>
      %605 = arith.truncf %604 : vector<8x16xf32> to vector<8x16xbf16>
      %cst_207 = arith.constant dense<0.000000e+00> : vector<8x32xf32>
      %606 = tpu.matmul %605, %10, %cst_207 {dimension_numbers = #tpu.dot_dimension_numbers<[1], [0], [0], [1], [0, 0, 1, 1], [], []>} : vector<8x16xbf16>, vector<16x32xbf16>, vector<8x32xf32> -> vector<8x32xf32>
      %cst_208 = arith.constant 1.000000e-16 : f32
      %607 = vector.broadcast %cst_208 : f32 to vector<8x32xf32>
      %608 = arith.addf %606, %607 : vector<8x32xf32>
      %609 = tpu.reciprocal %608 {approx = true} : vector<8x32xf32> -> vector<8x32xf32>
      %610 = arith.mulf %0, %609 : vector<8x32xf32>
      %611 = arith.truncf %610 : vector<8x32xf32> to vector<8x32xbf16>
      %cst_209 = arith.constant dense<0.000000e+00> : vector<8x16xf32>
      %612 = tpu.matmul %611, %8, %cst_209 {dimension_numbers = #tpu.dot_dimension_numbers<[1], [0], [0], [1], [0, 0, 1, 1], [], []>} : vector<8x32xbf16>, vector<32x16xbf16>, vector<8x16xf32> -> vector<8x16xf32>
      %cst_210 = arith.constant 1.000000e-16 : f32
      %613 = vector.broadcast %cst_210 : f32 to vector<8x16xf32>
      %614 = arith.addf %612, %613 : vector<8x16xf32>
      %615 = tpu.reciprocal %614 {approx = true} : vector<8x16xf32> -> vector<8x16xf32>
      %616 = arith.mulf %1, %615 : vector<8x16xf32>
      %617 = arith.truncf %616 : vector<8x16xf32> to vector<8x16xbf16>
      %cst_211 = arith.constant dense<0.000000e+00> : vector<8x32xf32>
      %618 = tpu.matmul %617, %10, %cst_211 {dimension_numbers = #tpu.dot_dimension_numbers<[1], [0], [0], [1], [0, 0, 1, 1], [], []>} : vector<8x16xbf16>, vector<16x32xbf16>, vector<8x32xf32> -> vector<8x32xf32>
      %cst_212 = arith.constant 1.000000e-16 : f32
      %619 = vector.broadcast %cst_212 : f32 to vector<8x32xf32>
      %620 = arith.addf %618, %619 : vector<8x32xf32>
      %621 = tpu.reciprocal %620 {approx = true} : vector<8x32xf32> -> vector<8x32xf32>
      %622 = arith.mulf %0, %621 : vector<8x32xf32>
      %623 = arith.truncf %622 : vector<8x32xf32> to vector<8x32xbf16>
      %cst_213 = arith.constant dense<0.000000e+00> : vector<8x16xf32>
      %624 = tpu.matmul %623, %8, %cst_213 {dimension_numbers = #tpu.dot_dimension_numbers<[1], [0], [0], [1], [0, 0, 1, 1], [], []>} : vector<8x32xbf16>, vector<32x16xbf16>, vector<8x16xf32> -> vector<8x16xf32>
      %cst_214 = arith.constant 1.000000e-16 : f32
      %625 = vector.broadcast %cst_214 : f32 to vector<8x16xf32>
      %626 = arith.addf %624, %625 : vector<8x16xf32>
      %627 = tpu.reciprocal %626 {approx = true} : vector<8x16xf32> -> vector<8x16xf32>
      %628 = arith.mulf %1, %627 : vector<8x16xf32>
      %629 = arith.truncf %628 : vector<8x16xf32> to vector<8x16xbf16>
      %cst_215 = arith.constant dense<0.000000e+00> : vector<8x32xf32>
      %630 = tpu.matmul %629, %10, %cst_215 {dimension_numbers = #tpu.dot_dimension_numbers<[1], [0], [0], [1], [0, 0, 1, 1], [], []>} : vector<8x16xbf16>, vector<16x32xbf16>, vector<8x32xf32> -> vector<8x32xf32>
      %cst_216 = arith.constant 1.000000e-16 : f32
      %631 = vector.broadcast %cst_216 : f32 to vector<8x32xf32>
      %632 = arith.addf %630, %631 : vector<8x32xf32>
      %633 = tpu.reciprocal %632 {approx = true} : vector<8x32xf32> -> vector<8x32xf32>
      %634 = arith.mulf %0, %633 : vector<8x32xf32>
      scf.yield %634, %628 : vector<8x32xf32>, vector<8x16xf32>
    } else {
      scf.yield %34#0, %34#2 : vector<8x32xf32>, vector<8x16xf32>
    }
    %39 = arith.mulf %7, %2 : vector<32x16xf32>
    %cst_16 = arith.constant dense<0.000000e+00> : vector<8x16xf32>
    %40 = tpu.matmul %38#0, %39, %cst_16 {dimension_numbers = #tpu.dot_dimension_numbers<[1], [0], [0], [1], [0, 0, 1, 1], [], []>} : vector<8x32xf32>, vector<32x16xf32>, vector<8x16xf32> -> vector<8x16xf32>
    %41 = arith.mulf %40, %38#1 : vector<8x16xf32>
    %cst_17 = arith.constant dense<0.000000e+00> : vector<8xf32>
    %42 = vector.multi_reduction <add>, %41, %cst_17 [1] : vector<8x16xf32> to vector<8xf32>
    %43 = vector.shape_cast %42 : vector<8xf32> to vector<8x1xf32>
    %cst_18 = arith.constant dense<0.000000e+00> : vector<1xf32>
    %44 = vector.multi_reduction <add>, %43, %cst_18 [0] : vector<8x1xf32> to vector<1xf32>
    %45 = vector.shape_cast %44 : vector<1xf32> to vector<1x1xf32>
    %cst_19 = arith.constant 1.250000e-01 : f32
    %46 = vector.broadcast %cst_19 : f32 to vector<1x1xf32>
    %47 = arith.mulf %45, %46 : vector<1x1xf32>
    %c0_20 = arith.constant 0 : index
    %c0_21 = arith.constant 0 : index
    %48 = vector.load %arg3[%c0_20, %c0_21] : memref<1x1xf32, #tpu.memory_space<vmem>>, vector<1x1xf32>
    tpu.vector_store %arg3[%c0_20, %c0_21], %47 {strides = array<i32>} : memref<1x1xf32, #tpu.memory_space<vmem>>, vector<1x1xf32>,
    return
  }
}

</mosaic_0001>

<llo_original>
// kernel: tpu_custom_call.1
$region0: #{tpu_custom_call.1}
  #allocation0 [shape = 'u32[]', space=smem, size = 0x4, offset = 0x4, fixed_abs, tag = 'smem constant byte address 0x4 - core index']
  #allocation1 [shape = 'u32[72,128]{1,0:T(1,128)}', space=vmem, size = 0x9000, scoped, tag = 'internal scratch']
  %s0 = inlined_call_operand.vmem [shape: f32[8,32], index: 0, kind: input, shape index: {}]
  %s1 = inlined_call_operand.vmem [shape: f32[8,16], index: 1, kind: input, shape index: {}]
  %s2 = inlined_call_operand.vmem [shape: f32[32,16], index: 2, kind: input, shape index: {}]
  %s3 = inlined_call_operand.hbm [shape: f32[1,1], index: 3, kind: output, shape index: {}]
  %s4 = sld [smem:[#allocation0]]
  $region44: #{tpu_custom_call.1} parent=0
    _
  %s6 = ssub.s32 1, %s4
  %s7 = scalar_select 0, %s6, %s4
  $region1: #{tpu_custom_call.1} parent=0
    #allocation2 [shape = 'u8[512]{0}', space=vmem, size = 0x400, scoped, tag = 'output window, operand 0, single buffered']
    #allocation3 [shape = 's32[1]{0}', space=sflag, size = 0x4, scoped, tag = 'scoped memory for tpu_custom_call.1']
    %8 = vsyncpa [#allocation3], 0
    // Predicated region
    $region2: #{tpu_custom_call.1} parent=1 // pred_check
      _
    $region3: #{tpu_custom_call.1} parent=1 // pred_check_branch
      %10 = sbr.rel (0) target = $region5
    $region4: #{tpu_custom_call.1} parent=1 // pred_region
      _
    $region5: #{tpu_custom_call.1} parent=1 // pred_fallthru
      _
    // Predicated region
    $region6: #{tpu_custom_call.1} parent=1 // pred_check
      _
    $region7: #{tpu_custom_call.1} parent=1 // pred_check_branch
      %12 = sbr.rel (0) target = $region9
    $region8: #{tpu_custom_call.1} parent=1 // pred_region
      _
    $region9: #{tpu_custom_call.1} parent=1 // pred_fallthru
      _
    // Predicated region
    $region10: #{tpu_custom_call.1} parent=1 // pred_check
      _
    $region11: #{tpu_custom_call.1} parent=1 // pred_check_branch
      %14 = sbr.rel (0) target = $region13
    $region12: #{tpu_custom_call.1} parent=1 // pred_region
      _
    $region13: #{tpu_custom_call.1} parent=1 // pred_fallthru
      _
    %v17 = vld [vmem:[%s0] sm:$0xff]
    %v18 = vld [vmem:[%s1] sm:$0xff]
    %v19 = vld [vmem:[%s2] sm:$0xff]
    %v20 = vld [vmem:[%s2 + $0x8] sm:$0xff]
    %v21 = vld [vmem:[%s2 + $0x10] sm:$0xff]
    %v22 = vld [vmem:[%s2 + $0x18] sm:$0xff]
    %v23 = vsub.f32 0.0, %v19
    %v24 = vsub.f32 0.0, %v20
    %v25 = vsub.f32 0.0, %v21
    %v26 = vsub.f32 0.0, %v22
    %v27 = vmul.f32 %v23, 20.0
    %v28 = vmul.f32 %v24, 20.0
    %v29 = vmul.f32 %v25, 20.0
    %v30 = vmul.f32 %v26, 20.0
    %v31 = vmul.f32 %v27, 1.442695
    %v32 = vpow.pop %v31
    %v33 = vmul.f32 %v28, 1.442695
    %v34 = vpow.pop %v33
    %v35 = vmul.f32 %v29, 1.442695
    %v36 = vpow.pop %v35
    %v37 = vmul.f32 %v30, 1.442695
    %v38 = vpow.pop %v37
    %v39 = vpack.c.bf16 %v34, %v32
    %v40 = vpack.c.bf16 %v38, %v36
    %41 = vxpose.xlu0.b32.start [1/16] %v32, 128
    %42 = vxpose.xlu0.b32.cont [2/16] %v34, 128
    %43 = vxpose.xlu0.b32.cont [3/16] %v36, 128
    %44 = vxpose.xlu0.b32.cont [4/16] %v38, 128
    %45 = vxpose.xlu0.b32.cont [5/16] 0.0, 128
    %46 = vxpose.xlu0.b32.cont [6/16] 0.0, 128
    %47 = vxpose.xlu0.b32.cont [7/16] 0.0, 128
    %48 = vxpose.xlu0.b32.cont [8/16] 0.0, 128
    %49 = vxpose.xlu0.b32.cont [9/16] 0.0, 128
    %50 = vxpose.xlu0.b32.cont [10/16] 0.0, 128
    %51 = vxpose.xlu0.b32.cont [11/16] 0.0, 128
    %52 = vxpose.xlu0.b32.cont [12/16] 0.0, 128
    %53 = vxpose.xlu0.b32.cont [13/16] 0.0, 128
    %54 = vxpose.xlu0.b32.cont [14/16] 0.0, 128
    %55 = vxpose.xlu0.b32.cont [15/16] 0.0, 128
    %56 = vxpose.xlu0.b32.end [16/16] 0.0, 128
    %v57 = vpop.trf.xlu0
    %v58 = vpop.trf.xlu0
    %v59 = vpop.trf.xlu0
    %v60 = vpop.trf.xlu0
    %v61 = vpop.trf.xlu0
    %v62 = vpop.trf.xlu0
    %v63 = vpop.trf.xlu0
    %v64 = vpop.trf.xlu0
    %v65 = vpop.trf.xlu0
    %v66 = vpop.trf.xlu0
    %v67 = vpop.trf.xlu0
    %v68 = vpop.trf.xlu0
    %v69 = vpop.trf.xlu0
    %v70 = vpop.trf.xlu0
    %v71 = vpop.trf.xlu0
    %v72 = vpop.trf.xlu0
    %v73 = vpack.c.bf16 %v58, %v57
    %vm74 = vcmask 261120
    %v76 = vsel %vm74, 1023425792, 0
    %78 = vmatpush.bf16.msra.mxu0 0
    %79 = vmatpush.bf16.msra.mxu0 0
    %80 = vmatpush.bf16.msra.mxu0 0
    %81 = vmatpush.bf16.msra.mxu0 0
    %82 = vmatpush.bf16.msra.mxu0 0
    %83 = vmatpush.bf16.msra.mxu0 0
    %84 = vmatpush.bf16.msra.mxu0 %v40
    %85 = vmatpush.bf16.msra.mxu0 %v39
    %86 = vmatmul.bf16.gmra.mxu0 %v76
    %v87 = vpop.f32.mrf.mxu0
    %v88 = vadd.f32 1e-16, %v87
    %v89 = vpop.f32.mrf.mxu0
    %90 = vdwg.mxu0
    %v91 = vrcp.pop %v88
    %v92 = vmul.f32 %v18, %v91
    %v93 = vpack.c.bf16 %v92, %v92
    %vm94 = vcmask 130048
    %v96 = vsel %vm94, %v93, 0
    %98 = vmatpush.bf16.msra.mxu0 0
    %99 = vmatpush.bf16.msra.mxu0 0
    %100 = vmatpush.bf16.msra.mxu0 0
    %101 = vmatpush.bf16.msra.mxu0 0
    %102 = vmatpush.bf16.msra.mxu0 0
    %103 = vmatpush.bf16.msra.mxu0 0
    %104 = vmatpush.bf16.msra.mxu0 0
    %105 = vmatpush.bf16.msra.mxu0 %v73
    %106 = vmatmul.bf16.gmra.mxu0 %v96
    %v107 = vpop.f32.mrf.mxu0
    %v108 = vadd.f32 1e-16, %v107
    %v109 = vpop.f32.mrf.mxu0
    %110 = vdwg.mxu0
    %v111 = vrcp.pop %v108
    %v112 = vmul.f32 %v17, %v111
    %v113 = vpack.c.bf16 %v112, %v112
    %v115 = vsel %vm74, %v113, 0
    %117 = vmatpush.bf16.msra.mxu0 0
    %118 = vmatpush.bf16.msra.mxu0 0
    %119 = vmatpush.bf16.msra.mxu0 0
    %120 = vmatpush.bf16.msra.mxu0 0
    %121 = vmatpush.bf16.msra.mxu0 0
    %122 = vmatpush.bf16.msra.mxu0 0
    %123 = vmatpush.bf16.msra.mxu0 %v40
    %124 = vmatpush.bf16.msra.mxu0 %v39
    %125 = vmatmul.bf16.gmra.mxu0 %v115
    %v126 = vpop.f32.mrf.mxu0
    %v127 = vadd.f32 0.0, %v126
    %v128 = vpop.f32.mrf.mxu0
    %129 = vdwg.mxu0
    %v130 = vmul.f32 %v92, %v127
    %v131 = vsub.f32 %v130, %v18
    %v132 = vand.u32 2147483647, %v131
    %v133 = vsel %vm94, %v132, 0.0
    %134 = vadd.xlane.f32.xlu0 %v133
    %v135 = vpop.xlane.xlu0 %134
    %v136 = vrot.slane %v135, 4
    %v137 = vmax.f32 %v135, %v136
    %v138 = vrot.slane %v137, 2
    %v139 = vmax.f32 %v137, %v138
    %v140 = vrot.slane %v139, 1
    %v141 = vmax.f32 %v139, %v140
    %s142 = vtos %v141
    // While loop
    $region14: #{tpu_custom_call.1} parent=1 // loop_pre_header
      _
    $region15: #{tpu_custom_call.1} parent=1 // loop_header
      %v144 = vphi %v112, %v161
      %v145 = vphi %v127, %v162
      %v146 = vphi %v92, %v163
      %s147 = sphi %s142, %s557
      %s148 = sphi 0, %s558
      %p149 = scmp.gt.f32.partialorder %s147, 0.005
      %p150 = scmp.lt.s32.totalorder %s148, 99
      %p151 = pnand %p149, %p150
      %p152 = pneg %p151
    $region16: #{tpu_custom_call.1} parent=1 // loop_header_branch
      %154 = sbr.rel (%p151) target = $region20
    $region17: #{tpu_custom_call.1} parent=1 // loop_body
      loop: start=0, step=1, limit=5
      $region21: #{tpu_custom_call.1} parent=17 // loop_pre_header
        _
      $region22: #{tpu_custom_call.1} parent=17 // loop_header
        %s156 = sphi 0, %s160
        %p157 = scmp.ge.s32.totalorder %s156, 5
        %v161 = vphi %v144, %v527
        %v162 = vphi %v145, %v542
        %v163 = vphi %v146, %v508
      $region23: #{tpu_custom_call.1} parent=17 // loop_header_branch
        %159 = sbr.rel (%p157) target = $region27
      $region24: #{tpu_custom_call.1} parent=17 // loop_body
        %v164 = vadd.f32 %v162, 1e-16
        %v165 = vrcp.pop %v164
        %v166 = vmul.f32 %v18, %v165
        %v167 = vpack.c.bf16 %v166, %v166
        %v169 = vsel %vm94, %v167, 0
        %171 = vmatpush.bf16.msra.mxu0 0
        %172 = vmatpush.bf16.msra.mxu0 0
        %173 = vmatpush.bf16.msra.mxu0 0
        %174 = vmatpush.bf16.msra.mxu0 0
        %175 = vmatpush.bf16.msra.mxu0 0
        %176 = vmatpush.bf16.msra.mxu0 0
        %177 = vmatpush.bf16.msra.mxu0 0
        %178 = vmatpush.bf16.msra.mxu0 %v73
        %179 = vmatmul.bf16.gmra.mxu0 %v169
        %v180 = vpop.f32.mrf.mxu0
        %v181 = vadd.f32 1e-16, %v180
        %v182 = vpop.f32.mrf.mxu0
        %183 = vdwg.mxu0
        %v184 = vrcp.pop %v181
        %v185 = vmul.f32 %v17, %v184
        %v186 = vpack.c.bf16 %v185, %v185
        %v188 = vsel %vm74, %v186, 0
        %190 = vmatpush.bf16.msra.mxu0 0
        %191 = vmatpush.bf16.msra.mxu0 0
        %192 = vmatpush.bf16.msra.mxu0 0
        %193 = vmatpush.bf16.msra.mxu0 0
        %194 = vmatpush.bf16.msra.mxu0 0
        %195 = vmatpush.bf16.msra.mxu0 0
        %196 = vmatpush.bf16.msra.mxu0 %v40
        %197 = vmatpush.bf16.msra.mxu0 %v39
        %198 = vmatmul.bf16.gmra.mxu0 %v188
        %v199 = vpop.f32.mrf.mxu0
        %v200 = vadd.f32 1e-16, %v199
        %v201 = vpop.f32.mrf.mxu0
        %202 = vdwg.mxu0
        %v203 = vrcp.pop %v200
        %v204 = vmul.f32 %v18, %v203
        %v205 = vpack.c.bf16 %v204, %v204
        %v207 = vsel %vm94, %v205, 0
        %209 = vmatpush.bf16.msra.mxu0 0
        %210 = vmatpush.bf16.msra.mxu0 0
        %211 = vmatpush.bf16.msra.mxu0 0
        %212 = vmatpush.bf16.msra.mxu0 0
        %213 = vmatpush.bf16.msra.mxu0 0
        %214 = vmatpush.bf16.msra.mxu0 0
        %215 = vmatpush.bf16.msra.mxu0 0
        %216 = vmatpush.bf16.msra.mxu0 %v73
        %217 = vmatmul.bf16.gmra.mxu0 %v207
        %v218 = vpop.f32.mrf.mxu0
        %v219 = vadd.f32 1e-16, %v218
        %v220 = vpop.f32.mrf.mxu0
        %221 = vdwg.mxu0
        %v222 = vrcp.pop %v219
        %v223 = vmul.f32 %v17, %v222
        %v224 = vpack.c.bf16 %v223, %v223
        %v226 = vsel %vm74, %v224, 0
        %228 = vmatpush.bf16.msra.mxu0 0
        %229 = vmatpush.bf16.msra.mxu0 0
        %230 = vmatpush.bf16.msra.mxu0 0
        %231 = vmatpush.bf16.msra.mxu0 0
        %232 = vmatpush.bf16.msra.mxu0 0
        %233 = vmatpush.bf16.msra.mxu0 0
        %234 = vmatpush.bf16.msra.mxu0 %v40
        %235 = vmatpush.bf16.msra.mxu0 %v39
        %236 = vmatmul.bf16.gmra.mxu0 %v226
        %v237 = vpop.f32.mrf.mxu0
        %v238 = vadd.f32 1e-16, %v237
        %v239 = vpop.f32.mrf.mxu0
        %240 = vdwg.mxu0
        %v241 = vrcp.pop %v238
        %v242 = vmul.f32 %v18, %v241
        %v243 = vpack.c.bf16 %v242, %v242
        %v245 = vsel %vm94, %v243, 0
        %247 = vmatpush.bf16.msra.mxu0 0
        %248 = vmatpush.bf16.msra.mxu0 0
        %249 = vmatpush.bf16.msra.mxu0 0
        %250 = vmatpush.bf16.msra.mxu0 0
        %251 = vmatpush.bf16.msra.mxu0 0
        %252 = vmatpush.bf16.msra.mxu0 0
        %253 = vmatpush.bf16.msra.mxu0 0
        %254 = vmatpush.bf16.msra.mxu0 %v73
        %255 = vmatmul.bf16.gmra.mxu0 %v245
        %v256 = vpop.f32.mrf.mxu0
        %v257 = vadd.f32 1e-16, %v256
        %v258 = vpop.f32.mrf.mxu0
        %259 = vdwg.mxu0
        %v260 = vrcp.pop %v257
        %v261 = vmul.f32 %v17, %v260
        %v262 = vpack.c.bf16 %v261, %v261
        %v264 = vsel %vm74, %v262, 0
        %266 = vmatpush.bf16.msra.mxu0 0
        %267 = vmatpush.bf16.msra.mxu0 0
        %268 = vmatpush.bf16.msra.mxu0 0
        %269 = vmatpush.bf16.msra.mxu0 0
        %270 = vmatpush.bf16.msra.mxu0 0
        %271 = vmatpush.bf16.msra.mxu0 0
        %272 = vmatpush.bf16.msra.mxu0 %v40
        %273 = vmatpush.bf16.msra.mxu0 %v39
        %274 = vmatmul.bf16.gmra.mxu0 %v264
        %v275 = vpop.f32.mrf.mxu0
        %v276 = vadd.f32 1e-16, %v275
        %v277 = vpop.f32.mrf.mxu0
        %278 = vdwg.mxu0
        %v279 = vrcp.pop %v276
        %v280 = vmul.f32 %v18, %v279
        %v281 = vpack.c.bf16 %v280, %v280
        %v283 = vsel %vm94, %v281, 0
        %285 = vmatpush.bf16.msra.mxu0 0
        %286 = vmatpush.bf16.msra.mxu0 0
        %287 = vmatpush.bf16.msra.mxu0 0
        %288 = vmatpush.bf16.msra.mxu0 0
        %289 = vmatpush.bf16.msra.mxu0 0
        %290 = vmatpush.bf16.msra.mxu0 0
        %291 = vmatpush.bf16.msra.mxu0 0
        %292 = vmatpush.bf16.msra.mxu0 %v73
        %293 = vmatmul.bf16.gmra.mxu0 %v283
        %v294 = vpop.f32.mrf.mxu0
        %v295 = vadd.f32 1e-16, %v294
        %v296 = vpop.f32.mrf.mxu0
        %297 = vdwg.mxu0
        %v298 = vrcp.pop %v295
        %v299 = vmul.f32 %v17, %v298
        %v300 = vpack.c.bf16 %v299, %v299
        %v302 = vsel %vm74, %v300, 0
        %304 = vmatpush.bf16.msra.mxu0 0
        %305 = vmatpush.bf16.msra.mxu0 0
        %306 = vmatpush.bf16.msra.mxu0 0
        %307 = vmatpush.bf16.msra.mxu0 0
        %308 = vmatpush.bf16.msra.mxu0 0
        %309 = vmatpush.bf16.msra.mxu0 0
        %310 = vmatpush.bf16.msra.mxu0 %v40
        %311 = vmatpush.bf16.msra.mxu0 %v39
        %312 = vmatmul.bf16.gmra.mxu0 %v302
        %v313 = vpop.f32.mrf.mxu0
        %v314 = vadd.f32 1e-16, %v313
        %v315 = vpop.f32.mrf.mxu0
        %316 = vdwg.mxu0
        %v317 = vrcp.pop %v314
        %v318 = vmul.f32 %v18, %v317
        %v319 = vpack.c.bf16 %v318, %v318
        %v321 = vsel %vm94, %v319, 0
        %323 = vmatpush.bf16.msra.mxu0 0
        %324 = vmatpush.bf16.msra.mxu0 0
        %325 = vmatpush.bf16.msra.mxu0 0
        %326 = vmatpush.bf16.msra.mxu0 0
        %327 = vmatpush.bf16.msra.mxu0 0
        %328 = vmatpush.bf16.msra.mxu0 0
        %329 = vmatpush.bf16.msra.mxu0 0
        %330 = vmatpush.bf16.msra.mxu0 %v73
        %331 = vmatmul.bf16.gmra.mxu0 %v321
        %v332 = vpop.f32.mrf.mxu0
        %v333 = vadd.f32 1e-16, %v332
        %v334 = vpop.f32.mrf.mxu0
        %335 = vdwg.mxu0
        %v336 = vrcp.pop %v333
        %v337 = vmul.f32 %v17, %v336
        %v338 = vpack.c.bf16 %v337, %v337
        %v340 = vsel %vm74, %v338, 0
        %342 = vmatpush.bf16.msra.mxu0 0
        %343 = vmatpush.bf16.msra.mxu0 0
        %344 = vmatpush.bf16.msra.mxu0 0
        %345 = vmatpush.bf16.msra.mxu0 0
        %346 = vmatpush.bf16.msra.mxu0 0
        %347 = vmatpush.bf16.msra.mxu0 0
        %348 = vmatpush.bf16.msra.mxu0 %v40
        %349 = vmatpush.bf16.msra.mxu0 %v39
        %350 = vmatmul.bf16.gmra.mxu0 %v340
        %v351 = vpop.f32.mrf.mxu0
        %v352 = vadd.f32 1e-16, %v351
        %v353 = vpop.f32.mrf.mxu0
        %354 = vdwg.mxu0
        %v355 = vrcp.pop %v352
        %v356 = vmul.f32 %v18, %v355
        %v357 = vpack.c.bf16 %v356, %v356
        %v359 = vsel %vm94, %v357, 0
        %361 = vmatpush.bf16.msra.mxu0 0
        %362 = vmatpush.bf16.msra.mxu0 0
        %363 = vmatpush.bf16.msra.mxu0 0
        %364 = vmatpush.bf16.msra.mxu0 0
        %365 = vmatpush.bf16.msra.mxu0 0
        %366 = vmatpush.bf16.msra.mxu0 0
        %367 = vmatpush.bf16.msra.mxu0 0
        %368 = vmatpush.bf16.msra.mxu0 %v73
        %369 = vmatmul.bf16.gmra.mxu0 %v359
        %v370 = vpop.f32.mrf.mxu0
        %v371 = vadd.f32 1e-16, %v370
        %v372 = vpop.f32.mrf.mxu0
        %373 = vdwg.mxu0
        %v374 = vrcp.pop %v371
        %v375 = vmul.f32 %v17, %v374
        %v376 = vpack.c.bf16 %v375, %v375
        %v378 = vsel %vm74, %v376, 0
        %380 = vmatpush.bf16.msra.mxu0 0
        %381 = vmatpush.bf16.msra.mxu0 0
        %382 = vmatpush.bf16.msra.mxu0 0
        %383 = vmatpush.bf16.msra.mxu0 0
        %384 = vmatpush.bf16.msra.mxu0 0
        %385 = vmatpush.bf16.msra.mxu0 0
        %386 = vmatpush.bf16.msra.mxu0 %v40
        %387 = vmatpush.bf16.msra.mxu0 %v39
        %388 = vmatmul.bf16.gmra.mxu0 %v378
        %v389 = vpop.f32.mrf.mxu0
        %v390 = vadd.f32 1e-16, %v389
        %v391 = vpop.f32.mrf.mxu0
        %392 = vdwg.mxu0
        %v393 = vrcp.pop %v390
        %v394 = vmul.f32 %v18, %v393
        %v395 = vpack.c.bf16 %v394, %v394
        %v397 = vsel %vm94, %v395, 0
        %399 = vmatpush.bf16.msra.mxu0 0
        %400 = vmatpush.bf16.msra.mxu0 0
        %401 = vmatpush.bf16.msra.mxu0 0
        %402 = vmatpush.bf16.msra.mxu0 0
        %403 = vmatpush.bf16.msra.mxu0 0
        %404 = vmatpush.bf16.msra.mxu0 0
        %405 = vmatpush.bf16.msra.mxu0 0
        %406 = vmatpush.bf16.msra.mxu0 %v73
        %407 = vmatmul.bf16.gmra.mxu0 %v397
        %v408 = vpop.f32.mrf.mxu0
        %v409 = vadd.f32 1e-16, %v408
        %v410 = vpop.f32.mrf.mxu0
        %411 = vdwg.mxu0
        %v412 = vrcp.pop %v409
        %v413 = vmul.f32 %v17, %v412
        %v414 = vpack.c.bf16 %v413, %v413
        %v416 = vsel %vm74, %v414, 0
        %418 = vmatpush.bf16.msra.mxu0 0
        %419 = vmatpush.bf16.msra.mxu0 0
        %420 = vmatpush.bf16.msra.mxu0 0
        %421 = vmatpush.bf16.msra.mxu0 0
        %422 = vmatpush.bf16.msra.mxu0 0
        %423 = vmatpush.bf16.msra.mxu0 0
        %424 = vmatpush.bf16.msra.mxu0 %v40
        %425 = vmatpush.bf16.msra.mxu0 %v39
        %426 = vmatmul.bf16.gmra.mxu0 %v416
        %v427 = vpop.f32.mrf.mxu0
        %v428 = vadd.f32 1e-16, %v427
        %v429 = vpop.f32.mrf.mxu0
        %430 = vdwg.mxu0
        %v431 = vrcp.pop %v428
        %v432 = vmul.f32 %v18, %v431
        %v433 = vpack.c.bf16 %v432, %v432
        %v435 = vsel %vm94, %v433, 0
        %437 = vmatpush.bf16.msra.mxu0 0
        %438 = vmatpush.bf16.msra.mxu0 0
        %439 = vmatpush.bf16.msra.mxu0 0
        %440 = vmatpush.bf16.msra.mxu0 0
        %441 = vmatpush.bf16.msra.mxu0 0
        %442 = vmatpush.bf16.msra.mxu0 0
        %443 = vmatpush.bf16.msra.mxu0 0
        %444 = vmatpush.bf16.msra.mxu0 %v73
        %445 = vmatmul.bf16.gmra.mxu0 %v435
        %v446 = vpop.f32.mrf.mxu0
        %v447 = vadd.f32 1e-16, %v446
        %v448 = vpop.f32.mrf.mxu0
        %449 = vdwg.mxu0
        %v450 = vrcp.pop %v447
        %v451 = vmul.f32 %v17, %v450
        %v452 = vpack.c.bf16 %v451, %v451
        %v454 = vsel %vm74, %v452, 0
        %456 = vmatpush.bf16.msra.mxu0 0
        %457 = vmatpush.bf16.msra.mxu0 0
        %458 = vmatpush.bf16.msra.mxu0 0
        %459 = vmatpush.bf16.msra.mxu0 0
        %460 = vmatpush.bf16.msra.mxu0 0
        %461 = vmatpush.bf16.msra.mxu0 0
        %462 = vmatpush.bf16.msra.mxu0 %v40
        %463 = vmatpush.bf16.msra.mxu0 %v39
        %464 = vmatmul.bf16.gmra.mxu0 %v454
        %v465 = vpop.f32.mrf.mxu0
        %v466 = vadd.f32 1e-16, %v465
        %v467 = vpop.f32.mrf.mxu0
        %468 = vdwg.mxu0
        %v469 = vrcp.pop %v466
        %v470 = vmul.f32 %v18, %v469
        %v471 = vpack.c.bf16 %v470, %v470
        %v473 = vsel %vm94, %v471, 0
        %475 = vmatpush.bf16.msra.mxu0 0
        %476 = vmatpush.bf16.msra.mxu0 0
        %477 = vmatpush.bf16.msra.mxu0 0
        %478 = vmatpush.bf16.msra.mxu0 0
        %479 = vmatpush.bf16.msra.mxu0 0
        %480 = vmatpush.bf16.msra.mxu0 0
        %481 = vmatpush.bf16.msra.mxu0 0
        %482 = vmatpush.bf16.msra.mxu0 %v73
        %483 = vmatmul.bf16.gmra.mxu0 %v473
        %v484 = vpop.f32.mrf.mxu0
        %v485 = vadd.f32 1e-16, %v484
        %v486 = vpop.f32.mrf.mxu0
        %487 = vdwg.mxu0
        %v488 = vrcp.pop %v485
        %v489 = vmul.f32 %v17, %v488
        %v490 = vpack.c.bf16 %v489, %v489
        %v492 = vsel %vm74, %v490, 0
        %494 = vmatpush.bf16.msra.mxu0 0
        %495 = vmatpush.bf16.msra.mxu0 0
        %496 = vmatpush.bf16.msra.mxu0 0
        %497 = vmatpush.bf16.msra.mxu0 0
        %498 = vmatpush.bf16.msra.mxu0 0
        %499 = vmatpush.bf16.msra.mxu0 0
        %500 = vmatpush.bf16.msra.mxu0 %v40
        %501 = vmatpush.bf16.msra.mxu0 %v39
        %502 = vmatmul.bf16.gmra.mxu0 %v492
        %v503 = vpop.f32.mrf.mxu0
        %v504 = vadd.f32 1e-16, %v503
        %v505 = vpop.f32.mrf.mxu0
        %506 = vdwg.mxu0
        %v507 = vrcp.pop %v504
        %v508 = vmul.f32 %v18, %v507
        %v509 = vpack.c.bf16 %v508, %v508
        %v511 = vsel %vm94, %v509, 0
        %513 = vmatpush.bf16.msra.mxu0 0
        %514 = vmatpush.bf16.msra.mxu0 0
        %515 = vmatpush.bf16.msra.mxu0 0
        %516 = vmatpush.bf16.msra.mxu0 0
        %517 = vmatpush.bf16.msra.mxu0 0
        %518 = vmatpush.bf16.msra.mxu0 0
        %519 = vmatpush.bf16.msra.mxu0 0
        %520 = vmatpush.bf16.msra.mxu0 %v73
        %521 = vmatmul.bf16.gmra.mxu0 %v511
        %v522 = vpop.f32.mrf.mxu0
        %v523 = vadd.f32 1e-16, %v522
        %v524 = vpop.f32.mrf.mxu0
        %525 = vdwg.mxu0
        %v526 = vrcp.pop %v523
        %v527 = vmul.f32 %v17, %v526
        %v528 = vpack.c.bf16 %v527, %v527
        %v530 = vsel %vm74, %v528, 0
        %532 = vmatpush.bf16.msra.mxu0 0
        %533 = vmatpush.bf16.msra.mxu0 0
        %534 = vmatpush.bf16.msra.mxu0 0
        %535 = vmatpush.bf16.msra.mxu0 0
        %536 = vmatpush.bf16.msra.mxu0 0
        %537 = vmatpush.bf16.msra.mxu0 0
        %538 = vmatpush.bf16.msra.mxu0 %v40
        %539 = vmatpush.bf16.msra.mxu0 %v39
        %540 = vmatmul.bf16.gmra.mxu0 %v530
        %v541 = vpop.f32.mrf.mxu0
        %v542 = vadd.f32 0.0, %v541
        %v543 = vpop.f32.mrf.mxu0
        %544 = vdwg.mxu0
      $region25: #{tpu_custom_call.1} parent=17 // loop_footer
        %s160 = sadd.s32 1, %s156
      $region26: #{tpu_custom_call.1} parent=17 // loop_footer_branch
        %155 = sbr.rel target = $region22
      $region27: #{tpu_custom_call.1} parent=17 // loop_exit
        _
      %v545 = vmul.f32 %v163, %v162
      %v546 = vsub.f32 %v545, %v18
      %v547 = vand.u32 2147483647, %v546
      %v548 = vsel %vm94, %v547, 0.0
      %549 = vadd.xlane.f32.xlu0 %v548
      %v550 = vpop.xlane.xlu0 %549
      %v551 = vrot.slane %v550, 4
      %v552 = vmax.f32 %v550, %v551
      %v553 = vrot.slane %v552, 2
      %v554 = vmax.f32 %v552, %v553
      %v555 = vrot.slane %v554, 1
      %v556 = vmax.f32 %v554, %v555
      %s557 = vtos %v556
      %s558 = sadd.s32 %s148, 1
    $region18: #{tpu_custom_call.1} parent=1 // loop_footer
      _
    $region19: #{tpu_custom_call.1} parent=1 // loop_footer_branch
      %143 = sbr.rel target = $region15
    $region20: #{tpu_custom_call.1} parent=1 // loop_exit
      _
    %p559 = scmp.gt.f32.partialorder %s147, 0.005
    // Predicated region
    $region28: #{tpu_custom_call.1} parent=1 // pred_check
      %p560 = pneg %p559
    $region29: #{tpu_custom_call.1} parent=1 // pred_check_branch
      %562 = sbr.rel (%p560) target = $region31
    $region30: #{tpu_custom_call.1} parent=1 // pred_region
      %v563 = vadd.f32 %v145, 1e-16
      %v564 = vrcp.pop %v563
      %v565 = vmul.f32 %v18, %v564
      %v566 = vpack.c.bf16 %v565, %v565
      %v568 = vsel %vm94, %v566, 0
      %570 = vmatpush.bf16.msra.mxu0 0
      %571 = vmatpush.bf16.msra.mxu0 0
      %572 = vmatpush.bf16.msra.mxu0 0
      %573 = vmatpush.bf16.msra.mxu0 0
      %574 = vmatpush.bf16.msra.mxu0 0
      %575 = vmatpush.bf16.msra.mxu0 0
      %576 = vmatpush.bf16.msra.mxu0 0
      %577 = vmatpush.bf16.msra.mxu0 %v73
      %578 = vmatmul.bf16.gmra.mxu0 %v568
      %v579 = vpop.f32.mrf.mxu0
      %v580 = vadd.f32 1e-16, %v579
      %v581 = vpop.f32.mrf.mxu0
      %582 = vdwg.mxu0
      %v583 = vrcp.pop %v580
      %v584 = vmul.f32 %v17, %v583
      %v585 = vpack.c.bf16 %v584, %v584
      %v587 = vsel %vm74, %v585, 0
      %589 = vmatpush.bf16.msra.mxu0 0
      %590 = vmatpush.bf16.msra.mxu0 0
      %591 = vmatpush.bf16.msra.mxu0 0
      %592 = vmatpush.bf16.msra.mxu0 0
      %593 = vmatpush.bf16.msra.mxu0 0
      %594 = vmatpush.bf16.msra.mxu0 0
      %595 = vmatpush.bf16.msra.mxu0 %v40
      %596 = vmatpush.bf16.msra.mxu0 %v39
      %597 = vmatmul.bf16.gmra.mxu0 %v587
      %v598 = vpop.f32.mrf.mxu0
      %v599 = vadd.f32 1e-16, %v598
      %v600 = vpop.f32.mrf.mxu0
      %601 = vdwg.mxu0
      %v602 = vrcp.pop %v599
      %v603 = vmul.f32 %v18, %v602
      %v604 = vpack.c.bf16 %v603, %v603
      %v606 = vsel %vm94, %v604, 0
      %608 = vmatpush.bf16.msra.mxu0 0
      %609 = vmatpush.bf16.msra.mxu0 0
      %610 = vmatpush.bf16.msra.mxu0 0
      %611 = vmatpush.bf16.msra.mxu0 0
      %612 = vmatpush.bf16.msra.mxu0 0
      %613 = vmatpush.bf16.msra.mxu0 0
      %614 = vmatpush.bf16.msra.mxu0 0
      %615 = vmatpush.bf16.msra.mxu0 %v73
      %616 = vmatmul.bf16.gmra.mxu0 %v606
      %v617 = vpop.f32.mrf.mxu0
      %v618 = vadd.f32 1e-16, %v617
      %v619 = vpop.f32.mrf.mxu0
      %620 = vdwg.mxu0
      %v621 = vrcp.pop %v618
      %v622 = vmul.f32 %v17, %v621
      %v623 = vpack.c.bf16 %v622, %v622
      %v625 = vsel %vm74, %v623, 0
      %627 = vmatpush.bf16.msra.mxu0 0
      %628 = vmatpush.bf16.msra.mxu0 0
      %629 = vmatpush.bf16.msra.mxu0 0
      %630 = vmatpush.bf16.msra.mxu0 0
      %631 = vmatpush.bf16.msra.mxu0 0
      %632 = vmatpush.bf16.msra.mxu0 0
      %633 = vmatpush.bf16.msra.mxu0 %v40
      %634 = vmatpush.bf16.msra.mxu0 %v39
      %635 = vmatmul.bf16.gmra.mxu0 %v625
      %v636 = vpop.f32.mrf.mxu0
      %v637 = vadd.f32 1e-16, %v636
      %v638 = vpop.f32.mrf.mxu0
      %639 = vdwg.mxu0
      %v640 = vrcp.pop %v637
      %v641 = vmul.f32 %v18, %v640
      %v642 = vpack.c.bf16 %v641, %v641
      %v644 = vsel %vm94, %v642, 0
      %646 = vmatpush.bf16.msra.mxu0 0
      %647 = vmatpush.bf16.msra.mxu0 0
      %648 = vmatpush.bf16.msra.mxu0 0
      %649 = vmatpush.bf16.msra.mxu0 0
      %650 = vmatpush.bf16.msra.mxu0 0
      %651 = vmatpush.bf16.msra.mxu0 0
      %652 = vmatpush.bf16.msra.mxu0 0
      %653 = vmatpush.bf16.msra.mxu0 %v73
      %654 = vmatmul.bf16.gmra.mxu0 %v644
      %v655 = vpop.f32.mrf.mxu0
      %v656 = vadd.f32 1e-16, %v655
      %v657 = vpop.f32.mrf.mxu0
      %658 = vdwg.mxu0
      %v659 = vrcp.pop %v656
      %v660 = vmul.f32 %v17, %v659
      %v661 = vpack.c.bf16 %v660, %v660
      %v663 = vsel %vm74, %v661, 0
      %665 = vmatpush.bf16.msra.mxu0 0
      %666 = vmatpush.bf16.msra.mxu0 0
      %667 = vmatpush.bf16.msra.mxu0 0
      %668 = vmatpush.bf16.msra.mxu0 0
      %669 = vmatpush.bf16.msra.mxu0 0
      %670 = vmatpush.bf16.msra.mxu0 0
      %671 = vmatpush.bf16.msra.mxu0 %v40
      %672 = vmatpush.bf16.msra.mxu0 %v39
      %673 = vmatmul.bf16.gmra.mxu0 %v663
      %v674 = vpop.f32.mrf.mxu0
      %v675 = vadd.f32 1e-16, %v674
      %v676 = vpop.f32.mrf.mxu0
      %677 = vdwg.mxu0
      %v678 = vrcp.pop %v675
      %v679 = vmul.f32 %v18, %v678
      %v680 = vpack.c.bf16 %v679, %v679
      %v682 = vsel %vm94, %v680, 0
      %684 = vmatpush.bf16.msra.mxu0 0
      %685 = vmatpush.bf16.msra.mxu0 0
      %686 = vmatpush.bf16.msra.mxu0 0
      %687 = vmatpush.bf16.msra.mxu0 0
      %688 = vmatpush.bf16.msra.mxu0 0
      %689 = vmatpush.bf16.msra.mxu0 0
      %690 = vmatpush.bf16.msra.mxu0 0
      %691 = vmatpush.bf16.msra.mxu0 %v73
      %692 = vmatmul.bf16.gmra.mxu0 %v682
      %v693 = vpop.f32.mrf.mxu0
      %v694 = vadd.f32 1e-16, %v693
      %v695 = vpop.f32.mrf.mxu0
      %696 = vdwg.mxu0
      %v697 = vrcp.pop %v694
      %v698 = vmul.f32 %v17, %v697
      %v699 = vpack.c.bf16 %v698, %v698
      %v701 = vsel %vm74, %v699, 0
      %703 = vmatpush.bf16.msra.mxu0 0
      %704 = vmatpush.bf16.msra.mxu0 0
      %705 = vmatpush.bf16.msra.mxu0 0
      %706 = vmatpush.bf16.msra.mxu0 0
      %707 = vmatpush.bf16.msra.mxu0 0
      %708 = vmatpush.bf16.msra.mxu0 0
      %709 = vmatpush.bf16.msra.mxu0 %v40
      %710 = vmatpush.bf16.msra.mxu0 %v39
      %711 = vmatmul.bf16.gmra.mxu0 %v701
      %v712 = vpop.f32.mrf.mxu0
      %v713 = vadd.f32 1e-16, %v712
      %v714 = vpop.f32.mrf.mxu0
      %715 = vdwg.mxu0
      %v716 = vrcp.pop %v713
      %v717 = vmul.f32 %v18, %v716
      %v718 = vpack.c.bf16 %v717, %v717
      %v720 = vsel %vm94, %v718, 0
      %722 = vmatpush.bf16.msra.mxu0 0
      %723 = vmatpush.bf16.msra.mxu0 0
      %724 = vmatpush.bf16.msra.mxu0 0
      %725 = vmatpush.bf16.msra.mxu0 0
      %726 = vmatpush.bf16.msra.mxu0 0
      %727 = vmatpush.bf16.msra.mxu0 0
      %728 = vmatpush.bf16.msra.mxu0 0
      %729 = vmatpush.bf16.msra.mxu0 %v73
      %730 = vmatmul.bf16.gmra.mxu0 %v720
      %v731 = vpop.f32.mrf.mxu0
      %v732 = vadd.f32 1e-16, %v731
      %v733 = vpop.f32.mrf.mxu0
      %734 = vdwg.mxu0
      %v735 = vrcp.pop %v732
      %v736 = vmul.f32 %v17, %v735
      %v737 = vpack.c.bf16 %v736, %v736
      %v739 = vsel %vm74, %v737, 0
      %741 = vmatpush.bf16.msra.mxu0 0
      %742 = vmatpush.bf16.msra.mxu0 0
      %743 = vmatpush.bf16.msra.mxu0 0
      %744 = vmatpush.bf16.msra.mxu0 0
      %745 = vmatpush.bf16.msra.mxu0 0
      %746 = vmatpush.bf16.msra.mxu0 0
      %747 = vmatpush.bf16.msra.mxu0 %v40
      %748 = vmatpush.bf16.msra.mxu0 %v39
      %749 = vmatmul.bf16.gmra.mxu0 %v739
      %v750 = vpop.f32.mrf.mxu0
      %v751 = vadd.f32 1e-16, %v750
      %v752 = vpop.f32.mrf.mxu0
      %753 = vdwg.mxu0
      %v754 = vrcp.pop %v751
      %v755 = vmul.f32 %v18, %v754
      %v756 = vpack.c.bf16 %v755, %v755
      %v758 = vsel %vm94, %v756, 0
      %760 = vmatpush.bf16.msra.mxu0 0
      %761 = vmatpush.bf16.msra.mxu0 0
      %762 = vmatpush.bf16.msra.mxu0 0
      %763 = vmatpush.bf16.msra.mxu0 0
      %764 = vmatpush.bf16.msra.mxu0 0
      %765 = vmatpush.bf16.msra.mxu0 0
      %766 = vmatpush.bf16.msra.mxu0 0
      %767 = vmatpush.bf16.msra.mxu0 %v73
      %768 = vmatmul.bf16.gmra.mxu0 %v758
      %v769 = vpop.f32.mrf.mxu0
      %v770 = vadd.f32 1e-16, %v769
      %v771 = vpop.f32.mrf.mxu0
      %772 = vdwg.mxu0
      %v773 = vrcp.pop %v770
      %v774 = vmul.f32 %v17, %v773
      %v775 = vpack.c.bf16 %v774, %v774
      %v777 = vsel %vm74, %v775, 0
      %779 = vmatpush.bf16.msra.mxu0 0
      %780 = vmatpush.bf16.msra.mxu0 0
      %781 = vmatpush.bf16.msra.mxu0 0
      %782 = vmatpush.bf16.msra.mxu0 0
      %783 = vmatpush.bf16.msra.mxu0 0
      %784 = vmatpush.bf16.msra.mxu0 0
      %785 = vmatpush.bf16.msra.mxu0 %v40
      %786 = vmatpush.bf16.msra.mxu0 %v39
      %787 = vmatmul.bf16.gmra.mxu0 %v777
      %v788 = vpop.f32.mrf.mxu0
      %v789 = vadd.f32 1e-16, %v788
      %v790 = vpop.f32.mrf.mxu0
      %791 = vdwg.mxu0
      %v792 = vrcp.pop %v789
      %v793 = vmul.f32 %v18, %v792
      %v794 = vpack.c.bf16 %v793, %v793
      %v796 = vsel %vm94, %v794, 0
      %798 = vmatpush.bf16.msra.mxu0 0
      %799 = vmatpush.bf16.msra.mxu0 0
      %800 = vmatpush.bf16.msra.mxu0 0
      %801 = vmatpush.bf16.msra.mxu0 0
      %802 = vmatpush.bf16.msra.mxu0 0
      %803 = vmatpush.bf16.msra.mxu0 0
      %804 = vmatpush.bf16.msra.mxu0 0
      %805 = vmatpush.bf16.msra.mxu0 %v73
      %806 = vmatmul.bf16.gmra.mxu0 %v796
      %v807 = vpop.f32.mrf.mxu0
      %v808 = vadd.f32 1e-16, %v807
      %v809 = vpop.f32.mrf.mxu0
      %810 = vdwg.mxu0
      %v811 = vrcp.pop %v808
      %v812 = vmul.f32 %v17, %v811
      %v813 = vpack.c.bf16 %v812, %v812
      %v815 = vsel %vm74, %v813, 0
      %817 = vmatpush.bf16.msra.mxu0 0
      %818 = vmatpush.bf16.msra.mxu0 0
      %819 = vmatpush.bf16.msra.mxu0 0
      %820 = vmatpush.bf16.msra.mxu0 0
      %821 = vmatpush.bf16.msra.mxu0 0
      %822 = vmatpush.bf16.msra.mxu0 0
      %823 = vmatpush.bf16.msra.mxu0 %v40
      %824 = vmatpush.bf16.msra.mxu0 %v39
      %825 = vmatmul.bf16.gmra.mxu0 %v815
      %v826 = vpop.f32.mrf.mxu0
      %v827 = vadd.f32 1e-16, %v826
      %v828 = vpop.f32.mrf.mxu0
      %829 = vdwg.mxu0
      %v830 = vrcp.pop %v827
      %v831 = vmul.f32 %v18, %v830
      %v832 = vpack.c.bf16 %v831, %v831
      %v834 = vsel %vm94, %v832, 0
      %836 = vmatpush.bf16.msra.mxu0 0
      %837 = vmatpush.bf16.msra.mxu0 0
      %838 = vmatpush.bf16.msra.mxu0 0
      %839 = vmatpush.bf16.msra.mxu0 0
      %840 = vmatpush.bf16.msra.mxu0 0
      %841 = vmatpush.bf16.msra.mxu0 0
      %842 = vmatpush.bf16.msra.mxu0 0
      %843 = vmatpush.bf16.msra.mxu0 %v73
      %844 = vmatmul.bf16.gmra.mxu0 %v834
      %v845 = vpop.f32.mrf.mxu0
      %v846 = vadd.f32 1e-16, %v845
      %v847 = vpop.f32.mrf.mxu0
      %848 = vdwg.mxu0
      %v849 = vrcp.pop %v846
      %v850 = vmul.f32 %v17, %v849
      %v851 = vpack.c.bf16 %v850, %v850
      %v853 = vsel %vm74, %v851, 0
      %855 = vmatpush.bf16.msra.mxu0 0
      %856 = vmatpush.bf16.msra.mxu0 0
      %857 = vmatpush.bf16.msra.mxu0 0
      %858 = vmatpush.bf16.msra.mxu0 0
      %859 = vmatpush.bf16.msra.mxu0 0
      %860 = vmatpush.bf16.msra.mxu0 0
      %861 = vmatpush.bf16.msra.mxu0 %v40
      %862 = vmatpush.bf16.msra.mxu0 %v39
      %863 = vmatmul.bf16.gmra.mxu0 %v853
      %v864 = vpop.f32.mrf.mxu0
      %v865 = vadd.f32 1e-16, %v864
      %v866 = vpop.f32.mrf.mxu0
      %867 = vdwg.mxu0
      %v868 = vrcp.pop %v865
      %v869 = vmul.f32 %v18, %v868
      %v870 = vpack.c.bf16 %v869, %v869
      %v872 = vsel %vm94, %v870, 0
      %874 = vmatpush.bf16.msra.mxu0 0
      %875 = vmatpush.bf16.msra.mxu0 0
      %876 = vmatpush.bf16.msra.mxu0 0
      %877 = vmatpush.bf16.msra.mxu0 0
      %878 = vmatpush.bf16.msra.mxu0 0
      %879 = vmatpush.bf16.msra.mxu0 0
      %880 = vmatpush.bf16.msra.mxu0 0
      %881 = vmatpush.bf16.msra.mxu0 %v73
      %882 = vmatmul.bf16.gmra.mxu0 %v872
      %v883 = vpop.f32.mrf.mxu0
      %v884 = vadd.f32 1e-16, %v883
      %v885 = vpop.f32.mrf.mxu0
      %886 = vdwg.mxu0
      %v887 = vrcp.pop %v884
      %v888 = vmul.f32 %v17, %v887
      %v889 = vpack.c.bf16 %v888, %v888
      %v891 = vsel %vm74, %v889, 0
      %893 = vmatpush.bf16.msra.mxu0 0
      %894 = vmatpush.bf16.msra.mxu0 0
      %895 = vmatpush.bf16.msra.mxu0 0
      %896 = vmatpush.bf16.msra.mxu0 0
      %897 = vmatpush.bf16.msra.mxu0 0
      %898 = vmatpush.bf16.msra.mxu0 0
      %899 = vmatpush.bf16.msra.mxu0 %v40
      %900 = vmatpush.bf16.msra.mxu0 %v39
      %901 = vmatmul.bf16.gmra.mxu0 %v891
      %v902 = vpop.f32.mrf.mxu0
      %v903 = vadd.f32 1e-16, %v902
      %v904 = vpop.f32.mrf.mxu0
      %905 = vdwg.mxu0
      %v906 = vrcp.pop %v903
      %v907 = vmul.f32 %v18, %v906
      %v908 = vpack.c.bf16 %v907, %v907
      %v910 = vsel %vm94, %v908, 0
      %912 = vmatpush.bf16.msra.mxu0 0
      %913 = vmatpush.bf16.msra.mxu0 0
      %914 = vmatpush.bf16.msra.mxu0 0
      %915 = vmatpush.bf16.msra.mxu0 0
      %916 = vmatpush.bf16.msra.mxu0 0
      %917 = vmatpush.bf16.msra.mxu0 0
      %918 = vmatpush.bf16.msra.mxu0 0
      %919 = vmatpush.bf16.msra.mxu0 %v73
      %920 = vmatmul.bf16.gmra.mxu0 %v910
      %v921 = vpop.f32.mrf.mxu0
      %v922 = vadd.f32 1e-16, %v921
      %v923 = vpop.f32.mrf.mxu0
      %924 = vdwg.mxu0
      %v925 = vrcp.pop %v922
      %v926 = vmul.f32 %v17, %v925
      %v927 = vpack.c.bf16 %v926, %v926
      %v929 = vsel %vm74, %v927, 0
      %931 = vmatpush.bf16.msra.mxu0 0
      %932 = vmatpush.bf16.msra.mxu0 0
      %933 = vmatpush.bf16.msra.mxu0 0
      %934 = vmatpush.bf16.msra.mxu0 0
      %935 = vmatpush.bf16.msra.mxu0 0
      %936 = vmatpush.bf16.msra.mxu0 0
      %937 = vmatpush.bf16.msra.mxu0 %v40
      %938 = vmatpush.bf16.msra.mxu0 %v39
      %939 = vmatmul.bf16.gmra.mxu0 %v929
      %v940 = vpop.f32.mrf.mxu0
      %v941 = vadd.f32 1e-16, %v940
      %v942 = vpop.f32.mrf.mxu0
      %943 = vdwg.mxu0
      %v944 = vrcp.pop %v941
      %v945 = vmul.f32 %v18, %v944
      %v946 = vpack.c.bf16 %v945, %v945
      %v948 = vsel %vm94, %v946, 0
      %950 = vmatpush.bf16.msra.mxu0 0
      %951 = vmatpush.bf16.msra.mxu0 0
      %952 = vmatpush.bf16.msra.mxu0 0
      %953 = vmatpush.bf16.msra.mxu0 0
      %954 = vmatpush.bf16.msra.mxu0 0
      %955 = vmatpush.bf16.msra.mxu0 0
      %956 = vmatpush.bf16.msra.mxu0 0
      %957 = vmatpush.bf16.msra.mxu0 %v73
      %958 = vmatmul.bf16.gmra.mxu0 %v948
      %v959 = vpop.f32.mrf.mxu0
      %v960 = vadd.f32 1e-16, %v959
      %v961 = vpop.f32.mrf.mxu0
      %962 = vdwg.mxu0
      %v963 = vrcp.pop %v960
      %v964 = vmul.f32 %v17, %v963
      %v965 = vpack.c.bf16 %v964, %v964
      %v967 = vsel %vm74, %v965, 0
      %969 = vmatpush.bf16.msra.mxu0 0
      %970 = vmatpush.bf16.msra.mxu0 0
      %971 = vmatpush.bf16.msra.mxu0 0
      %972 = vmatpush.bf16.msra.mxu0 0
      %973 = vmatpush.bf16.msra.mxu0 0
      %974 = vmatpush.bf16.msra.mxu0 0
      %975 = vmatpush.bf16.msra.mxu0 %v40
      %976 = vmatpush.bf16.msra.mxu0 %v39
      %977 = vmatmul.bf16.gmra.mxu0 %v967
      %v978 = vpop.f32.mrf.mxu0
      %v979 = vadd.f32 1e-16, %v978
      %v980 = vpop.f32.mrf.mxu0
      %981 = vdwg.mxu0
      %v982 = vrcp.pop %v979
      %v983 = vmul.f32 %v18, %v982
      %v984 = vpack.c.bf16 %v983, %v983
      %v986 = vsel %vm94, %v984, 0
      %988 = vmatpush.bf16.msra.mxu0 0
      %989 = vmatpush.bf16.msra.mxu0 0
      %990 = vmatpush.bf16.msra.mxu0 0
      %991 = vmatpush.bf16.msra.mxu0 0
      %992 = vmatpush.bf16.msra.mxu0 0
      %993 = vmatpush.bf16.msra.mxu0 0
      %994 = vmatpush.bf16.msra.mxu0 0
      %995 = vmatpush.bf16.msra.mxu0 %v73
      %996 = vmatmul.bf16.gmra.mxu0 %v986
      %v997 = vpop.f32.mrf.mxu0
      %v998 = vadd.f32 1e-16, %v997
      %v999 = vpop.f32.mrf.mxu0
      %1000 = vdwg.mxu0
      %v1001 = vrcp.pop %v998
      %v1002 = vmul.f32 %v17, %v1001
      %v1003 = vpack.c.bf16 %v1002, %v1002
      %v1005 = vsel %vm74, %v1003, 0
      %1007 = vmatpush.bf16.msra.mxu0 0
      %1008 = vmatpush.bf16.msra.mxu0 0
      %1009 = vmatpush.bf16.msra.mxu0 0
      %1010 = vmatpush.bf16.msra.mxu0 0
      %1011 = vmatpush.bf16.msra.mxu0 0
      %1012 = vmatpush.bf16.msra.mxu0 0
      %1013 = vmatpush.bf16.msra.mxu0 %v40
      %1014 = vmatpush.bf16.msra.mxu0 %v39
      %1015 = vmatmul.bf16.gmra.mxu0 %v1005
      %v1016 = vpop.f32.mrf.mxu0
      %v1017 = vadd.f32 1e-16, %v1016
      %v1018 = vpop.f32.mrf.mxu0
      %1019 = vdwg.mxu0
      %v1020 = vrcp.pop %v1017
      %v1021 = vmul.f32 %v18, %v1020
      %v1022 = vpack.c.bf16 %v1021, %v1021
      %v1024 = vsel %vm94, %v1022, 0
      %1026 = vmatpush.bf16.msra.mxu0 0
      %1027 = vmatpush.bf16.msra.mxu0 0
      %1028 = vmatpush.bf16.msra.mxu0 0
      %1029 = vmatpush.bf16.msra.mxu0 0
      %1030 = vmatpush.bf16.msra.mxu0 0
      %1031 = vmatpush.bf16.msra.mxu0 0
      %1032 = vmatpush.bf16.msra.mxu0 0
      %1033 = vmatpush.bf16.msra.mxu0 %v73
      %1034 = vmatmul.bf16.gmra.mxu0 %v1024
      %v1035 = vpop.f32.mrf.mxu0
      %v1036 = vadd.f32 1e-16, %v1035
      %v1037 = vpop.f32.mrf.mxu0
      %1038 = vdwg.mxu0
      %v1039 = vrcp.pop %v1036
      %v1040 = vmul.f32 %v17, %v1039
      %v1041 = vpack.c.bf16 %v1040, %v1040
      %v1043 = vsel %vm74, %v1041, 0
      %1045 = vmatpush.bf16.msra.mxu0 0
      %1046 = vmatpush.bf16.msra.mxu0 0
      %1047 = vmatpush.bf16.msra.mxu0 0
      %1048 = vmatpush.bf16.msra.mxu0 0
      %1049 = vmatpush.bf16.msra.mxu0 0
      %1050 = vmatpush.bf16.msra.mxu0 0
      %1051 = vmatpush.bf16.msra.mxu0 %v40
      %1052 = vmatpush.bf16.msra.mxu0 %v39
      %1053 = vmatmul.bf16.gmra.mxu0 %v1043
      %v1054 = vpop.f32.mrf.mxu0
      %v1055 = vadd.f32 1e-16, %v1054
      %v1056 = vpop.f32.mrf.mxu0
      %1057 = vdwg.mxu0
      %v1058 = vrcp.pop %v1055
      %v1059 = vmul.f32 %v18, %v1058
      %v1060 = vpack.c.bf16 %v1059, %v1059
      %v1062 = vsel %vm94, %v1060, 0
      %1064 = vmatpush.bf16.msra.mxu0 0
      %1065 = vmatpush.bf16.msra.mxu0 0
      %1066 = vmatpush.bf16.msra.mxu0 0
      %1067 = vmatpush.bf16.msra.mxu0 0
      %1068 = vmatpush.bf16.msra.mxu0 0
      %1069 = vmatpush.bf16.msra.mxu0 0
      %1070 = vmatpush.bf16.msra.mxu0 0
      %1071 = vmatpush.bf16.msra.mxu0 %v73
      %1072 = vmatmul.bf16.gmra.mxu0 %v1062
      %v1073 = vpop.f32.mrf.mxu0
      %v1074 = vadd.f32 1e-16, %v1073
      %v1075 = vpop.f32.mrf.mxu0
      %1076 = vdwg.mxu0
      %v1077 = vrcp.pop %v1074
      %v1078 = vmul.f32 %v17, %v1077
      %v1079 = vpack.c.bf16 %v1078, %v1078
      %v1081 = vsel %vm74, %v1079, 0
      %1083 = vmatpush.bf16.msra.mxu0 0
      %1084 = vmatpush.bf16.msra.mxu0 0
      %1085 = vmatpush.bf16.msra.mxu0 0
      %1086 = vmatpush.bf16.msra.mxu0 0
      %1087 = vmatpush.bf16.msra.mxu0 0
      %1088 = vmatpush.bf16.msra.mxu0 0
      %1089 = vmatpush.bf16.msra.mxu0 %v40
      %1090 = vmatpush.bf16.msra.mxu0 %v39
      %1091 = vmatmul.bf16.gmra.mxu0 %v1081
      %v1092 = vpop.f32.mrf.mxu0
      %v1093 = vadd.f32 1e-16, %v1092
      %v1094 = vpop.f32.mrf.mxu0
      %1095 = vdwg.mxu0
      %v1096 = vrcp.pop %v1093
      %v1097 = vmul.f32 %v18, %v1096
      %v1098 = vpack.c.bf16 %v1097, %v1097
      %v1100 = vsel %vm94, %v1098, 0
      %1102 = vmatpush.bf16.msra.mxu0 0
      %1103 = vmatpush.bf16.msra.mxu0 0
      %1104 = vmatpush.bf16.msra.mxu0 0
      %1105 = vmatpush.bf16.msra.mxu0 0
      %1106 = vmatpush.bf16.msra.mxu0 0
      %1107 = vmatpush.bf16.msra.mxu0 0
      %1108 = vmatpush.bf16.msra.mxu0 0
      %1109 = vmatpush.bf16.msra.mxu0 %v73
      %1110 = vmatmul.bf16.gmra.mxu0 %v1100
      %v1111 = vpop.f32.mrf.mxu0
      %v1112 = vadd.f32 1e-16, %v1111
      %v1113 = vpop.f32.mrf.mxu0
      %1114 = vdwg.mxu0
      %v1115 = vrcp.pop %v1112
      %v1116 = vmul.f32 %v17, %v1115
      %v1117 = vpack.c.bf16 %v1116, %v1116
      %v1119 = vsel %vm74, %v1117, 0
      %1121 = vmatpush.bf16.msra.mxu0 0
      %1122 = vmatpush.bf16.msra.mxu0 0
      %1123 = vmatpush.bf16.msra.mxu0 0
      %1124 = vmatpush.bf16.msra.mxu0 0
      %1125 = vmatpush.bf16.msra.mxu0 0
      %1126 = vmatpush.bf16.msra.mxu0 0
      %1127 = vmatpush.bf16.msra.mxu0 %v40
      %1128 = vmatpush.bf16.msra.mxu0 %v39
      %1129 = vmatmul.bf16.gmra.mxu0 %v1119
      %v1130 = vpop.f32.mrf.mxu0
      %v1131 = vadd.f32 1e-16, %v1130
      %v1132 = vpop.f32.mrf.mxu0
      %1133 = vdwg.mxu0
      %v1134 = vrcp.pop %v1131
      %v1135 = vmul.f32 %v18, %v1134
      %v1136 = vpack.c.bf16 %v1135, %v1135
      %v1138 = vsel %vm94, %v1136, 0
      %1140 = vmatpush.bf16.msra.mxu0 0
      %1141 = vmatpush.bf16.msra.mxu0 0
      %1142 = vmatpush.bf16.msra.mxu0 0
      %1143 = vmatpush.bf16.msra.mxu0 0
      %1144 = vmatpush.bf16.msra.mxu0 0
      %1145 = vmatpush.bf16.msra.mxu0 0
      %1146 = vmatpush.bf16.msra.mxu0 0
      %1147 = vmatpush.bf16.msra.mxu0 %v73
      %1148 = vmatmul.bf16.gmra.mxu0 %v1138
      %v1149 = vpop.f32.mrf.mxu0
      %v1150 = vadd.f32 1e-16, %v1149
      %v1151 = vpop.f32.mrf.mxu0
      %1152 = vdwg.mxu0
      %v1153 = vrcp.pop %v1150
      %v1154 = vmul.f32 %v17, %v1153
      %v1155 = vpack.c.bf16 %v1154, %v1154
      %v1157 = vsel %vm74, %v1155, 0
      %1159 = vmatpush.bf16.msra.mxu0 0
      %1160 = vmatpush.bf16.msra.mxu0 0
      %1161 = vmatpush.bf16.msra.mxu0 0
      %1162 = vmatpush.bf16.msra.mxu0 0
      %1163 = vmatpush.bf16.msra.mxu0 0
      %1164 = vmatpush.bf16.msra.mxu0 0
      %1165 = vmatpush.bf16.msra.mxu0 %v40
      %1166 = vmatpush.bf16.msra.mxu0 %v39
      %1167 = vmatmul.bf16.gmra.mxu0 %v1157
      %v1168 = vpop.f32.mrf.mxu0
      %v1169 = vadd.f32 1e-16, %v1168
      %v1170 = vpop.f32.mrf.mxu0
      %1171 = vdwg.mxu0
      %v1172 = vrcp.pop %v1169
      %v1173 = vmul.f32 %v18, %v1172
      %v1174 = vpack.c.bf16 %v1173, %v1173
      %v1176 = vsel %vm94, %v1174, 0
      %1178 = vmatpush.bf16.msra.mxu0 0
      %1179 = vmatpush.bf16.msra.mxu0 0
      %1180 = vmatpush.bf16.msra.mxu0 0
      %1181 = vmatpush.bf16.msra.mxu0 0
      %1182 = vmatpush.bf16.msra.mxu0 0
      %1183 = vmatpush.bf16.msra.mxu0 0
      %1184 = vmatpush.bf16.msra.mxu0 0
      %1185 = vmatpush.bf16.msra.mxu0 %v73
      %1186 = vmatmul.bf16.gmra.mxu0 %v1176
      %v1187 = vpop.f32.mrf.mxu0
      %v1188 = vadd.f32 1e-16, %v1187
      %v1189 = vpop.f32.mrf.mxu0
      %1190 = vdwg.mxu0
      %v1191 = vrcp.pop %v1188
      %v1192 = vmul.f32 %v17, %v1191
      %v1193 = vpack.c.bf16 %v1192, %v1192
      %v1195 = vsel %vm74, %v1193, 0
      %1197 = vmatpush.bf16.msra.mxu0 0
      %1198 = vmatpush.bf16.msra.mxu0 0
      %1199 = vmatpush.bf16.msra.mxu0 0
      %1200 = vmatpush.bf16.msra.mxu0 0
      %1201 = vmatpush.bf16.msra.mxu0 0
      %1202 = vmatpush.bf16.msra.mxu0 0
      %1203 = vmatpush.bf16.msra.mxu0 %v40
      %1204 = vmatpush.bf16.msra.mxu0 %v39
      %1205 = vmatmul.bf16.gmra.mxu0 %v1195
      %v1206 = vpop.f32.mrf.mxu0
      %v1207 = vadd.f32 1e-16, %v1206
      %v1208 = vpop.f32.mrf.mxu0
      %1209 = vdwg.mxu0
      %v1210 = vrcp.pop %v1207
      %v1211 = vmul.f32 %v18, %v1210
      %v1212 = vpack.c.bf16 %v1211, %v1211
      %v1214 = vsel %vm94, %v1212, 0
      %1216 = vmatpush.bf16.msra.mxu0 0
      %1217 = vmatpush.bf16.msra.mxu0 0
      %1218 = vmatpush.bf16.msra.mxu0 0
      %1219 = vmatpush.bf16.msra.mxu0 0
      %1220 = vmatpush.bf16.msra.mxu0 0
      %1221 = vmatpush.bf16.msra.mxu0 0
      %1222 = vmatpush.bf16.msra.mxu0 0
      %1223 = vmatpush.bf16.msra.mxu0 %v73
      %1224 = vmatmul.bf16.gmra.mxu0 %v1214
      %v1225 = vpop.f32.mrf.mxu0
      %v1226 = vadd.f32 1e-16, %v1225
      %v1227 = vpop.f32.mrf.mxu0
      %1228 = vdwg.mxu0
      %v1229 = vrcp.pop %v1226
      %v1230 = vmul.f32 %v17, %v1229
      %v1231 = vpack.c.bf16 %v1230, %v1230
      %v1233 = vsel %vm74, %v1231, 0
      %1235 = vmatpush.bf16.msra.mxu0 0
      %1236 = vmatpush.bf16.msra.mxu0 0
      %1237 = vmatpush.bf16.msra.mxu0 0
      %1238 = vmatpush.bf16.msra.mxu0 0
      %1239 = vmatpush.bf16.msra.mxu0 0
      %1240 = vmatpush.bf16.msra.mxu0 0
      %1241 = vmatpush.bf16.msra.mxu0 %v40
      %1242 = vmatpush.bf16.msra.mxu0 %v39
      %1243 = vmatmul.bf16.gmra.mxu0 %v1233
      %v1244 = vpop.f32.mrf.mxu0
      %v1245 = vadd.f32 1e-16, %v1244
      %v1246 = vpop.f32.mrf.mxu0
      %1247 = vdwg.mxu0
      %v1248 = vrcp.pop %v1245
      %v1249 = vmul.f32 %v18, %v1248
      %v1250 = vpack.c.bf16 %v1249, %v1249
      %v1252 = vsel %vm94, %v1250, 0
      %1254 = vmatpush.bf16.msra.mxu0 0
      %1255 = vmatpush.bf16.msra.mxu0 0
      %1256 = vmatpush.bf16.msra.mxu0 0
      %1257 = vmatpush.bf16.msra.mxu0 0
      %1258 = vmatpush.bf16.msra.mxu0 0
      %1259 = vmatpush.bf16.msra.mxu0 0
      %1260 = vmatpush.bf16.msra.mxu0 0
      %1261 = vmatpush.bf16.msra.mxu0 %v73
      %1262 = vmatmul.bf16.gmra.mxu0 %v1252
      %v1263 = vpop.f32.mrf.mxu0
      %v1264 = vadd.f32 1e-16, %v1263
      %v1265 = vpop.f32.mrf.mxu0
      %1266 = vdwg.mxu0
      %v1267 = vrcp.pop %v1264
      %v1268 = vmul.f32 %v17, %v1267
      %v1269 = vpack.c.bf16 %v1268, %v1268
      %v1271 = vsel %vm74, %v1269, 0
      %1273 = vmatpush.bf16.msra.mxu0 0
      %1274 = vmatpush.bf16.msra.mxu0 0
      %1275 = vmatpush.bf16.msra.mxu0 0
      %1276 = vmatpush.bf16.msra.mxu0 0
      %1277 = vmatpush.bf16.msra.mxu0 0
      %1278 = vmatpush.bf16.msra.mxu0 0
      %1279 = vmatpush.bf16.msra.mxu0 %v40
      %1280 = vmatpush.bf16.msra.mxu0 %v39
      %1281 = vmatmul.bf16.gmra.mxu0 %v1271
      %v1282 = vpop.f32.mrf.mxu0
      %v1283 = vadd.f32 1e-16, %v1282
      %v1284 = vpop.f32.mrf.mxu0
      %1285 = vdwg.mxu0
      %v1286 = vrcp.pop %v1283
      %v1287 = vmul.f32 %v18, %v1286
      %v1288 = vpack.c.bf16 %v1287, %v1287
      %v1290 = vsel %vm94, %v1288, 0
      %1292 = vmatpush.bf16.msra.mxu0 0
      %1293 = vmatpush.bf16.msra.mxu0 0
      %1294 = vmatpush.bf16.msra.mxu0 0
      %1295 = vmatpush.bf16.msra.mxu0 0
      %1296 = vmatpush.bf16.msra.mxu0 0
      %1297 = vmatpush.bf16.msra.mxu0 0
      %1298 = vmatpush.bf16.msra.mxu0 0
      %1299 = vmatpush.bf16.msra.mxu0 %v73
      %1300 = vmatmul.bf16.gmra.mxu0 %v1290
      %v1301 = vpop.f32.mrf.mxu0
      %v1302 = vadd.f32 1e-16, %v1301
      %v1303 = vpop.f32.mrf.mxu0
      %1304 = vdwg.mxu0
      %v1305 = vrcp.pop %v1302
      %v1306 = vmul.f32 %v17, %v1305
      %v1307 = vpack.c.bf16 %v1306, %v1306
      %v1309 = vsel %vm74, %v1307, 0
      %1311 = vmatpush.bf16.msra.mxu0 0
      %1312 = vmatpush.bf16.msra.mxu0 0
      %1313 = vmatpush.bf16.msra.mxu0 0
      %1314 = vmatpush.bf16.msra.mxu0 0
      %1315 = vmatpush.bf16.msra.mxu0 0
      %1316 = vmatpush.bf16.msra.mxu0 0
      %1317 = vmatpush.bf16.msra.mxu0 %v40
      %1318 = vmatpush.bf16.msra.mxu0 %v39
      %1319 = vmatmul.bf16.gmra.mxu0 %v1309
      %v1320 = vpop.f32.mrf.mxu0
      %v1321 = vadd.f32 1e-16, %v1320
      %v1322 = vpop.f32.mrf.mxu0
      %1323 = vdwg.mxu0
      %v1324 = vrcp.pop %v1321
      %v1325 = vmul.f32 %v18, %v1324
      %v1326 = vpack.c.bf16 %v1325, %v1325
      %v1328 = vsel %vm94, %v1326, 0
      %1330 = vmatpush.bf16.msra.mxu0 0
      %1331 = vmatpush.bf16.msra.mxu0 0
      %1332 = vmatpush.bf16.msra.mxu0 0
      %1333 = vmatpush.bf16.msra.mxu0 0
      %1334 = vmatpush.bf16.msra.mxu0 0
      %1335 = vmatpush.bf16.msra.mxu0 0
      %1336 = vmatpush.bf16.msra.mxu0 0
      %1337 = vmatpush.bf16.msra.mxu0 %v73
      %1338 = vmatmul.bf16.gmra.mxu0 %v1328
      %v1339 = vpop.f32.mrf.mxu0
      %v1340 = vadd.f32 1e-16, %v1339
      %v1341 = vpop.f32.mrf.mxu0
      %1342 = vdwg.mxu0
      %v1343 = vrcp.pop %v1340
      %v1344 = vmul.f32 %v17, %v1343
      %v1345 = vpack.c.bf16 %v1344, %v1344
      %v1347 = vsel %vm74, %v1345, 0
      %1349 = vmatpush.bf16.msra.mxu0 0
      %1350 = vmatpush.bf16.msra.mxu0 0
      %1351 = vmatpush.bf16.msra.mxu0 0
      %1352 = vmatpush.bf16.msra.mxu0 0
      %1353 = vmatpush.bf16.msra.mxu0 0
      %1354 = vmatpush.bf16.msra.mxu0 0
      %1355 = vmatpush.bf16.msra.mxu0 %v40
      %1356 = vmatpush.bf16.msra.mxu0 %v39
      %1357 = vmatmul.bf16.gmra.mxu0 %v1347
      %v1358 = vpop.f32.mrf.mxu0
      %v1359 = vadd.f32 1e-16, %v1358
      %v1360 = vpop.f32.mrf.mxu0
      %1361 = vdwg.mxu0
      %v1362 = vrcp.pop %v1359
      %v1363 = vmul.f32 %v18, %v1362
      %v1364 = vpack.c.bf16 %v1363, %v1363
      %v1366 = vsel %vm94, %v1364, 0
      %1368 = vmatpush.bf16.msra.mxu0 0
      %1369 = vmatpush.bf16.msra.mxu0 0
      %1370 = vmatpush.bf16.msra.mxu0 0
      %1371 = vmatpush.bf16.msra.mxu0 0
      %1372 = vmatpush.bf16.msra.mxu0 0
      %1373 = vmatpush.bf16.msra.mxu0 0
      %1374 = vmatpush.bf16.msra.mxu0 0
      %1375 = vmatpush.bf16.msra.mxu0 %v73
      %1376 = vmatmul.bf16.gmra.mxu0 %v1366
      %v1377 = vpop.f32.mrf.mxu0
      %v1378 = vadd.f32 1e-16, %v1377
      %v1379 = vpop.f32.mrf.mxu0
      %1380 = vdwg.mxu0
      %v1381 = vrcp.pop %v1378
      %v1382 = vmul.f32 %v17, %v1381
      %v1383 = vpack.c.bf16 %v1382, %v1382
      %v1385 = vsel %vm74, %v1383, 0
      %1387 = vmatpush.bf16.msra.mxu0 0
      %1388 = vmatpush.bf16.msra.mxu0 0
      %1389 = vmatpush.bf16.msra.mxu0 0
      %1390 = vmatpush.bf16.msra.mxu0 0
      %1391 = vmatpush.bf16.msra.mxu0 0
      %1392 = vmatpush.bf16.msra.mxu0 0
      %1393 = vmatpush.bf16.msra.mxu0 %v40
      %1394 = vmatpush.bf16.msra.mxu0 %v39
      %1395 = vmatmul.bf16.gmra.mxu0 %v1385
      %v1396 = vpop.f32.mrf.mxu0
      %v1397 = vadd.f32 1e-16, %v1396
      %v1398 = vpop.f32.mrf.mxu0
      %1399 = vdwg.mxu0
      %v1400 = vrcp.pop %v1397
      %v1401 = vmul.f32 %v18, %v1400
      %v1402 = vpack.c.bf16 %v1401, %v1401
      %v1404 = vsel %vm94, %v1402, 0
      %1406 = vmatpush.bf16.msra.mxu0 0
      %1407 = vmatpush.bf16.msra.mxu0 0
      %1408 = vmatpush.bf16.msra.mxu0 0
      %1409 = vmatpush.bf16.msra.mxu0 0
      %1410 = vmatpush.bf16.msra.mxu0 0
      %1411 = vmatpush.bf16.msra.mxu0 0
      %1412 = vmatpush.bf16.msra.mxu0 0
      %1413 = vmatpush.bf16.msra.mxu0 %v73
      %1414 = vmatmul.bf16.gmra.mxu0 %v1404
      %v1415 = vpop.f32.mrf.mxu0
      %v1416 = vadd.f32 1e-16, %v1415
      %v1417 = vpop.f32.mrf.mxu0
      %1418 = vdwg.mxu0
      %v1419 = vrcp.pop %v1416
      %v1420 = vmul.f32 %v17, %v1419
      %v1421 = vpack.c.bf16 %v1420, %v1420
      %v1423 = vsel %vm74, %v1421, 0
      %1425 = vmatpush.bf16.msra.mxu0 0
      %1426 = vmatpush.bf16.msra.mxu0 0
      %1427 = vmatpush.bf16.msra.mxu0 0
      %1428 = vmatpush.bf16.msra.mxu0 0
      %1429 = vmatpush.bf16.msra.mxu0 0
      %1430 = vmatpush.bf16.msra.mxu0 0
      %1431 = vmatpush.bf16.msra.mxu0 %v40
      %1432 = vmatpush.bf16.msra.mxu0 %v39
      %1433 = vmatmul.bf16.gmra.mxu0 %v1423
      %v1434 = vpop.f32.mrf.mxu0
      %v1435 = vadd.f32 1e-16, %v1434
      %v1436 = vpop.f32.mrf.mxu0
      %1437 = vdwg.mxu0
      %v1438 = vrcp.pop %v1435
      %v1439 = vmul.f32 %v18, %v1438
      %v1440 = vpack.c.bf16 %v1439, %v1439
      %v1442 = vsel %vm94, %v1440, 0
      %1444 = vmatpush.bf16.msra.mxu0 0
      %1445 = vmatpush.bf16.msra.mxu0 0
      %1446 = vmatpush.bf16.msra.mxu0 0
      %1447 = vmatpush.bf16.msra.mxu0 0
      %1448 = vmatpush.bf16.msra.mxu0 0
      %1449 = vmatpush.bf16.msra.mxu0 0
      %1450 = vmatpush.bf16.msra.mxu0 0
      %1451 = vmatpush.bf16.msra.mxu0 %v73
      %1452 = vmatmul.bf16.gmra.mxu0 %v1442
      %v1453 = vpop.f32.mrf.mxu0
      %v1454 = vadd.f32 1e-16, %v1453
      %v1455 = vpop.f32.mrf.mxu0
      %1456 = vdwg.mxu0
      %v1457 = vrcp.pop %v1454
      %v1458 = vmul.f32 %v17, %v1457
      %v1459 = vpack.c.bf16 %v1458, %v1458
      %v1461 = vsel %vm74, %v1459, 0
      %1463 = vmatpush.bf16.msra.mxu0 0
      %1464 = vmatpush.bf16.msra.mxu0 0
      %1465 = vmatpush.bf16.msra.mxu0 0
      %1466 = vmatpush.bf16.msra.mxu0 0
      %1467 = vmatpush.bf16.msra.mxu0 0
      %1468 = vmatpush.bf16.msra.mxu0 0
      %1469 = vmatpush.bf16.msra.mxu0 %v40
      %1470 = vmatpush.bf16.msra.mxu0 %v39
      %1471 = vmatmul.bf16.gmra.mxu0 %v1461
      %v1472 = vpop.f32.mrf.mxu0
      %v1473 = vadd.f32 1e-16, %v1472
      %v1474 = vpop.f32.mrf.mxu0
      %1475 = vdwg.mxu0
      %v1476 = vrcp.pop %v1473
      %v1477 = vmul.f32 %v18, %v1476
      %v1478 = vpack.c.bf16 %v1477, %v1477
      %v1480 = vsel %vm94, %v1478, 0
      %1482 = vmatpush.bf16.msra.mxu0 0
      %1483 = vmatpush.bf16.msra.mxu0 0
      %1484 = vmatpush.bf16.msra.mxu0 0
      %1485 = vmatpush.bf16.msra.mxu0 0
      %1486 = vmatpush.bf16.msra.mxu0 0
      %1487 = vmatpush.bf16.msra.mxu0 0
      %1488 = vmatpush.bf16.msra.mxu0 0
      %1489 = vmatpush.bf16.msra.mxu0 %v73
      %1490 = vmatmul.bf16.gmra.mxu0 %v1480
      %v1491 = vpop.f32.mrf.mxu0
      %v1492 = vadd.f32 1e-16, %v1491
      %v1493 = vpop.f32.mrf.mxu0
      %1494 = vdwg.mxu0
      %v1495 = vrcp.pop %v1492
      %v1496 = vmul.f32 %v17, %v1495
      %v1497 = vpack.c.bf16 %v1496, %v1496
      %v1499 = vsel %vm74, %v1497, 0
      %1501 = vmatpush.bf16.msra.mxu0 0
      %1502 = vmatpush.bf16.msra.mxu0 0
      %1503 = vmatpush.bf16.msra.mxu0 0
      %1504 = vmatpush.bf16.msra.mxu0 0
      %1505 = vmatpush.bf16.msra.mxu0 0
      %1506 = vmatpush.bf16.msra.mxu0 0
      %1507 = vmatpush.bf16.msra.mxu0 %v40
      %1508 = vmatpush.bf16.msra.mxu0 %v39
      %1509 = vmatmul.bf16.gmra.mxu0 %v1499
      %v1510 = vpop.f32.mrf.mxu0
      %v1511 = vadd.f32 1e-16, %v1510
      %v1512 = vpop.f32.mrf.mxu0
      %1513 = vdwg.mxu0
      %v1514 = vrcp.pop %v1511
      %v1515 = vmul.f32 %v18, %v1514
      %v1516 = vpack.c.bf16 %v1515, %v1515
      %v1518 = vsel %vm94, %v1516, 0
      %1520 = vmatpush.bf16.msra.mxu0 0
      %1521 = vmatpush.bf16.msra.mxu0 0
      %1522 = vmatpush.bf16.msra.mxu0 0
      %1523 = vmatpush.bf16.msra.mxu0 0
      %1524 = vmatpush.bf16.msra.mxu0 0
      %1525 = vmatpush.bf16.msra.mxu0 0
      %1526 = vmatpush.bf16.msra.mxu0 0
      %1527 = vmatpush.bf16.msra.mxu0 %v73
      %1528 = vmatmul.bf16.gmra.mxu0 %v1518
      %v1529 = vpop.f32.mrf.mxu0
      %v1530 = vadd.f32 1e-16, %v1529
      %v1531 = vpop.f32.mrf.mxu0
      %1532 = vdwg.mxu0
      %v1533 = vrcp.pop %v1530
      %v1534 = vmul.f32 %v17, %v1533
      %v1535 = vpack.c.bf16 %v1534, %v1534
      %v1537 = vsel %vm74, %v1535, 0
      %1539 = vmatpush.bf16.msra.mxu0 0
      %1540 = vmatpush.bf16.msra.mxu0 0
      %1541 = vmatpush.bf16.msra.mxu0 0
      %1542 = vmatpush.bf16.msra.mxu0 0
      %1543 = vmatpush.bf16.msra.mxu0 0
      %1544 = vmatpush.bf16.msra.mxu0 0
      %1545 = vmatpush.bf16.msra.mxu0 %v40
      %1546 = vmatpush.bf16.msra.mxu0 %v39
      %1547 = vmatmul.bf16.gmra.mxu0 %v1537
      %v1548 = vpop.f32.mrf.mxu0
      %v1549 = vadd.f32 1e-16, %v1548
      %v1550 = vpop.f32.mrf.mxu0
      %1551 = vdwg.mxu0
      %v1552 = vrcp.pop %v1549
      %v1553 = vmul.f32 %v18, %v1552
      %v1554 = vpack.c.bf16 %v1553, %v1553
      %v1556 = vsel %vm94, %v1554, 0
      %1558 = vmatpush.bf16.msra.mxu0 0
      %1559 = vmatpush.bf16.msra.mxu0 0
      %1560 = vmatpush.bf16.msra.mxu0 0
      %1561 = vmatpush.bf16.msra.mxu0 0
      %1562 = vmatpush.bf16.msra.mxu0 0
      %1563 = vmatpush.bf16.msra.mxu0 0
      %1564 = vmatpush.bf16.msra.mxu0 0
      %1565 = vmatpush.bf16.msra.mxu0 %v73
      %1566 = vmatmul.bf16.gmra.mxu0 %v1556
      %v1567 = vpop.f32.mrf.mxu0
      %v1568 = vadd.f32 1e-16, %v1567
      %v1569 = vpop.f32.mrf.mxu0
      %1570 = vdwg.mxu0
      %v1571 = vrcp.pop %v1568
      %v1572 = vmul.f32 %v17, %v1571
      %v1573 = vpack.c.bf16 %v1572, %v1572
      %v1575 = vsel %vm74, %v1573, 0
      %1577 = vmatpush.bf16.msra.mxu0 0
      %1578 = vmatpush.bf16.msra.mxu0 0
      %1579 = vmatpush.bf16.msra.mxu0 0
      %1580 = vmatpush.bf16.msra.mxu0 0
      %1581 = vmatpush.bf16.msra.mxu0 0
      %1582 = vmatpush.bf16.msra.mxu0 0
      %1583 = vmatpush.bf16.msra.mxu0 %v40
      %1584 = vmatpush.bf16.msra.mxu0 %v39
      %1585 = vmatmul.bf16.gmra.mxu0 %v1575
      %v1586 = vpop.f32.mrf.mxu0
      %v1587 = vadd.f32 1e-16, %v1586
      %v1588 = vpop.f32.mrf.mxu0
      %1589 = vdwg.mxu0
      %v1590 = vrcp.pop %v1587
      %v1591 = vmul.f32 %v18, %v1590
      %v1592 = vpack.c.bf16 %v1591, %v1591
      %v1594 = vsel %vm94, %v1592, 0
      %1596 = vmatpush.bf16.msra.mxu0 0
      %1597 = vmatpush.bf16.msra.mxu0 0
      %1598 = vmatpush.bf16.msra.mxu0 0
      %1599 = vmatpush.bf16.msra.mxu0 0
      %1600 = vmatpush.bf16.msra.mxu0 0
      %1601 = vmatpush.bf16.msra.mxu0 0
      %1602 = vmatpush.bf16.msra.mxu0 0
      %1603 = vmatpush.bf16.msra.mxu0 %v73
      %1604 = vmatmul.bf16.gmra.mxu0 %v1594
      %v1605 = vpop.f32.mrf.mxu0
      %v1606 = vadd.f32 1e-16, %v1605
      %v1607 = vpop.f32.mrf.mxu0
      %1608 = vdwg.mxu0
      %v1609 = vrcp.pop %v1606
      %v1610 = vmul.f32 %v17, %v1609
      %v1611 = vpack.c.bf16 %v1610, %v1610
      %v1613 = vsel %vm74, %v1611, 0
      %1615 = vmatpush.bf16.msra.mxu0 0
      %1616 = vmatpush.bf16.msra.mxu0 0
      %1617 = vmatpush.bf16.msra.mxu0 0
      %1618 = vmatpush.bf16.msra.mxu0 0
      %1619 = vmatpush.bf16.msra.mxu0 0
      %1620 = vmatpush.bf16.msra.mxu0 0
      %1621 = vmatpush.bf16.msra.mxu0 %v40
      %1622 = vmatpush.bf16.msra.mxu0 %v39
      %1623 = vmatmul.bf16.gmra.mxu0 %v1613
      %v1624 = vpop.f32.mrf.mxu0
      %v1625 = vadd.f32 1e-16, %v1624
      %v1626 = vpop.f32.mrf.mxu0
      %1627 = vdwg.mxu0
      %v1628 = vrcp.pop %v1625
      %v1629 = vmul.f32 %v18, %v1628
      %v1630 = vpack.c.bf16 %v1629, %v1629
      %v1632 = vsel %vm94, %v1630, 0
      %1634 = vmatpush.bf16.msra.mxu0 0
      %1635 = vmatpush.bf16.msra.mxu0 0
      %1636 = vmatpush.bf16.msra.mxu0 0
      %1637 = vmatpush.bf16.msra.mxu0 0
      %1638 = vmatpush.bf16.msra.mxu0 0
      %1639 = vmatpush.bf16.msra.mxu0 0
      %1640 = vmatpush.bf16.msra.mxu0 0
      %1641 = vmatpush.bf16.msra.mxu0 %v73
      %1642 = vmatmul.bf16.gmra.mxu0 %v1632
      %v1643 = vpop.f32.mrf.mxu0
      %v1644 = vadd.f32 1e-16, %v1643
      %v1645 = vpop.f32.mrf.mxu0
      %1646 = vdwg.mxu0
      %v1647 = vrcp.pop %v1644
      %v1648 = vmul.f32 %v17, %v1647
      %v1649 = vpack.c.bf16 %v1648, %v1648
      %v1651 = vsel %vm74, %v1649, 0
      %1653 = vmatpush.bf16.msra.mxu0 0
      %1654 = vmatpush.bf16.msra.mxu0 0
      %1655 = vmatpush.bf16.msra.mxu0 0
      %1656 = vmatpush.bf16.msra.mxu0 0
      %1657 = vmatpush.bf16.msra.mxu0 0
      %1658 = vmatpush.bf16.msra.mxu0 0
      %1659 = vmatpush.bf16.msra.mxu0 %v40
      %1660 = vmatpush.bf16.msra.mxu0 %v39
      %1661 = vmatmul.bf16.gmra.mxu0 %v1651
      %v1662 = vpop.f32.mrf.mxu0
      %v1663 = vadd.f32 1e-16, %v1662
      %v1664 = vpop.f32.mrf.mxu0
      %1665 = vdwg.mxu0
      %v1666 = vrcp.pop %v1663
      %v1667 = vmul.f32 %v18, %v1666
      %v1668 = vpack.c.bf16 %v1667, %v1667
      %v1670 = vsel %vm94, %v1668, 0
      %1672 = vmatpush.bf16.msra.mxu0 0
      %1673 = vmatpush.bf16.msra.mxu0 0
      %1674 = vmatpush.bf16.msra.mxu0 0
      %1675 = vmatpush.bf16.msra.mxu0 0
      %1676 = vmatpush.bf16.msra.mxu0 0
      %1677 = vmatpush.bf16.msra.mxu0 0
      %1678 = vmatpush.bf16.msra.mxu0 0
      %1679 = vmatpush.bf16.msra.mxu0 %v73
      %1680 = vmatmul.bf16.gmra.mxu0 %v1670
      %v1681 = vpop.f32.mrf.mxu0
      %v1682 = vadd.f32 1e-16, %v1681
      %v1683 = vpop.f32.mrf.mxu0
      %1684 = vdwg.mxu0
      %v1685 = vrcp.pop %v1682
      %v1686 = vmul.f32 %v17, %v1685
      %v1687 = vpack.c.bf16 %v1686, %v1686
      %v1689 = vsel %vm74, %v1687, 0
      %1691 = vmatpush.bf16.msra.mxu0 0
      %1692 = vmatpush.bf16.msra.mxu0 0
      %1693 = vmatpush.bf16.msra.mxu0 0
      %1694 = vmatpush.bf16.msra.mxu0 0
      %1695 = vmatpush.bf16.msra.mxu0 0
      %1696 = vmatpush.bf16.msra.mxu0 0
      %1697 = vmatpush.bf16.msra.mxu0 %v40
      %1698 = vmatpush.bf16.msra.mxu0 %v39
      %1699 = vmatmul.bf16.gmra.mxu0 %v1689
      %v1700 = vpop.f32.mrf.mxu0
      %v1701 = vadd.f32 1e-16, %v1700
      %v1702 = vpop.f32.mrf.mxu0
      %1703 = vdwg.mxu0
      %v1704 = vrcp.pop %v1701
      %v1705 = vmul.f32 %v18, %v1704
      %v1706 = vpack.c.bf16 %v1705, %v1705
      %v1708 = vsel %vm94, %v1706, 0
      %1710 = vmatpush.bf16.msra.mxu0 0
      %1711 = vmatpush.bf16.msra.mxu0 0
      %1712 = vmatpush.bf16.msra.mxu0 0
      %1713 = vmatpush.bf16.msra.mxu0 0
      %1714 = vmatpush.bf16.msra.mxu0 0
      %1715 = vmatpush.bf16.msra.mxu0 0
      %1716 = vmatpush.bf16.msra.mxu0 0
      %1717 = vmatpush.bf16.msra.mxu0 %v73
      %1718 = vmatmul.bf16.gmra.mxu0 %v1708
      %v1719 = vpop.f32.mrf.mxu0
      %v1720 = vadd.f32 1e-16, %v1719
      %v1721 = vpop.f32.mrf.mxu0
      %1722 = vdwg.mxu0
      %v1723 = vrcp.pop %v1720
      %v1724 = vmul.f32 %v17, %v1723
      %v1725 = vpack.c.bf16 %v1724, %v1724
      %v1727 = vsel %vm74, %v1725, 0
      %1729 = vmatpush.bf16.msra.mxu0 0
      %1730 = vmatpush.bf16.msra.mxu0 0
      %1731 = vmatpush.bf16.msra.mxu0 0
      %1732 = vmatpush.bf16.msra.mxu0 0
      %1733 = vmatpush.bf16.msra.mxu0 0
      %1734 = vmatpush.bf16.msra.mxu0 0
      %1735 = vmatpush.bf16.msra.mxu0 %v40
      %1736 = vmatpush.bf16.msra.mxu0 %v39
      %1737 = vmatmul.bf16.gmra.mxu0 %v1727
      %v1738 = vpop.f32.mrf.mxu0
      %v1739 = vadd.f32 1e-16, %v1738
      %v1740 = vpop.f32.mrf.mxu0
      %1741 = vdwg.mxu0
      %v1742 = vrcp.pop %v1739
      %v1743 = vmul.f32 %v18, %v1742
      %v1744 = vpack.c.bf16 %v1743, %v1743
      %v1746 = vsel %vm94, %v1744, 0
      %1748 = vmatpush.bf16.msra.mxu0 0
      %1749 = vmatpush.bf16.msra.mxu0 0
      %1750 = vmatpush.bf16.msra.mxu0 0
      %1751 = vmatpush.bf16.msra.mxu0 0
      %1752 = vmatpush.bf16.msra.mxu0 0
      %1753 = vmatpush.bf16.msra.mxu0 0
      %1754 = vmatpush.bf16.msra.mxu0 0
      %1755 = vmatpush.bf16.msra.mxu0 %v73
      %1756 = vmatmul.bf16.gmra.mxu0 %v1746
      %v1757 = vpop.f32.mrf.mxu0
      %v1758 = vadd.f32 1e-16, %v1757
      %v1759 = vpop.f32.mrf.mxu0
      %1760 = vdwg.mxu0
      %v1761 = vrcp.pop %v1758
      %v1762 = vmul.f32 %v17, %v1761
      %v1763 = vpack.c.bf16 %v1762, %v1762
      %v1765 = vsel %vm74, %v1763, 0
      %1767 = vmatpush.bf16.msra.mxu0 0
      %1768 = vmatpush.bf16.msra.mxu0 0
      %1769 = vmatpush.bf16.msra.mxu0 0
      %1770 = vmatpush.bf16.msra.mxu0 0
      %1771 = vmatpush.bf16.msra.mxu0 0
      %1772 = vmatpush.bf16.msra.mxu0 0
      %1773 = vmatpush.bf16.msra.mxu0 %v40
      %1774 = vmatpush.bf16.msra.mxu0 %v39
      %1775 = vmatmul.bf16.gmra.mxu0 %v1765
      %v1776 = vpop.f32.mrf.mxu0
      %v1777 = vadd.f32 1e-16, %v1776
      %v1778 = vpop.f32.mrf.mxu0
      %1779 = vdwg.mxu0
      %v1780 = vrcp.pop %v1777
      %v1781 = vmul.f32 %v18, %v1780
      %v1782 = vpack.c.bf16 %v1781, %v1781
      %v1784 = vsel %vm94, %v1782, 0
      %1786 = vmatpush.bf16.msra.mxu0 0
      %1787 = vmatpush.bf16.msra.mxu0 0
      %1788 = vmatpush.bf16.msra.mxu0 0
      %1789 = vmatpush.bf16.msra.mxu0 0
      %1790 = vmatpush.bf16.msra.mxu0 0
      %1791 = vmatpush.bf16.msra.mxu0 0
      %1792 = vmatpush.bf16.msra.mxu0 0
      %1793 = vmatpush.bf16.msra.mxu0 %v73
      %1794 = vmatmul.bf16.gmra.mxu0 %v1784
      %v1795 = vpop.f32.mrf.mxu0
      %v1796 = vadd.f32 1e-16, %v1795
      %v1797 = vpop.f32.mrf.mxu0
      %1798 = vdwg.mxu0
      %v1799 = vrcp.pop %v1796
      %v1800 = vmul.f32 %v17, %v1799
      %v1801 = vpack.c.bf16 %v1800, %v1800
      %v1803 = vsel %vm74, %v1801, 0
      %1805 = vmatpush.bf16.msra.mxu0 0
      %1806 = vmatpush.bf16.msra.mxu0 0
      %1807 = vmatpush.bf16.msra.mxu0 0
      %1808 = vmatpush.bf16.msra.mxu0 0
      %1809 = vmatpush.bf16.msra.mxu0 0
      %1810 = vmatpush.bf16.msra.mxu0 0
      %1811 = vmatpush.bf16.msra.mxu0 %v40
      %1812 = vmatpush.bf16.msra.mxu0 %v39
      %1813 = vmatmul.bf16.gmra.mxu0 %v1803
      %v1814 = vpop.f32.mrf.mxu0
      %v1815 = vadd.f32 1e-16, %v1814
      %v1816 = vpop.f32.mrf.mxu0
      %1817 = vdwg.mxu0
      %v1818 = vrcp.pop %v1815
      %v1819 = vmul.f32 %v18, %v1818
      %v1820 = vpack.c.bf16 %v1819, %v1819
      %v1822 = vsel %vm94, %v1820, 0
      %1824 = vmatpush.bf16.msra.mxu0 0
      %1825 = vmatpush.bf16.msra.mxu0 0
      %1826 = vmatpush.bf16.msra.mxu0 0
      %1827 = vmatpush.bf16.msra.mxu0 0
      %1828 = vmatpush.bf16.msra.mxu0 0
      %1829 = vmatpush.bf16.msra.mxu0 0
      %1830 = vmatpush.bf16.msra.mxu0 0
      %1831 = vmatpush.bf16.msra.mxu0 %v73
      %1832 = vmatmul.bf16.gmra.mxu0 %v1822
      %v1833 = vpop.f32.mrf.mxu0
      %v1834 = vadd.f32 1e-16, %v1833
      %v1835 = vpop.f32.mrf.mxu0
      %1836 = vdwg.mxu0
      %v1837 = vrcp.pop %v1834
      %v1838 = vmul.f32 %v17, %v1837
      %v1839 = vpack.c.bf16 %v1838, %v1838
      %v1841 = vsel %vm74, %v1839, 0
      %1843 = vmatpush.bf16.msra.mxu0 0
      %1844 = vmatpush.bf16.msra.mxu0 0
      %1845 = vmatpush.bf16.msra.mxu0 0
      %1846 = vmatpush.bf16.msra.mxu0 0
      %1847 = vmatpush.bf16.msra.mxu0 0
      %1848 = vmatpush.bf16.msra.mxu0 0
      %1849 = vmatpush.bf16.msra.mxu0 %v40
      %1850 = vmatpush.bf16.msra.mxu0 %v39
      %1851 = vmatmul.bf16.gmra.mxu0 %v1841
      %v1852 = vpop.f32.mrf.mxu0
      %v1853 = vadd.f32 1e-16, %v1852
      %v1854 = vpop.f32.mrf.mxu0
      %1855 = vdwg.mxu0
      %v1856 = vrcp.pop %v1853
      %v1857 = vmul.f32 %v18, %v1856
      %v1858 = vpack.c.bf16 %v1857, %v1857
      %v1860 = vsel %vm94, %v1858, 0
      %1862 = vmatpush.bf16.msra.mxu0 0
      %1863 = vmatpush.bf16.msra.mxu0 0
      %1864 = vmatpush.bf16.msra.mxu0 0
      %1865 = vmatpush.bf16.msra.mxu0 0
      %1866 = vmatpush.bf16.msra.mxu0 0
      %1867 = vmatpush.bf16.msra.mxu0 0
      %1868 = vmatpush.bf16.msra.mxu0 0
      %1869 = vmatpush.bf16.msra.mxu0 %v73
      %1870 = vmatmul.bf16.gmra.mxu0 %v1860
      %v1871 = vpop.f32.mrf.mxu0
      %v1872 = vadd.f32 1e-16, %v1871
      %v1873 = vpop.f32.mrf.mxu0
      %1874 = vdwg.mxu0
      %v1875 = vrcp.pop %v1872
      %v1876 = vmul.f32 %v17, %v1875
      %v1877 = vpack.c.bf16 %v1876, %v1876
      %v1879 = vsel %vm74, %v1877, 0
      %1881 = vmatpush.bf16.msra.mxu0 0
      %1882 = vmatpush.bf16.msra.mxu0 0
      %1883 = vmatpush.bf16.msra.mxu0 0
      %1884 = vmatpush.bf16.msra.mxu0 0
      %1885 = vmatpush.bf16.msra.mxu0 0
      %1886 = vmatpush.bf16.msra.mxu0 0
      %1887 = vmatpush.bf16.msra.mxu0 %v40
      %1888 = vmatpush.bf16.msra.mxu0 %v39
      %1889 = vmatmul.bf16.gmra.mxu0 %v1879
      %v1890 = vpop.f32.mrf.mxu0
      %v1891 = vadd.f32 1e-16, %v1890
      %v1892 = vpop.f32.mrf.mxu0
      %1893 = vdwg.mxu0
      %v1894 = vrcp.pop %v1891
      %v1895 = vmul.f32 %v18, %v1894
      %v1896 = vpack.c.bf16 %v1895, %v1895
      %v1898 = vsel %vm94, %v1896, 0
      %1900 = vmatpush.bf16.msra.mxu0 0
      %1901 = vmatpush.bf16.msra.mxu0 0
      %1902 = vmatpush.bf16.msra.mxu0 0
      %1903 = vmatpush.bf16.msra.mxu0 0
      %1904 = vmatpush.bf16.msra.mxu0 0
      %1905 = vmatpush.bf16.msra.mxu0 0
      %1906 = vmatpush.bf16.msra.mxu0 0
      %1907 = vmatpush.bf16.msra.mxu0 %v73
      %1908 = vmatmul.bf16.gmra.mxu0 %v1898
      %v1909 = vpop.f32.mrf.mxu0
      %v1910 = vadd.f32 1e-16, %v1909
      %v1911 = vpop.f32.mrf.mxu0
      %1912 = vdwg.mxu0
      %v1913 = vrcp.pop %v1910
      %v1914 = vmul.f32 %v17, %v1913
      %v1915 = vpack.c.bf16 %v1914, %v1914
      %v1917 = vsel %vm74, %v1915, 0
      %1919 = vmatpush.bf16.msra.mxu0 0
      %1920 = vmatpush.bf16.msra.mxu0 0
      %1921 = vmatpush.bf16.msra.mxu0 0
      %1922 = vmatpush.bf16.msra.mxu0 0
      %1923 = vmatpush.bf16.msra.mxu0 0
      %1924 = vmatpush.bf16.msra.mxu0 0
      %1925 = vmatpush.bf16.msra.mxu0 %v40
      %1926 = vmatpush.bf16.msra.mxu0 %v39
      %1927 = vmatmul.bf16.gmra.mxu0 %v1917
      %v1928 = vpop.f32.mrf.mxu0
      %v1929 = vadd.f32 1e-16, %v1928
      %v1930 = vpop.f32.mrf.mxu0
      %1931 = vdwg.mxu0
      %v1932 = vrcp.pop %v1929
      %v1933 = vmul.f32 %v18, %v1932
      %v1934 = vpack.c.bf16 %v1933, %v1933
      %v1936 = vsel %vm94, %v1934, 0
      %1938 = vmatpush.bf16.msra.mxu0 0
      %1939 = vmatpush.bf16.msra.mxu0 0
      %1940 = vmatpush.bf16.msra.mxu0 0
      %1941 = vmatpush.bf16.msra.mxu0 0
      %1942 = vmatpush.bf16.msra.mxu0 0
      %1943 = vmatpush.bf16.msra.mxu0 0
      %1944 = vmatpush.bf16.msra.mxu0 0
      %1945 = vmatpush.bf16.msra.mxu0 %v73
      %1946 = vmatmul.bf16.gmra.mxu0 %v1936
      %v1947 = vpop.f32.mrf.mxu0
      %v1948 = vadd.f32 1e-16, %v1947
      %v1949 = vpop.f32.mrf.mxu0
      %1950 = vdwg.mxu0
      %v1951 = vrcp.pop %v1948
      %v1952 = vmul.f32 %v17, %v1951
      %v1953 = vpack.c.bf16 %v1952, %v1952
      %v1955 = vsel %vm74, %v1953, 0
      %1957 = vmatpush.bf16.msra.mxu0 0
      %1958 = vmatpush.bf16.msra.mxu0 0
      %1959 = vmatpush.bf16.msra.mxu0 0
      %1960 = vmatpush.bf16.msra.mxu0 0
      %1961 = vmatpush.bf16.msra.mxu0 0
      %1962 = vmatpush.bf16.msra.mxu0 0
      %1963 = vmatpush.bf16.msra.mxu0 %v40
      %1964 = vmatpush.bf16.msra.mxu0 %v39
      %1965 = vmatmul.bf16.gmra.mxu0 %v1955
      %v1966 = vpop.f32.mrf.mxu0
      %v1967 = vadd.f32 1e-16, %v1966
      %v1968 = vpop.f32.mrf.mxu0
      %1969 = vdwg.mxu0
      %v1970 = vrcp.pop %v1967
      %v1971 = vmul.f32 %v18, %v1970
      %v1972 = vpack.c.bf16 %v1971, %v1971
      %v1974 = vsel %vm94, %v1972, 0
      %1976 = vmatpush.bf16.msra.mxu0 0
      %1977 = vmatpush.bf16.msra.mxu0 0
      %1978 = vmatpush.bf16.msra.mxu0 0
      %1979 = vmatpush.bf16.msra.mxu0 0
      %1980 = vmatpush.bf16.msra.mxu0 0
      %1981 = vmatpush.bf16.msra.mxu0 0
      %1982 = vmatpush.bf16.msra.mxu0 0
      %1983 = vmatpush.bf16.msra.mxu0 %v73
      %1984 = vmatmul.bf16.gmra.mxu0 %v1974
      %v1985 = vpop.f32.mrf.mxu0
      %v1986 = vadd.f32 1e-16, %v1985
      %v1987 = vpop.f32.mrf.mxu0
      %1988 = vdwg.mxu0
      %v1989 = vrcp.pop %v1986
      %v1990 = vmul.f32 %v17, %v1989
      %v1991 = vpack.c.bf16 %v1990, %v1990
      %v1993 = vsel %vm74, %v1991, 0
      %1995 = vmatpush.bf16.msra.mxu0 0
      %1996 = vmatpush.bf16.msra.mxu0 0
      %1997 = vmatpush.bf16.msra.mxu0 0
      %1998 = vmatpush.bf16.msra.mxu0 0
      %1999 = vmatpush.bf16.msra.mxu0 0
      %2000 = vmatpush.bf16.msra.mxu0 0
      %2001 = vmatpush.bf16.msra.mxu0 %v40
      %2002 = vmatpush.bf16.msra.mxu0 %v39
      %2003 = vmatmul.bf16.gmra.mxu0 %v1993
      %v2004 = vpop.f32.mrf.mxu0
      %v2005 = vadd.f32 1e-16, %v2004
      %v2006 = vpop.f32.mrf.mxu0
      %2007 = vdwg.mxu0
      %v2008 = vrcp.pop %v2005
      %v2009 = vmul.f32 %v18, %v2008
      %v2010 = vpack.c.bf16 %v2009, %v2009
      %v2012 = vsel %vm94, %v2010, 0
      %2014 = vmatpush.bf16.msra.mxu0 0
      %2015 = vmatpush.bf16.msra.mxu0 0
      %2016 = vmatpush.bf16.msra.mxu0 0
      %2017 = vmatpush.bf16.msra.mxu0 0
      %2018 = vmatpush.bf16.msra.mxu0 0
      %2019 = vmatpush.bf16.msra.mxu0 0
      %2020 = vmatpush.bf16.msra.mxu0 0
      %2021 = vmatpush.bf16.msra.mxu0 %v73
      %2022 = vmatmul.bf16.gmra.mxu0 %v2012
      %v2023 = vpop.f32.mrf.mxu0
      %v2024 = vadd.f32 1e-16, %v2023
      %v2025 = vpop.f32.mrf.mxu0
      %2026 = vdwg.mxu0
      %v2027 = vrcp.pop %v2024
      %v2028 = vmul.f32 %v17, %v2027
      %v2029 = vpack.c.bf16 %v2028, %v2028
      %v2031 = vsel %vm74, %v2029, 0
      %2033 = vmatpush.bf16.msra.mxu0 0
      %2034 = vmatpush.bf16.msra.mxu0 0
      %2035 = vmatpush.bf16.msra.mxu0 0
      %2036 = vmatpush.bf16.msra.mxu0 0
      %2037 = vmatpush.bf16.msra.mxu0 0
      %2038 = vmatpush.bf16.msra.mxu0 0
      %2039 = vmatpush.bf16.msra.mxu0 %v40
      %2040 = vmatpush.bf16.msra.mxu0 %v39
      %2041 = vmatmul.bf16.gmra.mxu0 %v2031
      %v2042 = vpop.f32.mrf.mxu0
      %v2043 = vadd.f32 1e-16, %v2042
      %v2044 = vpop.f32.mrf.mxu0
      %2045 = vdwg.mxu0
      %v2046 = vrcp.pop %v2043
      %v2047 = vmul.f32 %v18, %v2046
      %v2048 = vpack.c.bf16 %v2047, %v2047
      %v2050 = vsel %vm94, %v2048, 0
      %2052 = vmatpush.bf16.msra.mxu0 0
      %2053 = vmatpush.bf16.msra.mxu0 0
      %2054 = vmatpush.bf16.msra.mxu0 0
      %2055 = vmatpush.bf16.msra.mxu0 0
      %2056 = vmatpush.bf16.msra.mxu0 0
      %2057 = vmatpush.bf16.msra.mxu0 0
      %2058 = vmatpush.bf16.msra.mxu0 0
      %2059 = vmatpush.bf16.msra.mxu0 %v73
      %2060 = vmatmul.bf16.gmra.mxu0 %v2050
      %v2061 = vpop.f32.mrf.mxu0
      %v2062 = vadd.f32 1e-16, %v2061
      %v2063 = vpop.f32.mrf.mxu0
      %2064 = vdwg.mxu0
      %v2065 = vrcp.pop %v2062
      %v2066 = vmul.f32 %v17, %v2065
      %v2067 = vpack.c.bf16 %v2066, %v2066
      %v2069 = vsel %vm74, %v2067, 0
      %2071 = vmatpush.bf16.msra.mxu0 0
      %2072 = vmatpush.bf16.msra.mxu0 0
      %2073 = vmatpush.bf16.msra.mxu0 0
      %2074 = vmatpush.bf16.msra.mxu0 0
      %2075 = vmatpush.bf16.msra.mxu0 0
      %2076 = vmatpush.bf16.msra.mxu0 0
      %2077 = vmatpush.bf16.msra.mxu0 %v40
      %2078 = vmatpush.bf16.msra.mxu0 %v39
      %2079 = vmatmul.bf16.gmra.mxu0 %v2069
      %v2080 = vpop.f32.mrf.mxu0
      %v2081 = vadd.f32 1e-16, %v2080
      %v2082 = vpop.f32.mrf.mxu0
      %2083 = vdwg.mxu0
      %v2084 = vrcp.pop %v2081
      %v2085 = vmul.f32 %v18, %v2084
      %v2086 = vpack.c.bf16 %v2085, %v2085
      %v2088 = vsel %vm94, %v2086, 0
      %2090 = vmatpush.bf16.msra.mxu0 0
      %2091 = vmatpush.bf16.msra.mxu0 0
      %2092 = vmatpush.bf16.msra.mxu0 0
      %2093 = vmatpush.bf16.msra.mxu0 0
      %2094 = vmatpush.bf16.msra.mxu0 0
      %2095 = vmatpush.bf16.msra.mxu0 0
      %2096 = vmatpush.bf16.msra.mxu0 0
      %2097 = vmatpush.bf16.msra.mxu0 %v73
      %2098 = vmatmul.bf16.gmra.mxu0 %v2088
      %v2099 = vpop.f32.mrf.mxu0
      %v2100 = vadd.f32 1e-16, %v2099
      %v2101 = vpop.f32.mrf.mxu0
      %2102 = vdwg.mxu0
      %v2103 = vrcp.pop %v2100
      %v2104 = vmul.f32 %v17, %v2103
      %v2105 = vpack.c.bf16 %v2104, %v2104
      %v2107 = vsel %vm74, %v2105, 0
      %2109 = vmatpush.bf16.msra.mxu0 0
      %2110 = vmatpush.bf16.msra.mxu0 0
      %2111 = vmatpush.bf16.msra.mxu0 0
      %2112 = vmatpush.bf16.msra.mxu0 0
      %2113 = vmatpush.bf16.msra.mxu0 0
      %2114 = vmatpush.bf16.msra.mxu0 0
      %2115 = vmatpush.bf16.msra.mxu0 %v40
      %2116 = vmatpush.bf16.msra.mxu0 %v39
      %2117 = vmatmul.bf16.gmra.mxu0 %v2107
      %v2118 = vpop.f32.mrf.mxu0
      %v2119 = vadd.f32 1e-16, %v2118
      %v2120 = vpop.f32.mrf.mxu0
      %2121 = vdwg.mxu0
      %v2122 = vrcp.pop %v2119
      %v2123 = vmul.f32 %v18, %v2122
      %v2124 = vpack.c.bf16 %v2123, %v2123
      %v2126 = vsel %vm94, %v2124, 0
      %2128 = vmatpush.bf16.msra.mxu0 0
      %2129 = vmatpush.bf16.msra.mxu0 0
      %2130 = vmatpush.bf16.msra.mxu0 0
      %2131 = vmatpush.bf16.msra.mxu0 0
      %2132 = vmatpush.bf16.msra.mxu0 0
      %2133 = vmatpush.bf16.msra.mxu0 0
      %2134 = vmatpush.bf16.msra.mxu0 0
      %2135 = vmatpush.bf16.msra.mxu0 %v73
      %2136 = vmatmul.bf16.gmra.mxu0 %v2126
      %v2137 = vpop.f32.mrf.mxu0
      %v2138 = vadd.f32 1e-16, %v2137
      %v2139 = vpop.f32.mrf.mxu0
      %2140 = vdwg.mxu0
      %v2141 = vrcp.pop %v2138
      %v2142 = vmul.f32 %v17, %v2141
      %v2143 = vpack.c.bf16 %v2142, %v2142
      %v2145 = vsel %vm74, %v2143, 0
      %2147 = vmatpush.bf16.msra.mxu0 0
      %2148 = vmatpush.bf16.msra.mxu0 0
      %2149 = vmatpush.bf16.msra.mxu0 0
      %2150 = vmatpush.bf16.msra.mxu0 0
      %2151 = vmatpush.bf16.msra.mxu0 0
      %2152 = vmatpush.bf16.msra.mxu0 0
      %2153 = vmatpush.bf16.msra.mxu0 %v40
      %2154 = vmatpush.bf16.msra.mxu0 %v39
      %2155 = vmatmul.bf16.gmra.mxu0 %v2145
      %v2156 = vpop.f32.mrf.mxu0
      %v2157 = vadd.f32 1e-16, %v2156
      %v2158 = vpop.f32.mrf.mxu0
      %2159 = vdwg.mxu0
      %v2160 = vrcp.pop %v2157
      %v2161 = vmul.f32 %v18, %v2160
      %v2162 = vpack.c.bf16 %v2161, %v2161
      %v2164 = vsel %vm94, %v2162, 0
      %2166 = vmatpush.bf16.msra.mxu0 0
      %2167 = vmatpush.bf16.msra.mxu0 0
      %2168 = vmatpush.bf16.msra.mxu0 0
      %2169 = vmatpush.bf16.msra.mxu0 0
      %2170 = vmatpush.bf16.msra.mxu0 0
      %2171 = vmatpush.bf16.msra.mxu0 0
      %2172 = vmatpush.bf16.msra.mxu0 0
      %2173 = vmatpush.bf16.msra.mxu0 %v73
      %2174 = vmatmul.bf16.gmra.mxu0 %v2164
      %v2175 = vpop.f32.mrf.mxu0
      %v2176 = vadd.f32 1e-16, %v2175
      %v2177 = vpop.f32.mrf.mxu0
      %2178 = vdwg.mxu0
      %v2179 = vrcp.pop %v2176
      %v2180 = vmul.f32 %v17, %v2179
      %v2181 = vpack.c.bf16 %v2180, %v2180
      %v2183 = vsel %vm74, %v2181, 0
      %2185 = vmatpush.bf16.msra.mxu0 0
      %2186 = vmatpush.bf16.msra.mxu0 0
      %2187 = vmatpush.bf16.msra.mxu0 0
      %2188 = vmatpush.bf16.msra.mxu0 0
      %2189 = vmatpush.bf16.msra.mxu0 0
      %2190 = vmatpush.bf16.msra.mxu0 0
      %2191 = vmatpush.bf16.msra.mxu0 %v40
      %2192 = vmatpush.bf16.msra.mxu0 %v39
      %2193 = vmatmul.bf16.gmra.mxu0 %v2183
      %v2194 = vpop.f32.mrf.mxu0
      %v2195 = vadd.f32 1e-16, %v2194
      %v2196 = vpop.f32.mrf.mxu0
      %2197 = vdwg.mxu0
      %v2198 = vrcp.pop %v2195
      %v2199 = vmul.f32 %v18, %v2198
      %v2200 = vpack.c.bf16 %v2199, %v2199
      %v2202 = vsel %vm94, %v2200, 0
      %2204 = vmatpush.bf16.msra.mxu0 0
      %2205 = vmatpush.bf16.msra.mxu0 0
      %2206 = vmatpush.bf16.msra.mxu0 0
      %2207 = vmatpush.bf16.msra.mxu0 0
      %2208 = vmatpush.bf16.msra.mxu0 0
      %2209 = vmatpush.bf16.msra.mxu0 0
      %2210 = vmatpush.bf16.msra.mxu0 0
      %2211 = vmatpush.bf16.msra.mxu0 %v73
      %2212 = vmatmul.bf16.gmra.mxu0 %v2202
      %v2213 = vpop.f32.mrf.mxu0
      %v2214 = vadd.f32 1e-16, %v2213
      %v2215 = vpop.f32.mrf.mxu0
      %2216 = vdwg.mxu0
      %v2217 = vrcp.pop %v2214
      %v2218 = vmul.f32 %v17, %v2217
      %v2219 = vpack.c.bf16 %v2218, %v2218
      %v2221 = vsel %vm74, %v2219, 0
      %2223 = vmatpush.bf16.msra.mxu0 0
      %2224 = vmatpush.bf16.msra.mxu0 0
      %2225 = vmatpush.bf16.msra.mxu0 0
      %2226 = vmatpush.bf16.msra.mxu0 0
      %2227 = vmatpush.bf16.msra.mxu0 0
      %2228 = vmatpush.bf16.msra.mxu0 0
      %2229 = vmatpush.bf16.msra.mxu0 %v40
      %2230 = vmatpush.bf16.msra.mxu0 %v39
      %2231 = vmatmul.bf16.gmra.mxu0 %v2221
      %v2232 = vpop.f32.mrf.mxu0
      %v2233 = vadd.f32 1e-16, %v2232
      %v2234 = vpop.f32.mrf.mxu0
      %2235 = vdwg.mxu0
      %v2236 = vrcp.pop %v2233
      %v2237 = vmul.f32 %v18, %v2236
      %v2238 = vpack.c.bf16 %v2237, %v2237
      %v2240 = vsel %vm94, %v2238, 0
      %2242 = vmatpush.bf16.msra.mxu0 0
      %2243 = vmatpush.bf16.msra.mxu0 0
      %2244 = vmatpush.bf16.msra.mxu0 0
      %2245 = vmatpush.bf16.msra.mxu0 0
      %2246 = vmatpush.bf16.msra.mxu0 0
      %2247 = vmatpush.bf16.msra.mxu0 0
      %2248 = vmatpush.bf16.msra.mxu0 0
      %2249 = vmatpush.bf16.msra.mxu0 %v73
      %2250 = vmatmul.bf16.gmra.mxu0 %v2240
      %v2251 = vpop.f32.mrf.mxu0
      %v2252 = vadd.f32 1e-16, %v2251
      %v2253 = vpop.f32.mrf.mxu0
      %2254 = vdwg.mxu0
      %v2255 = vrcp.pop %v2252
      %v2256 = vmul.f32 %v17, %v2255
      %v2257 = vpack.c.bf16 %v2256, %v2256
      %v2259 = vsel %vm74, %v2257, 0
      %2261 = vmatpush.bf16.msra.mxu0 0
      %2262 = vmatpush.bf16.msra.mxu0 0
      %2263 = vmatpush.bf16.msra.mxu0 0
      %2264 = vmatpush.bf16.msra.mxu0 0
      %2265 = vmatpush.bf16.msra.mxu0 0
      %2266 = vmatpush.bf16.msra.mxu0 0
      %2267 = vmatpush.bf16.msra.mxu0 %v40
      %2268 = vmatpush.bf16.msra.mxu0 %v39
      %2269 = vmatmul.bf16.gmra.mxu0 %v2259
      %v2270 = vpop.f32.mrf.mxu0
      %v2271 = vadd.f32 1e-16, %v2270
      %v2272 = vpop.f32.mrf.mxu0
      %2273 = vdwg.mxu0
      %v2274 = vrcp.pop %v2271
      %v2275 = vmul.f32 %v18, %v2274
      %v2276 = vpack.c.bf16 %v2275, %v2275
      %v2278 = vsel %vm94, %v2276, 0
      %2280 = vmatpush.bf16.msra.mxu0 0
      %2281 = vmatpush.bf16.msra.mxu0 0
      %2282 = vmatpush.bf16.msra.mxu0 0
      %2283 = vmatpush.bf16.msra.mxu0 0
      %2284 = vmatpush.bf16.msra.mxu0 0
      %2285 = vmatpush.bf16.msra.mxu0 0
      %2286 = vmatpush.bf16.msra.mxu0 0
      %2287 = vmatpush.bf16.msra.mxu0 %v73
      %2288 = vmatmul.bf16.gmra.mxu0 %v2278
      %v2289 = vpop.f32.mrf.mxu0
      %v2290 = vadd.f32 1e-16, %v2289
      %v2291 = vpop.f32.mrf.mxu0
      %2292 = vdwg.mxu0
      %v2293 = vrcp.pop %v2290
      %v2294 = vmul.f32 %v17, %v2293
      %v2295 = vpack.c.bf16 %v2294, %v2294
      %v2297 = vsel %vm74, %v2295, 0
      %2299 = vmatpush.bf16.msra.mxu0 0
      %2300 = vmatpush.bf16.msra.mxu0 0
      %2301 = vmatpush.bf16.msra.mxu0 0
      %2302 = vmatpush.bf16.msra.mxu0 0
      %2303 = vmatpush.bf16.msra.mxu0 0
      %2304 = vmatpush.bf16.msra.mxu0 0
      %2305 = vmatpush.bf16.msra.mxu0 %v40
      %2306 = vmatpush.bf16.msra.mxu0 %v39
      %2307 = vmatmul.bf16.gmra.mxu0 %v2297
      %v2308 = vpop.f32.mrf.mxu0
      %v2309 = vadd.f32 1e-16, %v2308
      %v2310 = vpop.f32.mrf.mxu0
      %2311 = vdwg.mxu0
      %v2312 = vrcp.pop %v2309
      %v2313 = vmul.f32 %v18, %v2312
      %v2314 = vpack.c.bf16 %v2313, %v2313
      %v2316 = vsel %vm94, %v2314, 0
      %2318 = vmatpush.bf16.msra.mxu0 0
      %2319 = vmatpush.bf16.msra.mxu0 0
      %2320 = vmatpush.bf16.msra.mxu0 0
      %2321 = vmatpush.bf16.msra.mxu0 0
      %2322 = vmatpush.bf16.msra.mxu0 0
      %2323 = vmatpush.bf16.msra.mxu0 0
      %2324 = vmatpush.bf16.msra.mxu0 0
      %2325 = vmatpush.bf16.msra.mxu0 %v73
      %2326 = vmatmul.bf16.gmra.mxu0 %v2316
      %v2327 = vpop.f32.mrf.mxu0
      %v2328 = vadd.f32 1e-16, %v2327
      %v2329 = vpop.f32.mrf.mxu0
      %2330 = vdwg.mxu0
      %v2331 = vrcp.pop %v2328
      %v2332 = vmul.f32 %v17, %v2331
      %v2333 = vpack.c.bf16 %v2332, %v2332
      %v2335 = vsel %vm74, %v2333, 0
      %2337 = vmatpush.bf16.msra.mxu0 0
      %2338 = vmatpush.bf16.msra.mxu0 0
      %2339 = vmatpush.bf16.msra.mxu0 0
      %2340 = vmatpush.bf16.msra.mxu0 0
      %2341 = vmatpush.bf16.msra.mxu0 0
      %2342 = vmatpush.bf16.msra.mxu0 0
      %2343 = vmatpush.bf16.msra.mxu0 %v40
      %2344 = vmatpush.bf16.msra.mxu0 %v39
      %2345 = vmatmul.bf16.gmra.mxu0 %v2335
      %v2346 = vpop.f32.mrf.mxu0
      %v2347 = vadd.f32 1e-16, %v2346
      %v2348 = vpop.f32.mrf.mxu0
      %2349 = vdwg.mxu0
      %v2350 = vrcp.pop %v2347
      %v2351 = vmul.f32 %v18, %v2350
      %v2352 = vpack.c.bf16 %v2351, %v2351
      %v2354 = vsel %vm94, %v2352, 0
      %2356 = vmatpush.bf16.msra.mxu0 0
      %2357 = vmatpush.bf16.msra.mxu0 0
      %2358 = vmatpush.bf16.msra.mxu0 0
      %2359 = vmatpush.bf16.msra.mxu0 0
      %2360 = vmatpush.bf16.msra.mxu0 0
      %2361 = vmatpush.bf16.msra.mxu0 0
      %2362 = vmatpush.bf16.msra.mxu0 0
      %2363 = vmatpush.bf16.msra.mxu0 %v73
      %2364 = vmatmul.bf16.gmra.mxu0 %v2354
      %v2365 = vpop.f32.mrf.mxu0
      %v2366 = vadd.f32 1e-16, %v2365
      %v2367 = vpop.f32.mrf.mxu0
      %2368 = vdwg.mxu0
      %v2369 = vrcp.pop %v2366
      %v2370 = vmul.f32 %v17, %v2369
      %v2371 = vpack.c.bf16 %v2370, %v2370
      %v2373 = vsel %vm74, %v2371, 0
      %2375 = vmatpush.bf16.msra.mxu0 0
      %2376 = vmatpush.bf16.msra.mxu0 0
      %2377 = vmatpush.bf16.msra.mxu0 0
      %2378 = vmatpush.bf16.msra.mxu0 0
      %2379 = vmatpush.bf16.msra.mxu0 0
      %2380 = vmatpush.bf16.msra.mxu0 0
      %2381 = vmatpush.bf16.msra.mxu0 %v40
      %2382 = vmatpush.bf16.msra.mxu0 %v39
      %2383 = vmatmul.bf16.gmra.mxu0 %v2373
      %v2384 = vpop.f32.mrf.mxu0
      %v2385 = vadd.f32 1e-16, %v2384
      %v2386 = vpop.f32.mrf.mxu0
      %2387 = vdwg.mxu0
      %v2388 = vrcp.pop %v2385
      %v2389 = vmul.f32 %v18, %v2388
      %v2390 = vpack.c.bf16 %v2389, %v2389
      %v2392 = vsel %vm94, %v2390, 0
      %2394 = vmatpush.bf16.msra.mxu0 0
      %2395 = vmatpush.bf16.msra.mxu0 0
      %2396 = vmatpush.bf16.msra.mxu0 0
      %2397 = vmatpush.bf16.msra.mxu0 0
      %2398 = vmatpush.bf16.msra.mxu0 0
      %2399 = vmatpush.bf16.msra.mxu0 0
      %2400 = vmatpush.bf16.msra.mxu0 0
      %2401 = vmatpush.bf16.msra.mxu0 %v73
      %2402 = vmatmul.bf16.gmra.mxu0 %v2392
      %v2403 = vpop.f32.mrf.mxu0
      %v2404 = vadd.f32 1e-16, %v2403
      %v2405 = vpop.f32.mrf.mxu0
      %2406 = vdwg.mxu0
      %v2407 = vrcp.pop %v2404
      %v2408 = vmul.f32 %v17, %v2407
    $region31: #{tpu_custom_call.1} parent=1 // pred_fallthru
      %v2409 = vphi 0, %v2408
      %v2410 = vphi 0, %v2389
    %p2411 = pneg %p559
    // Predicated region
    $region32: #{tpu_custom_call.1} parent=1 // pred_check
      _
    $region33: #{tpu_custom_call.1} parent=1 // pred_check_branch
      %2413 = sbr.rel (%p559) target = $region35
    $region34: #{tpu_custom_call.1} parent=1 // pred_region
      _
    $region35: #{tpu_custom_call.1} parent=1 // pred_fallthru
      %v2414 = vphi %v2409, %v144
      %v2415 = vphi %v2410, %v146
    %v2416 = vmul.f32 %v32, %v19
    %v2417 = vmul.f32 %v34, %v20
    %v2418 = vmul.f32 %v36, %v21
    %v2419 = vmul.f32 %v38, %v22
    %v2421 = vsel %vm74, %v2414, 0
    %2423 = vmatpush.msra.mxu0 0.0
    %2424 = vmatpush.msra.mxu0 0.0
    %2425 = vmatpush.msra.mxu0 0.0
    %2426 = vmatpush.msra.mxu0 0.0
    %2427 = vmatpush.msra.mxu0 0.0
    %2428 = vmatpush.msra.mxu0 0.0
    %2429 = vmatpush.msra.mxu0 0.0
    %2430 = vmatpush.msra.mxu0 0.0
    %2431 = vmatpush.msra.mxu0 0.0
    %2432 = vmatpush.msra.mxu0 0.0
    %2433 = vmatpush.msra.mxu0 0.0
    %2434 = vmatpush.msra.mxu0 0.0
    %2435 = vmatpush.msra.mxu0 %v2419
    %2436 = vmatpush.msra.mxu0 %v2418
    %2437 = vmatpush.msra.mxu0 %v2417
    %2438 = vmatpush.msra.mxu0 %v2416
    %2439 = vmatmul.f32.gmra.mxu0 %v2421
    %v2440 = vpop.f32.mrf.mxu0
    %v2441 = vadd.f32 0.0, %v2440
    %2442 = vdwg.mxu0
    %v2443 = vmul.f32 %v2441, %v2415
    %v2444 = vsel %vm94, %v2443, 0.0
    %2445 = vadd.xlane.f32.xlu0 %v2444
    %v2446 = vpop.xlane.xlu0 %2445
    %v2447 = vrot.slane %v2446, 4
    %v2448 = vadd.f32 %v2446, %v2447
    %v2449 = vrot.slane %v2448, 2
    %v2450 = vadd.f32 %v2448, %v2449
    %v2451 = vrot.slane %v2450, 1
    %v2452 = vadd.f32 %v2450, %v2451
    %v2453 = vmul.f32 %v2452, 0.125
    %vm2454 = vcmask 0
    %2455 = vst.msk [vmem:[#allocation2] sm:$0x1] %vm2454, %v2453
    // Predicated region
    $region36: #{tpu_custom_call.1} parent=1 // pred_check
      _
    $region37: #{tpu_custom_call.1} parent=1 // pred_check_branch
      %2457 = sbr.rel (0) target = $region39
    $region38: #{tpu_custom_call.1} parent=1 // pred_region
      %2459 = vsyncadd [#allocation3], 0
      %s2461 = sshll.u32 [#allocation2], 4
      %s2462 = int_to_ptr.vmem [resolvable:$true] %s2461
      %s2463 = sshll.u32 %s3, 4
      %s2464 = int_to_ptr.hbm [resolvable:$true] %s2463
      %2466 = dma.vmem_to_hbm [thread:$0]  %s2462, 16, %s2464, [#allocation3]
    $region39: #{tpu_custom_call.1} parent=1 // pred_fallthru
      _
    // Predicated region
    $region40: #{tpu_custom_call.1} parent=1 // pred_check
      _
    $region41: #{tpu_custom_call.1} parent=1 // pred_check_branch
      %2468 = sbr.rel (0) target = $region43
    $region42: #{tpu_custom_call.1} parent=1 // pred_region
      %2470 = dma.done [#allocation3], 16
    $region43: #{tpu_custom_call.1} parent=1 // pred_fallthru
      _
    %2471 = vsyncpa [#allocation3], 1

</llo_original>
